<compile_context>
chip_gen: v6e
topology: v6e:2x2x1
jax: 0.10.0
libtpu: 0.0.40
codegen_flags: <defaults>
</compile_context>

<pallas_src>
import functools
import math

import jax
import jax.numpy as jnp
from jax.experimental import pallas as pl
from jax.experimental.pallas import tpu as pltpu

_NEG = -1e9       # finite "-inf" for masking (avoids NaN from (-inf)-(-inf))
_M_INIT = -1e30   # running-max init for the online softmax


# ----------------------------- helpers -----------------------------

@functools.lru_cache(maxsize=1)
def _vmem_limit_bytes():
    try:
        kind = jax.devices()[0].device_kind.lower()
    except Exception:
        kind = ""
    if "v7" in kind:
        return 48 * 1024 * 1024       # v7x: 64 MiB physical VMEM per core
    if "v5" in kind or "v6" in kind:
        return 96 * 1024 * 1024       # v5e/v6e: 128 MiB physical VMEM
    return 32 * 1024 * 1024           # conservative fallback


def _pick_sublane_tile(n, max_tile=256):
    """Largest tile <= max_tile dividing n and multiple of 8 (or n itself)."""
    if n <= max_tile:
        return n
    for t in range(max_tile, 7, -8):
        if n % t == 0:
            return t
    return n


def _pick_lane_tile(n, max_tile=512):
    """Largest tile <= max_tile dividing n and multiple of 128 (or n itself)."""
    if n <= max_tile:
        return n
    for t in range(max_tile, 127, -128):
        if n % t == 0:
            return t
    return n


def _const_spec(shape):
    zero = (0,) * len(shape)
    return pl.BlockSpec(shape, lambda *_: zero)


# ----------------------------- projection kernel -----------------------------

def _proj_kernel(*refs, n_out, scales, compute_dtype):
    """y_t = scale_t * (x @ w_t + b_t) for t in range(n_out), one x row tile."""
    cd = compute_dtype
    x = refs[0][...].astype(cd)
    for t in range(n_out):
        w_ref = refs[1 + 2 * t]
        b_ref = refs[2 + 2 * t]
        y_ref = refs[1 + 2 * n_out + t]
        y = jnp.dot(x, w_ref[...].astype(cd),
                    preferred_element_type=jnp.float32) + b_ref[...]
        if scales[t] != 1.0:
            y = y * scales[t]
        y_ref[...] = y.astype(y_ref.dtype)


def project(x, weights, *, scales=None, row_tile_max=256,
            compute_dtype=jnp.float32):
    """Row-tiled multi-output linear: x (B,S,E) -> [x@w_t+b_t for (w_t,b_t)]."""
    B, S, E = x.shape
    R = B * S
    xr = x.reshape(R, E)
    n_out = len(weights)
    if scales is None:
        scales = (1.0,) * n_out
    tr = _pick_sublane_tile(R, row_tile_max)
    nr = R // tr

    in_specs = [pl.BlockSpec((tr, E), lambda r: (r, 0))]
    args = [xr]
    out_shapes, out_specs = [], []
    for w, b in weights:
        fo = w.shape[1]
        in_specs += [_const_spec((E, fo)), _const_spec((1, fo))]
        args += [w, b]
        out_shapes.append(jax.ShapeDtypeStruct((R, fo), jnp.float32))
        out_specs.append(pl.BlockSpec((tr, fo), lambda r: (r, 0)))

    kernel = functools.partial(_proj_kernel, n_out=n_out,
                               scales=tuple(float(s) for s in scales),
                               compute_dtype=compute_dtype)
    outs = pl.pallas_call(
        kernel,
        out_shape=tuple(out_shapes),
        grid=(nr,),
        in_specs=in_specs,
        out_specs=tuple(out_specs),
        compiler_params=pltpu.CompilerParams(
            dimension_semantics=("parallel",),
            vmem_limit_bytes=_vmem_limit_bytes()),
    )(*args)
    if not isinstance(outs, (list, tuple)):
        outs = (outs,)
    return [o.reshape(B, S, -1) for o in outs]


# ----------------------------- flash MHA + add&LN kernel -----------------------------

def _flash_mha_addnorm_kernel(*refs, num_heads, dk, causal, has_bias,
                              q_tile, kv_tile, compute_dtype):
    """Online-softmax attention over kv tiles; residual + LayerNorm epilogue."""
    if has_bias:
        (xq_ref, qh_ref, kh_ref, vh_ref, bias_ref,
         woh_ref, bo_ref, g_ref, beta_ref,
         out_ref, m_sc, l_sc, acc_sc) = refs
    else:
        (xq_ref, qh_ref, kh_ref, vh_ref,
         woh_ref, bo_ref, g_ref, beta_ref,
         out_ref, m_sc, l_sc, acc_sc) = refs
        bias_ref = None

    cd = compute_dtype
    j = pl.program_id(2)

    @pl.when(j == 0)
    def _():
        m_sc[...] = jnp.full_like(m_sc, _M_INIT)
        l_sc[...] = jnp.zeros_like(l_sc)
        acc_sc[...] = jnp.zeros_like(acc_sc)

    q0 = pl.program_id(1) * q_tile
    kv0 = j * kv_tile

    def compute_tile():
        q = qh_ref[0]                              # (H, tq, dk)  pre-scaled
        k = kh_ref[0]                              # (H, tkv, dk)
        v = vh_ref[0]                              # (H, tkv, dk)
        s = jnp.einsum('hqd,hkd->hqk', q.astype(cd), k.astype(cd),
                       preferred_element_type=jnp.float32)      # (H, tq, tkv)
        if has_bias:
            s = s + bias_ref[...]                  # (1, 1, tkv) broadcast
        if causal:
            rows = q0 + jax.lax.broadcasted_iota(jnp.int32, (q_tile, kv_tile), 0)
            cols = kv0 + jax.lax.broadcasted_iota(jnp.int32, (q_tile, kv_tile), 1)
            s = jnp.where((rows >= cols)[None, :, :], s, _NEG)

        m_prev = m_sc[...]
        m_new = jnp.maximum(m_prev, jnp.max(s, axis=-1, keepdims=True))
        alpha = jnp.exp(m_prev - m_new)
        p = jnp.exp(s - m_new)
        l_sc[...] = alpha * l_sc[...] + jnp.sum(p, axis=-1, keepdims=True)
        acc_sc[...] = alpha * acc_sc[...] + jnp.einsum(
            'hqk,hkd->hqd', p.astype(cd), v.astype(cd),
            preferred_element_type=jnp.float32)
        m_sc[...] = m_new

    if causal:
        # skip kv tiles fully above the diagonal (compute only; DMA still streams)
        pl.when(kv0 <= q0 + (q_tile - 1))(compute_tile)
    else:
        compute_tile()

    @pl.when(j == pl.num_programs(2) - 1)
    def _():
        o = acc_sc[...] / l_sc[...]                # (H, tq, dk), exact divide
        # concat_h(o_h) @ Wo == sum_h o_h @ Wo_h  -- accumulate per head, no
        # (H, tq, E) intermediate and no in-kernel head concat/transpose.
        att = jnp.dot(o[0].astype(cd), woh_ref[0].astype(cd),
                      preferred_element_type=jnp.float32)
        for h in range(1, num_heads):
            att = att + jnp.dot(o[h].astype(cd), woh_ref[h].astype(cd),
                                preferred_element_type=jnp.float32)
        att = att + bo_ref[...]
        z = xq_ref[0] + att                        # residual
        mu = jnp.mean(z, axis=-1, keepdims=True)
        var = jnp.mean((z - mu) * (z - mu), axis=-1, keepdims=True)
        out_ref[0] = ((z - mu) * jax.lax.rsqrt(var + 1e-5) * g_ref[...]
                      + beta_ref[...]).astype(out_ref.dtype)


def mha_add_layernorm(xq, xkv, pad_bias, params, gamma, beta, *,
                      num_heads, causal, compute_dtype=jnp.float32,
                      q_tile_max=256, kv_tile_max=512):
    """LayerNorm(xq + MHA(xq, xkv, xkv)).  pad_bias: (B,1,Sk) additive or None."""
    B, Sq, E = xq.shape
    Sk = xkv.shape[1]
    dk = E // num_heads
    wq, bq, wk, bk, wv, bv, wo, bo = params
    scale = 1.0 / math.sqrt(dk)

    # Projections hoisted out of the attention kernel (each computed exactly
    # once, in big row tiles).  Fused Q+K+V pass when the sources coincide.
    if xq is xkv:
        q, k, v = project(xq, [(wq, bq), (wk, bk), (wv, bv)],
                          scales=(scale, 1.0, 1.0), compute_dtype=compute_dtype)
    else:
        (q,) = project(xq, [(wq, bq)], scales=(scale,),
                       compute_dtype=compute_dtype)
        k, v = project(xkv, [(wk, bk), (wv, bv)], compute_dtype=compute_dtype)

    # Head split once in XLA (layout-only) -> kernel never slices lanes per head.
    def heads(p, S):
        return p.reshape(B, S, num_heads, dk).transpose(0, 2, 1, 3)
    qh, kh, vh = heads(q, Sq), heads(k, Sk), heads(v, Sk)

    woh = wo.reshape(num_heads, dk, E)    # per-head slices of output projection

    tq = _pick_sublane_tile(Sq, q_tile_max)
    nq = Sq // tq
    tkv = _pick_lane_tile(Sk, kv_tile_max)
    nkv = Sk // tkv
    has_bias = pad_bias is not None

    kernel = functools.partial(
        _flash_mha_addnorm_kernel, num_heads=num_heads, dk=dk, causal=causal,
        has_bias=has_bias, q_tile=tq, kv_tile=tkv, compute_dtype=compute_dtype)

    in_specs = [
        pl.BlockSpec((1, tq, E), lambda b, i, j: (b, i, 0)),                  # residual
        pl.BlockSpec((1, num_heads, tq, dk), lambda b, i, j: (b, 0, i, 0)),   # Qh
        pl.BlockSpec((1, num_heads, tkv, dk), lambda b, i, j: (b, 0, j, 0)),  # Kh
        pl.BlockSpec((1, num_heads, tkv, dk), lambda b, i, j: (b, 0, j, 0)),  # Vh
    ]
    args = [xq, qh, kh, vh]
    if has_bias:
        in_specs.append(pl.BlockSpec((1, 1, tkv), lambda b, i, j: (b, 0, j)))
        args.append(pad_bias)
    in_specs += [_const_spec((num_heads, dk, E)), _const_spec((1, E)),        # Wo, bo
                 _const_spec((1, E)), _const_spec((1, E))]                    # LN g, b
    args += [woh, bo, gamma, beta]

    return pl.pallas_call(
        kernel,
        out_shape=jax.ShapeDtypeStruct((B, Sq, E), jnp.float32),
        grid=(B, nq, nkv),
        in_specs=in_specs,
        out_specs=pl.BlockSpec((1, tq, E), lambda b, i, j: (b, i, 0)),
        scratch_shapes=[pltpu.VMEM((num_heads, tq, 1), jnp.float32),   # running max
                        pltpu.VMEM((num_heads, tq, 1), jnp.float32),   # running sum
                        pltpu.VMEM((num_heads, tq, dk), jnp.float32)], # PV accum
        compiler_params=pltpu.CompilerParams(
            dimension_semantics=("parallel", "parallel", "arbitrary"),
            vmem_limit_bytes=_vmem_limit_bytes()),
    )(*args)


# ----------------------------- FFN + add&LN kernel -----------------------------

def _ffn_addnorm_kernel(x_ref, w1_ref, b1_ref, w2_ref, b2_ref, g_ref, beta_ref,
                        out_ref, acc_ref, *, compute_dtype):
    """linear2(relu(linear1(x))) tiled over d_ff, fused residual add + LayerNorm."""
    cd = compute_dtype
    j = pl.program_id(1)

    @pl.when(j == 0)
    def _():
        acc_ref[...] = jnp.zeros_like(acc_ref)

    x = x_ref[...]                                                   # (tr, E)
    h = jnp.dot(x.astype(cd), w1_ref[...].astype(cd),
                preferred_element_type=jnp.float32) + b1_ref[...]    # (tr, td)
    h = jnp.maximum(h, 0.0)
    acc_ref[...] += jnp.dot(h.astype(cd), w2_ref[...].astype(cd),
                            preferred_element_type=jnp.float32)      # (tr, E)

    @pl.when(j == pl.num_programs(1) - 1)
    def _():
        z = x + acc_ref[...] + b2_ref[...]
        mu = jnp.mean(z, axis=-1, keepdims=True)
        var = jnp.mean((z - mu) * (z - mu), axis=-1, keepdims=True)
        out_ref[...] = ((z - mu) * jax.lax.rsqrt(var + 1e-5) * g_ref[...]
                        + beta_ref[...]).astype(out_ref.dtype)


def ffn_add_layernorm(x, w1, b1, w2, b2, gamma, beta, *, compute_dtype=jnp.float32,
                      row_tile_max=256, dff_tile_max=512):
    """LayerNorm(x + linear2(relu(linear1(x)))); rows flattened for weight reuse."""
    B, S, E = x.shape
    dff = w1.shape[1]
    R = B * S
    xr = x.reshape(R, E)
    tr = _pick_sublane_tile(R, row_tile_max)
    nr = R // tr
    td = _pick_lane_tile(dff, dff_tile_max)
    nd = dff // td
    kernel = functools.partial(_ffn_addnorm_kernel, compute_dtype=compute_dtype)
    out = pl.pallas_call(
        kernel,
        out_shape=jax.ShapeDtypeStruct((R, E), jnp.float32),
        grid=(nr, nd),
        in_specs=[
            pl.BlockSpec((tr, E), lambda i, j: (i, 0)),   # x / residual
            pl.BlockSpec((E, td), lambda i, j: (0, j)),   # w1 tile
            pl.BlockSpec((1, td), lambda i, j: (0, j)),   # b1 tile
            pl.BlockSpec((td, E), lambda i, j: (j, 0)),   # w2 tile
            _const_spec((1, E)),                          # b2
            _const_spec((1, E)), _const_spec((1, E)),     # LN gamma, beta
        ],
        out_specs=pl.BlockSpec((tr, E), lambda i, j: (i, 0)),
        scratch_shapes=[pltpu.VMEM((tr, E), jnp.float32)],
        compiler_params=pltpu.CompilerParams(
            dimension_semantics=("parallel", "arbitrary"),
            vmem_limit_bytes=_vmem_limit_bytes()),
    )(xr, w1, b1, w2, b2, gamma, beta)
    return out.reshape(B, S, E)


# ----------------------------- DecoderLayer -----------------------------

def init_decoder_layer_params(key, embed_dim, num_heads, d_ff):
    def lin(k, fan_in, fan_out):
        k1, k2 = jax.random.split(k)
        lim = 1.0 / math.sqrt(fan_in)
        w = jax.random.uniform(k1, (fan_in, fan_out), jnp.float32, -lim, lim)
        b = jax.random.uniform(k2, (1, fan_out), jnp.float32, -lim, lim)
        return w, b

    keys = jax.random.split(key, 10)
    p = {}
    p["self"] = sum((lin(keys[i], embed_dim, embed_dim) for i in range(4)), ())
    p["cross"] = sum((lin(keys[4 + i], embed_dim, embed_dim) for i in range(4)), ())
    w1, b1 = lin(keys[8], embed_dim, d_ff)
    w2, b2 = lin(keys[9], d_ff, embed_dim)
    p["ffn"] = (w1, b1, w2, b2)
    ones = jnp.ones((1, embed_dim), jnp.float32)
    zeros = jnp.zeros((1, embed_dim), jnp.float32)
    p["ln1"] = (ones, zeros)
    p["ln2"] = (ones, zeros)
    p["ln3"] = (ones, zeros)
    return p


def decoder_layer(params, x, enc_out, enc_padding_mask=None, *, num_heads,
                  compute_dtype=jnp.float32):
    B, Sq, E = x.shape
    Sk = enc_out.shape[1]

    # Only an O(B*Sk) additive bias is materialized for the cross attention;
    # the causal mask is generated in-kernel; no zero bias for self-attention.
    if enc_padding_mask is None:
        cross_bias = None
    else:
        cross_bias = jnp.where(jnp.asarray(enc_padding_mask) == 0, _NEG, 0.0)
        cross_bias = cross_bias.astype(jnp.float32).reshape(B, 1, Sk)

    out = mha_add_layernorm(x, x, None, params["self"], *params["ln1"],
                            num_heads=num_heads, causal=True,
                            compute_dtype=compute_dtype)
    out = mha_add_layernorm(out, enc_out, cross_bias, params["cross"],
                            *params["ln2"], num_heads=num_heads, causal=False,
                            compute_dtype=compute_dtype)
    out = ffn_add_layernorm(out, *params["ffn"], *params["ln3"],
                            compute_dtype=compute_dtype)
    return out


# ----------------------------- pure-JAX reference -----------------------------

def _ref_mha(xq, xk, xv, mask_bias, params, num_heads):
    wq, bq, wk, bk, wv, bv, wo, bo = params
    B, Sq, E = xq.shape
    dk = E // num_heads
    q = xq @ wq + bq
    k = xk @ wk + bk
    v = xv @ wv + bv

    def split(p):
        return p.reshape(B, -1, num_heads, dk).transpose(0, 2, 1, 3)
    q, k, v = split(q), split(k), split(v)
    s = jnp.einsum("bhqd,bhkd->bhqk", q, k) / math.sqrt(dk) + mask_bias[:, None]
    p = jax.nn.softmax(s, axis=-1)
    o = jnp.einsum("bhqk,bhkd->bhqd", p, v)
    o = o.transpose(0, 2, 1, 3).reshape(B, -1, E)
    return o @ wo + bo


def _ref_ln(z, gamma, beta):
    mu = jnp.mean(z, axis=-1, keepdims=True)
    var = jnp.mean((z - mu) ** 2, axis=-1, keepdims=True)
    return (z - mu) / jnp.sqrt(var + 1e-5) * gamma + beta


def _ref_decoder(params, x, enc_out, enc_padding_mask, num_heads):
    B, Sq, E = x.shape
    Sk = enc_out.shape[1]
    causal = jnp.triu(jnp.full((Sq, Sq), -jnp.inf, jnp.float32), k=1)
    causal = jnp.broadcast_to(causal[None], (B, Sq, Sq))
    if enc_padding_mask is None:
        cross = jnp.zeros((B, Sq, Sk), jnp.float32)
    else:
        bias = jnp.where(enc_padding_mask == 0, -jnp.inf, 0.0).astype(jnp.float32)
        cross = jnp.broadcast_to(bias[:, None, :], (B, Sq, Sk))
    out = _ref_ln(x + _ref_mha(x, x, x, causal, params["self"], num_heads),
                  *params["ln1"])
    out = _ref_ln(out + _ref_mha(out, enc_out, enc_out, cross, params["cross"],
                                 num_heads), *params["ln2"])
    w1, b1, w2, b2 = params["ffn"]
    ff = jnp.maximum(out @ w1 + b1, 0.0) @ w2 + b2
    return _ref_ln(out + ff, *params["ln3"])


# ----------------------------- main -----------------------------

if __name__ == "__main__":
    B, Sq, Sk = 2, 8, 8
    embed_dim, num_heads, d_ff = 32, 4, 64

    key = jax.random.PRNGKey(0)
    kp, kx, ke = jax.random.split(key, 3)
    params = init_decoder_layer_params(kp, embed_dim, num_heads, d_ff)

    x = jax.random.normal(kx, (B, Sq, embed_dim), jnp.float32)
    enc_out = jax.random.normal(ke, (B, Sk, embed_dim), jnp.float32)
    enc_padding_mask = jnp.array(
        [[1, 1, 1, 1, 1, 1, 0, 0],
         [1, 1, 1, 1, 1, 1, 1, 1]], dtype=jnp.int32)

    fwd = jax.jit(functools.partial(decoder_layer, num_heads=num_heads))
    out = fwd(params, x, enc_out, enc_padding_mask)
    out = jax.block_until_ready(out)

    ref = _ref_decoder(params, x, enc_out, enc_padding_mask, num_heads)
    assert out.shape == (B, Sq, embed_dim)
    assert jnp.max(jnp.abs(out - ref)) < 2e-3

    print("KERNEL_OK")
</pallas_src>

<mosaic_0001>
module attributes {stable_mosaic.version = 11 : i64} {
  func.func @_proj_kernel(%arg0: i32, %arg1: memref<16x32xf32, #tpu.memory_space<vmem>>, %arg2: memref<32x32xf32, #tpu.memory_space<vmem>>, %arg3: memref<1x32xf32, #tpu.memory_space<vmem>>, %arg4: memref<32x32xf32, #tpu.memory_space<vmem>>, %arg5: memref<1x32xf32, #tpu.memory_space<vmem>>, %arg6: memref<32x32xf32, #tpu.memory_space<vmem>>, %arg7: memref<1x32xf32, #tpu.memory_space<vmem>>, %arg8: memref<16x32xf32, #tpu.memory_space<vmem>>, %arg9: memref<16x32xf32, #tpu.memory_space<vmem>>, %arg10: memref<16x32xf32, #tpu.memory_space<vmem>>) attributes {dimension_semantics = [#tpu.dimension_semantics<parallel>], iteration_bounds = array<i64: 1>, scalar_prefetch = 0 : i64, scratch_operands = 0 : i64, tpu.core_type = #tpu.core_type<tc>, window_params = [{transform_indices = @transform_0, window_bounds = array<i64: 16, 32>}, {pipeline_mode = #tpu.pipeline_mode<synchronous>, transform_indices = @transform_1, window_bounds = array<i64: 32, 32>}, {pipeline_mode = #tpu.pipeline_mode<synchronous>, transform_indices = @transform_2, window_bounds = array<i64: 1, 32>}, {pipeline_mode = #tpu.pipeline_mode<synchronous>, transform_indices = @transform_3, window_bounds = array<i64: 32, 32>}, {pipeline_mode = #tpu.pipeline_mode<synchronous>, transform_indices = @transform_4, window_bounds = array<i64: 1, 32>}, {pipeline_mode = #tpu.pipeline_mode<synchronous>, transform_indices = @transform_5, window_bounds = array<i64: 32, 32>}, {pipeline_mode = #tpu.pipeline_mode<synchronous>, transform_indices = @transform_6, window_bounds = array<i64: 1, 32>}, {transform_indices = @transform_7, window_bounds = array<i64: 16, 32>}, {transform_indices = @transform_8, window_bounds = array<i64: 16, 32>}, {transform_indices = @transform_9, window_bounds = array<i64: 16, 32>}]} {
    %c0 = arith.constant 0 : index
    %c0_0 = arith.constant 0 : index
    %0 = vector.load %arg1[%c0, %c0_0] : memref<16x32xf32, #tpu.memory_space<vmem>>, vector<16x32xf32>
    %c0_1 = arith.constant 0 : index
    %c0_2 = arith.constant 0 : index
    %1 = vector.load %arg2[%c0_1, %c0_2] : memref<32x32xf32, #tpu.memory_space<vmem>>, vector<32x32xf32>
    %cst = arith.constant dense<0.000000e+00> : vector<16x32xf32>
    %2 = tpu.matmul %0, %1, %cst {dimension_numbers = #tpu.dot_dimension_numbers<[1], [0], [0], [1], [0, 0, 1, 1], [], []>} : vector<16x32xf32>, vector<32x32xf32>, vector<16x32xf32> -> vector<16x32xf32>
    %c0_3 = arith.constant 0 : index
    %c0_4 = arith.constant 0 : index
    %3 = vector.load %arg3[%c0_3, %c0_4] : memref<1x32xf32, #tpu.memory_space<vmem>>, vector<1x32xf32>
    %4 = vector.broadcast %3 : vector<1x32xf32> to vector<16x32xf32>
    %5 = arith.addf %2, %4 : vector<16x32xf32>
    %cst_5 = arith.constant 0.353553385 : f32
    %6 = vector.broadcast %cst_5 : f32 to vector<16x32xf32>
    %7 = arith.mulf %5, %6 : vector<16x32xf32>
    %c0_6 = arith.constant 0 : index
    %c0_7 = arith.constant 0 : index
    %8 = vector.load %arg8[%c0_6, %c0_7] : memref<16x32xf32, #tpu.memory_space<vmem>>, vector<16x32xf32>
    tpu.vector_store %arg8[%c0_6, %c0_7], %7 {strides = array<i32>} : memref<16x32xf32, #tpu.memory_space<vmem>>, vector<16x32xf32>,
    %c0_8 = arith.constant 0 : index
    %c0_9 = arith.constant 0 : index
    %9 = vector.load %arg4[%c0_8, %c0_9] : memref<32x32xf32, #tpu.memory_space<vmem>>, vector<32x32xf32>
    %cst_10 = arith.constant dense<0.000000e+00> : vector<16x32xf32>
    %10 = tpu.matmul %0, %9, %cst_10 {dimension_numbers = #tpu.dot_dimension_numbers<[1], [0], [0], [1], [0, 0, 1, 1], [], []>} : vector<16x32xf32>, vector<32x32xf32>, vector<16x32xf32> -> vector<16x32xf32>
    %c0_11 = arith.constant 0 : index
    %c0_12 = arith.constant 0 : index
    %11 = vector.load %arg5[%c0_11, %c0_12] : memref<1x32xf32, #tpu.memory_space<vmem>>, vector<1x32xf32>
    %12 = vector.broadcast %11 : vector<1x32xf32> to vector<16x32xf32>
    %13 = arith.addf %10, %12 : vector<16x32xf32>
    %c0_13 = arith.constant 0 : index
    %c0_14 = arith.constant 0 : index
    %14 = vector.load %arg9[%c0_13, %c0_14] : memref<16x32xf32, #tpu.memory_space<vmem>>, vector<16x32xf32>
    tpu.vector_store %arg9[%c0_13, %c0_14], %13 {strides = array<i32>} : memref<16x32xf32, #tpu.memory_space<vmem>>, vector<16x32xf32>,
    %c0_15 = arith.constant 0 : index
    %c0_16 = arith.constant 0 : index
    %15 = vector.load %arg6[%c0_15, %c0_16] : memref<32x32xf32, #tpu.memory_space<vmem>>, vector<32x32xf32>
    %cst_17 = arith.constant dense<0.000000e+00> : vector<16x32xf32>
    %16 = tpu.matmul %0, %15, %cst_17 {dimension_numbers = #tpu.dot_dimension_numbers<[1], [0], [0], [1], [0, 0, 1, 1], [], []>} : vector<16x32xf32>, vector<32x32xf32>, vector<16x32xf32> -> vector<16x32xf32>
    %c0_18 = arith.constant 0 : index
    %c0_19 = arith.constant 0 : index
    %17 = vector.load %arg7[%c0_18, %c0_19] : memref<1x32xf32, #tpu.memory_space<vmem>>, vector<1x32xf32>
    %18 = vector.broadcast %17 : vector<1x32xf32> to vector<16x32xf32>
    %19 = arith.addf %16, %18 : vector<16x32xf32>
    %c0_20 = arith.constant 0 : index
    %c0_21 = arith.constant 0 : index
    %20 = vector.load %arg10[%c0_20, %c0_21] : memref<16x32xf32, #tpu.memory_space<vmem>>, vector<16x32xf32>
    tpu.vector_store %arg10[%c0_20, %c0_21], %19 {strides = array<i32>} : memref<16x32xf32, #tpu.memory_space<vmem>>, vector<16x32xf32>,
    return
  }
  func.func @transform_0(%arg0: i32) -> (i32, i32) {
    %c0_i32 = arith.constant 0 : i32
    %c0_i32_0 = arith.constant 0 : i32
    return %arg0, %c0_i32 : i32, i32
  }
  func.func @transform_1(%arg0: i32) -> (i32, i32) {
    %c0_i32 = arith.constant 0 : i32
    %c0_i32_0 = arith.constant 0 : i32
    %c0_i32_1 = arith.constant 0 : i32
    return %c0_i32, %c0_i32_0 : i32, i32
  }
  func.func @transform_2(%arg0: i32) -> (i32, i32) {
    %c0_i32 = arith.constant 0 : i32
    %c0_i32_0 = arith.constant 0 : i32
    %c0_i32_1 = arith.constant 0 : i32
    return %c0_i32, %c0_i32_0 : i32, i32
  }
  func.func @transform_3(%arg0: i32) -> (i32, i32) {
    %c0_i32 = arith.constant 0 : i32
    %c0_i32_0 = arith.constant 0 : i32
    %c0_i32_1 = arith.constant 0 : i32
    return %c0_i32, %c0_i32_0 : i32, i32
  }
  func.func @transform_4(%arg0: i32) -> (i32, i32) {
    %c0_i32 = arith.constant 0 : i32
    %c0_i32_0 = arith.constant 0 : i32
    %c0_i32_1 = arith.constant 0 : i32
    return %c0_i32, %c0_i32_0 : i32, i32
  }
  func.func @transform_5(%arg0: i32) -> (i32, i32) {
    %c0_i32 = arith.constant 0 : i32
    %c0_i32_0 = arith.constant 0 : i32
    %c0_i32_1 = arith.constant 0 : i32
    return %c0_i32, %c0_i32_0 : i32, i32
  }
  func.func @transform_6(%arg0: i32) -> (i32, i32) {
    %c0_i32 = arith.constant 0 : i32
    %c0_i32_0 = arith.constant 0 : i32
    %c0_i32_1 = arith.constant 0 : i32
    return %c0_i32, %c0_i32_0 : i32, i32
  }
  func.func @transform_7(%arg0: i32) -> (i32, i32) {
    %c0_i32 = arith.constant 0 : i32
    %c0_i32_0 = arith.constant 0 : i32
    return %arg0, %c0_i32 : i32, i32
  }
  func.func @transform_8(%arg0: i32) -> (i32, i32) {
    %c0_i32 = arith.constant 0 : i32
    %c0_i32_0 = arith.constant 0 : i32
    return %arg0, %c0_i32 : i32, i32
  }
  func.func @transform_9(%arg0: i32) -> (i32, i32) {
    %c0_i32 = arith.constant 0 : i32
    %c0_i32_0 = arith.constant 0 : i32
    return %arg0, %c0_i32 : i32, i32
  }
}

module attributes {stable_mosaic.version = 11 : i64} {
  func.func @_proj_kernel(%arg0: i32, %arg1: memref<16x32xf32, #tpu.memory_space<vmem>>, %arg2: memref<32x32xf32, #tpu.memory_space<vmem>>, %arg3: memref<1x32xf32, #tpu.memory_space<vmem>>, %arg4: memref<32x32xf32, #tpu.memory_space<vmem>>, %arg5: memref<1x32xf32, #tpu.memory_space<vmem>>, %arg6: memref<16x32xf32, #tpu.memory_space<vmem>>, %arg7: memref<16x32xf32, #tpu.memory_space<vmem>>) attributes {dimension_semantics = [#tpu.dimension_semantics<parallel>], iteration_bounds = array<i64: 1>, scalar_prefetch = 0 : i64, scratch_operands = 0 : i64, tpu.core_type = #tpu.core_type<tc>, window_params = [{transform_indices = @transform_0, window_bounds = array<i64: 16, 32>}, {pipeline_mode = #tpu.pipeline_mode<synchronous>, transform_indices = @transform_1, window_bounds = array<i64: 32, 32>}, {pipeline_mode = #tpu.pipeline_mode<synchronous>, transform_indices = @transform_2, window_bounds = array<i64: 1, 32>}, {pipeline_mode = #tpu.pipeline_mode<synchronous>, transform_indices = @transform_3, window_bounds = array<i64: 32, 32>}, {pipeline_mode = #tpu.pipeline_mode<synchronous>, transform_indices = @transform_4, window_bounds = array<i64: 1, 32>}, {transform_indices = @transform_5, window_bounds = array<i64: 16, 32>}, {transform_indices = @transform_6, window_bounds = array<i64: 16, 32>}]} {
    %c0 = arith.constant 0 : index
    %c0_0 = arith.constant 0 : index
    %0 = vector.load %arg1[%c0, %c0_0] : memref<16x32xf32, #tpu.memory_space<vmem>>, vector<16x32xf32>
    %c0_1 = arith.constant 0 : index
    %c0_2 = arith.constant 0 : index
    %1 = vector.load %arg2[%c0_1, %c0_2] : memref<32x32xf32, #tpu.memory_space<vmem>>, vector<32x32xf32>
    %cst = arith.constant dense<0.000000e+00> : vector<16x32xf32>
    %2 = tpu.matmul %0, %1, %cst {dimension_numbers = #tpu.dot_dimension_numbers<[1], [0], [0], [1], [0, 0, 1, 1], [], []>} : vector<16x32xf32>, vector<32x32xf32>, vector<16x32xf32> -> vector<16x32xf32>
    %c0_3 = arith.constant 0 : index
    %c0_4 = arith.constant 0 : index
    %3 = vector.load %arg3[%c0_3, %c0_4] : memref<1x32xf32, #tpu.memory_space<vmem>>, vector<1x32xf32>
    %4 = vector.broadcast %3 : vector<1x32xf32> to vector<16x32xf32>
    %5 = arith.addf %2, %4 : vector<16x32xf32>
    %c0_5 = arith.constant 0 : index
    %c0_6 = arith.constant 0 : index
    %6 = vector.load %arg6[%c0_5, %c0_6] : memref<16x32xf32, #tpu.memory_space<vmem>>, vector<16x32xf32>
    tpu.vector_store %arg6[%c0_5, %c0_6], %5 {strides = array<i32>} : memref<16x32xf32, #tpu.memory_space<vmem>>, vector<16x32xf32>,
    %c0_7 = arith.constant 0 : index
    %c0_8 = arith.constant 0 : index
    %7 = vector.load %arg4[%c0_7, %c0_8] : memref<32x32xf32, #tpu.memory_space<vmem>>, vector<32x32xf32>
    %cst_9 = arith.constant dense<0.000000e+00> : vector<16x32xf32>
    %8 = tpu.matmul %0, %7, %cst_9 {dimension_numbers = #tpu.dot_dimension_numbers<[1], [0], [0], [1], [0, 0, 1, 1], [], []>} : vector<16x32xf32>, vector<32x32xf32>, vector<16x32xf32> -> vector<16x32xf32>
    %c0_10 = arith.constant 0 : index
    %c0_11 = arith.constant 0 : index
    %9 = vector.load %arg5[%c0_10, %c0_11] : memref<1x32xf32, #tpu.memory_space<vmem>>, vector<1x32xf32>
    %10 = vector.broadcast %9 : vector<1x32xf32> to vector<16x32xf32>
    %11 = arith.addf %8, %10 : vector<16x32xf32>
    %c0_12 = arith.constant 0 : index
    %c0_13 = arith.constant 0 : index
    %12 = vector.load %arg7[%c0_12, %c0_13] : memref<16x32xf32, #tpu.memory_space<vmem>>, vector<16x32xf32>
    tpu.vector_store %arg7[%c0_12, %c0_13], %11 {strides = array<i32>} : memref<16x32xf32, #tpu.memory_space<vmem>>, vector<16x32xf32>,
    return
  }
  func.func @transform_0(%arg0: i32) -> (i32, i32) {
    %c0_i32 = arith.constant 0 : i32
    %c0_i32_0 = arith.constant 0 : i32
    return %arg0, %c0_i32 : i32, i32
  }
  func.func @transform_1(%arg0: i32) -> (i32, i32) {
    %c0_i32 = arith.constant 0 : i32
    %c0_i32_0 = arith.constant 0 : i32
    %c0_i32_1 = arith.constant 0 : i32
    return %c0_i32, %c0_i32_0 : i32, i32
  }
  func.func @transform_2(%arg0: i32) -> (i32, i32) {
    %c0_i32 = arith.constant 0 : i32
    %c0_i32_0 = arith.constant 0 : i32
    %c0_i32_1 = arith.constant 0 : i32
    return %c0_i32, %c0_i32_0 : i32, i32
  }
  func.func @transform_3(%arg0: i32) -> (i32, i32) {
    %c0_i32 = arith.constant 0 : i32
    %c0_i32_0 = arith.constant 0 : i32
    %c0_i32_1 = arith.constant 0 : i32
    return %c0_i32, %c0_i32_0 : i32, i32
  }
  func.func @transform_4(%arg0: i32) -> (i32, i32) {
    %c0_i32 = arith.constant 0 : i32
    %c0_i32_0 = arith.constant 0 : i32
    %c0_i32_1 = arith.constant 0 : i32
    return %c0_i32, %c0_i32_0 : i32, i32
  }
  func.func @transform_5(%arg0: i32) -> (i32, i32) {
    %c0_i32 = arith.constant 0 : i32
    %c0_i32_0 = arith.constant 0 : i32
    return %arg0, %c0_i32 : i32, i32
  }
  func.func @transform_6(%arg0: i32) -> (i32, i32) {
    %c0_i32 = arith.constant 0 : i32
    %c0_i32_0 = arith.constant 0 : i32
    return %arg0, %c0_i32 : i32, i32
  }
}

module attributes {stable_mosaic.version = 11 : i64} {
  func.func @_proj_kernel(%arg0: i32, %arg1: memref<16x32xf32, #tpu.memory_space<vmem>>, %arg2: memref<32x32xf32, #tpu.memory_space<vmem>>, %arg3: memref<1x32xf32, #tpu.memory_space<vmem>>, %arg4: memref<16x32xf32, #tpu.memory_space<vmem>>) attributes {dimension_semantics = [#tpu.dimension_semantics<parallel>], iteration_bounds = array<i64: 1>, scalar_prefetch = 0 : i64, scratch_operands = 0 : i64, tpu.core_type = #tpu.core_type<tc>, window_params = [{transform_indices = @transform_0, window_bounds = array<i64: 16, 32>}, {pipeline_mode = #tpu.pipeline_mode<synchronous>, transform_indices = @transform_1, window_bounds = array<i64: 32, 32>}, {pipeline_mode = #tpu.pipeline_mode<synchronous>, transform_indices = @transform_2, window_bounds = array<i64: 1, 32>}, {transform_indices = @transform_3, window_bounds = array<i64: 16, 32>}]} {
    %c0 = arith.constant 0 : index
    %c0_0 = arith.constant 0 : index
    %0 = vector.load %arg1[%c0, %c0_0] : memref<16x32xf32, #tpu.memory_space<vmem>>, vector<16x32xf32>
    %c0_1 = arith.constant 0 : index
    %c0_2 = arith.constant 0 : index
    %1 = vector.load %arg2[%c0_1, %c0_2] : memref<32x32xf32, #tpu.memory_space<vmem>>, vector<32x32xf32>
    %cst = arith.constant dense<0.000000e+00> : vector<16x32xf32>
    %2 = tpu.matmul %0, %1, %cst {dimension_numbers = #tpu.dot_dimension_numbers<[1], [0], [0], [1], [0, 0, 1, 1], [], []>} : vector<16x32xf32>, vector<32x32xf32>, vector<16x32xf32> -> vector<16x32xf32>
    %c0_3 = arith.constant 0 : index
    %c0_4 = arith.constant 0 : index
    %3 = vector.load %arg3[%c0_3, %c0_4] : memref<1x32xf32, #tpu.memory_space<vmem>>, vector<1x32xf32>
    %4 = vector.broadcast %3 : vector<1x32xf32> to vector<16x32xf32>
    %5 = arith.addf %2, %4 : vector<16x32xf32>
    %cst_5 = arith.constant 0.353553385 : f32
    %6 = vector.broadcast %cst_5 : f32 to vector<16x32xf32>
    %7 = arith.mulf %5, %6 : vector<16x32xf32>
    %c0_6 = arith.constant 0 : index
    %c0_7 = arith.constant 0 : index
    %8 = vector.load %arg4[%c0_6, %c0_7] : memref<16x32xf32, #tpu.memory_space<vmem>>, vector<16x32xf32>
    tpu.vector_store %arg4[%c0_6, %c0_7], %7 {strides = array<i32>} : memref<16x32xf32, #tpu.memory_space<vmem>>, vector<16x32xf32>,
    return
  }
  func.func @transform_0(%arg0: i32) -> (i32, i32) {
    %c0_i32 = arith.constant 0 : i32
    %c0_i32_0 = arith.constant 0 : i32
    return %arg0, %c0_i32 : i32, i32
  }
  func.func @transform_1(%arg0: i32) -> (i32, i32) {
    %c0_i32 = arith.constant 0 : i32
    %c0_i32_0 = arith.constant 0 : i32
    %c0_i32_1 = arith.constant 0 : i32
    return %c0_i32, %c0_i32_0 : i32, i32
  }
  func.func @transform_2(%arg0: i32) -> (i32, i32) {
    %c0_i32 = arith.constant 0 : i32
    %c0_i32_0 = arith.constant 0 : i32
    %c0_i32_1 = arith.constant 0 : i32
    return %c0_i32, %c0_i32_0 : i32, i32
  }
  func.func @transform_3(%arg0: i32) -> (i32, i32) {
    %c0_i32 = arith.constant 0 : i32
    %c0_i32_0 = arith.constant 0 : i32
    return %arg0, %c0_i32 : i32, i32
  }
}

module attributes {stable_mosaic.version = 11 : i64} {
  func.func @_flash_mha_addnorm_kernel(%arg0: i32, %arg1: i32, %arg2: i32, %arg3: memref<1x8x32xf32, #tpu.memory_space<vmem>>, %arg4: memref<1x4x8x8xf32, #tpu.memory_space<vmem>>, %arg5: memref<1x4x8x8xf32, #tpu.memory_space<vmem>>, %arg6: memref<1x4x8x8xf32, #tpu.memory_space<vmem>>, %arg7: memref<4x8x32xf32, #tpu.memory_space<vmem>>, %arg8: memref<1x32xf32, #tpu.memory_space<vmem>>, %arg9: memref<1x32xf32, #tpu.memory_space<vmem>>, %arg10: memref<1x32xf32, #tpu.memory_space<vmem>>, %arg11: memref<1x8x32xf32, #tpu.memory_space<vmem>>, %arg12: memref<4x8x1xf32, #tpu.memory_space<vmem>>, %arg13: memref<4x8x1xf32, #tpu.memory_space<vmem>>, %arg14: memref<4x8x8xf32, #tpu.memory_space<vmem>>) attributes {dimension_semantics = [#tpu.dimension_semantics<parallel>, #tpu.dimension_semantics<parallel>, #tpu.dimension_semantics<arbitrary>], iteration_bounds = array<i64: 2, 1, 1>, scalar_prefetch = 0 : i64, scratch_operands = 3 : i64, tpu.core_type = #tpu.core_type<tc>, window_params = [{transform_indices = @transform_0, window_bounds = array<i64: 1, 8, 32>}, {transform_indices = @transform_1, window_bounds = array<i64: 1, 4, 8, 8>}, {transform_indices = @transform_2, window_bounds = array<i64: 1, 4, 8, 8>}, {transform_indices = @transform_3, window_bounds = array<i64: 1, 4, 8, 8>}, {pipeline_mode = #tpu.pipeline_mode<synchronous>, transform_indices = @transform_4, window_bounds = array<i64: 4, 8, 32>}, {pipeline_mode = #tpu.pipeline_mode<synchronous>, transform_indices = @transform_5, window_bounds = array<i64: 1, 32>}, {pipeline_mode = #tpu.pipeline_mode<synchronous>, transform_indices = @transform_6, window_bounds = array<i64: 1, 32>}, {pipeline_mode = #tpu.pipeline_mode<synchronous>, transform_indices = @transform_7, window_bounds = array<i64: 1, 32>}, {transform_indices = @transform_8, window_bounds = array<i64: 1, 8, 32>}]} {
    %c0_i32 = arith.constant 0 : i32
    %0 = arith.cmpi eq, %arg2, %c0_i32 : i32
    %1 = arith.extui %0 : i1 to i32
    %c0_i32_0 = arith.constant 0 : i32
    %2 = arith.cmpi ne, %1, %c0_i32_0 : i32
    scf.if %2 {
      %cst = arith.constant -1.000000e+30 : f32
      %12 = vector.broadcast %cst : f32 to vector<4x8x1xf32>
      %c0 = arith.constant 0 : index
      %c0_5 = arith.constant 0 : index
      %c0_6 = arith.constant 0 : index
      %13 = vector.load %arg12[%c0, %c0_5, %c0_6] : memref<4x8x1xf32, #tpu.memory_space<vmem>>, vector<4x8x1xf32>
      tpu.vector_store %arg12[%c0, %c0_5, %c0_6], %12 {strides = array<i32>} : memref<4x8x1xf32, #tpu.memory_space<vmem>>, vector<4x8x1xf32>,
      %cst_7 = arith.constant 0.000000e+00 : f32
      %14 = vector.broadcast %cst_7 : f32 to vector<4x8x1xf32>
      %c0_8 = arith.constant 0 : index
      %c0_9 = arith.constant 0 : index
      %c0_10 = arith.constant 0 : index
      %15 = vector.load %arg13[%c0_8, %c0_9, %c0_10] : memref<4x8x1xf32, #tpu.memory_space<vmem>>, vector<4x8x1xf32>
      tpu.vector_store %arg13[%c0_8, %c0_9, %c0_10], %14 {strides = array<i32>} : memref<4x8x1xf32, #tpu.memory_space<vmem>>, vector<4x8x1xf32>,
      %cst_11 = arith.constant 0.000000e+00 : f32
      %16 = vector.broadcast %cst_11 : f32 to vector<4x8x8xf32>
      %c0_12 = arith.constant 0 : index
      %c0_13 = arith.constant 0 : index
      %c0_14 = arith.constant 0 : index
      %17 = vector.load %arg14[%c0_12, %c0_13, %c0_14] : memref<4x8x8xf32, #tpu.memory_space<vmem>>, vector<4x8x8xf32>
      tpu.vector_store %arg14[%c0_12, %c0_13, %c0_14], %16 {strides = array<i32>} : memref<4x8x8xf32, #tpu.memory_space<vmem>>, vector<4x8x8xf32>,
    } else {
    }
    %c8_i32 = arith.constant 8 : i32
    %3 = arith.muli %arg1, %c8_i32 : i32
    %c8_i32_1 = arith.constant 8 : i32
    %4 = arith.muli %arg2, %c8_i32_1 : i32
    %c7_i32 = arith.constant 7 : i32
    %5 = arith.addi %3, %c7_i32 : i32
    %6 = arith.cmpi sle, %4, %5 : i32
    %7 = arith.extui %6 : i1 to i32
    %c0_i32_2 = arith.constant 0 : i32
    %8 = arith.cmpi ne, %7, %c0_i32_2 : i32
    scf.if %8 {
      %c0 = arith.constant 0 : index
      %c0_5 = arith.constant 0 : index
      %c0_6 = arith.constant 0 : index
      %c0_7 = arith.constant 0 : index
      %12 = vector.load %arg4[%c0, %c0_5, %c0_6, %c0_7] : memref<1x4x8x8xf32, #tpu.memory_space<vmem>>, vector<1x4x8x8xf32>
      %13 = vector.shape_cast %12 : vector<1x4x8x8xf32> to vector<4x8x8xf32>
      %c0_8 = arith.constant 0 : index
      %c0_9 = arith.constant 0 : index
      %c0_10 = arith.constant 0 : index
      %c0_11 = arith.constant 0 : index
      %14 = vector.load %arg5[%c0_8, %c0_9, %c0_10, %c0_11] : memref<1x4x8x8xf32, #tpu.memory_space<vmem>>, vector<1x4x8x8xf32>
      %15 = vector.shape_cast %14 : vector<1x4x8x8xf32> to vector<4x8x8xf32>
      %c0_12 = arith.constant 0 : index
      %c0_13 = arith.constant 0 : index
      %c0_14 = arith.constant 0 : index
      %c0_15 = arith.constant 0 : index
      %16 = vector.load %arg6[%c0_12, %c0_13, %c0_14, %c0_15] : memref<1x4x8x8xf32, #tpu.memory_space<vmem>>, vector<1x4x8x8xf32>
      %17 = vector.shape_cast %16 : vector<1x4x8x8xf32> to vector<4x8x8xf32>
      "tpu.trace_start"() <{level = 10 : i32, message = "hqd,hkd->hqk"}> : () -> ()
      %cst = arith.constant dense<0.000000e+00> : vector<4x8x8xf32>
      %18 = tpu.matmul %13, %15, %cst {dimension_numbers = #tpu.dot_dimension_numbers<[2], [2], [1], [1], [0, 0, 0, 1, 1, 1], [0], [0]>} : vector<4x8x8xf32>, vector<4x8x8xf32>, vector<4x8x8xf32> -> vector<4x8x8xf32>
      "tpu.trace_stop"() : () -> ()
      %19 = tpu.iota {dimensions = array<i32: 0>} : vector<8x8xi32>
      %20 = vector.broadcast %3 : i32 to vector<8x8xi32>
      %21 = arith.addi %20, %19 : vector<8x8xi32>
      %22 = tpu.iota {dimensions = array<i32: 1>} : vector<8x8xi32>
      %23 = vector.broadcast %4 : i32 to vector<8x8xi32>
      %24 = arith.addi %23, %22 : vector<8x8xi32>
      %25 = arith.cmpi sge, %21, %24 : vector<8x8xi32>
      %26 = vector.shape_cast %25 : vector<8x8xi1> to vector<1x8x8xi1>
      %cst_16 = arith.constant -1.000000e+09 : f32
      %27 = vector.shape_cast %26 : vector<1x8x8xi1> to vector<1x8x8xi1>
      %28 = vector.broadcast %27 : vector<1x8x8xi1> to vector<4x8x8xi1>
      %29 = vector.broadcast %cst_16 : f32 to vector<4x8x8xf32>
      %30 = arith.select %28, %18, %29 : vector<4x8x8xi1>, vector<4x8x8xf32>
      %c0_17 = arith.constant 0 : index
      %c0_18 = arith.constant 0 : index
      %c0_19 = arith.constant 0 : index
      %31 = vector.load %arg12[%c0_17, %c0_18, %c0_19] : memref<4x8x1xf32, #tpu.memory_space<vmem>>, vector<4x8x1xf32>
      %cst_20 = arith.constant dense<0xFF800000> : vector<4x8xf32>
      %32 = vector.multi_reduction <maximumf>, %30, %cst_20 [2] : vector<4x8x8xf32> to vector<4x8xf32>
      %33 = vector.shape_cast %32 : vector<4x8xf32> to vector<4x8x1xf32>
      %34 = arith.maximumf %31, %33 : vector<4x8x1xf32>
      %35 = arith.subf %31, %34 : vector<4x8x1xf32>
      %36 = math.exp %35 : vector<4x8x1xf32>
      %37 = vector.broadcast %34 : vector<4x8x1xf32> to vector<4x8x8xf32>
      %38 = arith.subf %30, %37 : vector<4x8x8xf32>
      %39 = math.exp %38 : vector<4x8x8xf32>
      %c0_21 = arith.constant 0 : index
      %c0_22 = arith.constant 0 : index
      %c0_23 = arith.constant 0 : index
      %40 = vector.load %arg13[%c0_21, %c0_22, %c0_23] : memref<4x8x1xf32, #tpu.memory_space<vmem>>, vector<4x8x1xf32>
      %41 = arith.mulf %36, %40 : vector<4x8x1xf32>
      %cst_24 = arith.constant dense<0.000000e+00> : vector<4x8xf32>
      %42 = vector.multi_reduction <add>, %39, %cst_24 [2] : vector<4x8x8xf32> to vector<4x8xf32>
      %43 = vector.shape_cast %42 : vector<4x8xf32> to vector<4x8x1xf32>
      %44 = arith.addf %41, %43 : vector<4x8x1xf32>
      %c0_25 = arith.constant 0 : index
      %c0_26 = arith.constant 0 : index
      %c0_27 = arith.constant 0 : index
      %45 = vector.load %arg13[%c0_25, %c0_26, %c0_27] : memref<4x8x1xf32, #tpu.memory_space<vmem>>, vector<4x8x1xf32>
      tpu.vector_store %arg13[%c0_25, %c0_26, %c0_27], %44 {strides = array<i32>} : memref<4x8x1xf32, #tpu.memory_space<vmem>>, vector<4x8x1xf32>,
      %c0_28 = arith.constant 0 : index
      %c0_29 = arith.constant 0 : index
      %c0_30 = arith.constant 0 : index
      %46 = vector.load %arg14[%c0_28, %c0_29, %c0_30] : memref<4x8x8xf32, #tpu.memory_space<vmem>>, vector<4x8x8xf32>
      %47 = vector.broadcast %36 : vector<4x8x1xf32> to vector<4x8x8xf32>
      %48 = arith.mulf %47, %46 : vector<4x8x8xf32>
      "tpu.trace_start"() <{level = 10 : i32, message = "hqk,hkd->hqd"}> : () -> ()
      %cst_31 = arith.constant dense<0.000000e+00> : vector<4x8x8xf32>
      %49 = tpu.matmul %39, %17, %cst_31 {dimension_numbers = #tpu.dot_dimension_numbers<[2], [1], [1], [2], [0, 0, 0, 1, 1, 2], [0], [0]>} : vector<4x8x8xf32>, vector<4x8x8xf32>, vector<4x8x8xf32> -> vector<4x8x8xf32>
      "tpu.trace_stop"() : () -> ()
      %50 = arith.addf %48, %49 : vector<4x8x8xf32>
      %c0_32 = arith.constant 0 : index
      %c0_33 = arith.constant 0 : index
      %c0_34 = arith.constant 0 : index
      %51 = vector.load %arg14[%c0_32, %c0_33, %c0_34] : memref<4x8x8xf32, #tpu.memory_space<vmem>>, vector<4x8x8xf32>
      tpu.vector_store %arg14[%c0_32, %c0_33, %c0_34], %50 {strides = array<i32>} : memref<4x8x8xf32, #tpu.memory_space<vmem>>, vector<4x8x8xf32>,
      %c0_35 = arith.constant 0 : index
      %c0_36 = arith.constant 0 : index
      %c0_37 = arith.constant 0 : index
      %52 = vector.load %arg12[%c0_35, %c0_36, %c0_37] : memref<4x8x1xf32, #tpu.memory_space<vmem>>, vector<4x8x1xf32>
      tpu.vector_store %arg12[%c0_35, %c0_36, %c0_37], %34 {strides = array<i32>} : memref<4x8x1xf32, #tpu.memory_space<vmem>>, vector<4x8x1xf32>,
    } else {
    }
    %c0_i32_3 = arith.constant 0 : i32
    %9 = arith.cmpi eq, %arg2, %c0_i32_3 : i32
    %10 = arith.extui %9 : i1 to i32
    %c0_i32_4 = arith.constant 0 : i32
    %11 = arith.cmpi ne, %10, %c0_i32_4 : i32
    scf.if %11 {
      %c0 = arith.constant 0 : index
      %c0_5 = arith.constant 0 : index
      %c0_6 = arith.constant 0 : index
      %12 = vector.load %arg14[%c0, %c0_5, %c0_6] : memref<4x8x8xf32, #tpu.memory_space<vmem>>, vector<4x8x8xf32>
      %c0_7 = arith.constant 0 : index
      %c0_8 = arith.constant 0 : index
      %c0_9 = arith.constant 0 : index
      %13 = vector.load %arg13[%c0_7, %c0_8, %c0_9] : memref<4x8x1xf32, #tpu.memory_space<vmem>>, vector<4x8x1xf32>
      %14 = vector.broadcast %13 : vector<4x8x1xf32> to vector<4x8x8xf32>
      %15 = arith.divf %12, %14 : vector<4x8x8xf32>
      %16 = vector.extract_strided_slice %15 {offsets = [0, 0, 0], sizes = [1, 8, 8], strides = [1, 1, 1]} : vector<4x8x8xf32> to vector<1x8x8xf32>
      %17 = vector.shape_cast %16 : vector<1x8x8xf32> to vector<8x8xf32>
      %c0_10 = arith.constant 0 : index
      %c0_11 = arith.constant 0 : index
      %c0_12 = arith.constant 0 : index
      %18 = vector.load %arg7[%c0_10, %c0_11, %c0_12] : memref<4x8x32xf32, #tpu.memory_space<vmem>>, vector<1x8x32xf32>
      %19 = vector.shape_cast %18 : vector<1x8x32xf32> to vector<8x32xf32>
      %cst = arith.constant dense<0.000000e+00> : vector<8x32xf32>
      %20 = tpu.matmul %17, %19, %cst {dimension_numbers = #tpu.dot_dimension_numbers<[1], [0], [0], [1], [0, 0, 1, 1], [], []>} : vector<8x8xf32>, vector<8x32xf32>, vector<8x32xf32> -> vector<8x32xf32>
      %21 = vector.extract_strided_slice %15 {offsets = [1, 0, 0], sizes = [1, 8, 8], strides = [1, 1, 1]} : vector<4x8x8xf32> to vector<1x8x8xf32>
      %22 = vector.shape_cast %21 : vector<1x8x8xf32> to vector<8x8xf32>
      %c1 = arith.constant 1 : index
      %c0_13 = arith.constant 0 : index
      %c0_14 = arith.constant 0 : index
      %23 = vector.load %arg7[%c1, %c0_13, %c0_14] : memref<4x8x32xf32, #tpu.memory_space<vmem>>, vector<1x8x32xf32>
      %24 = vector.shape_cast %23 : vector<1x8x32xf32> to vector<8x32xf32>
      %cst_15 = arith.constant dense<0.000000e+00> : vector<8x32xf32>
      %25 = tpu.matmul %22, %24, %cst_15 {dimension_numbers = #tpu.dot_dimension_numbers<[1], [0], [0], [1], [0, 0, 1, 1], [], []>} : vector<8x8xf32>, vector<8x32xf32>, vector<8x32xf32> -> vector<8x32xf32>
      %26 = arith.addf %20, %25 : vector<8x32xf32>
      %27 = vector.extract_strided_slice %15 {offsets = [2, 0, 0], sizes = [1, 8, 8], strides = [1, 1, 1]} : vector<4x8x8xf32> to vector<1x8x8xf32>
      %28 = vector.shape_cast %27 : vector<1x8x8xf32> to vector<8x8xf32>
      %c2 = arith.constant 2 : index
      %c0_16 = arith.constant 0 : index
      %c0_17 = arith.constant 0 : index
      %29 = vector.load %arg7[%c2, %c0_16, %c0_17] : memref<4x8x32xf32, #tpu.memory_space<vmem>>, vector<1x8x32xf32>
      %30 = vector.shape_cast %29 : vector<1x8x32xf32> to vector<8x32xf32>
      %cst_18 = arith.constant dense<0.000000e+00> : vector<8x32xf32>
      %31 = tpu.matmul %28, %30, %cst_18 {dimension_numbers = #tpu.dot_dimension_numbers<[1], [0], [0], [1], [0, 0, 1, 1], [], []>} : vector<8x8xf32>, vector<8x32xf32>, vector<8x32xf32> -> vector<8x32xf32>
      %32 = arith.addf %26, %31 : vector<8x32xf32>
      %33 = vector.extract_strided_slice %15 {offsets = [3, 0, 0], sizes = [1, 8, 8], strides = [1, 1, 1]} : vector<4x8x8xf32> to vector<1x8x8xf32>
      %34 = vector.shape_cast %33 : vector<1x8x8xf32> to vector<8x8xf32>
      %c3 = arith.constant 3 : index
      %c0_19 = arith.constant 0 : index
      %c0_20 = arith.constant 0 : index
      %35 = vector.load %arg7[%c3, %c0_19, %c0_20] : memref<4x8x32xf32, #tpu.memory_space<vmem>>, vector<1x8x32xf32>
      %36 = vector.shape_cast %35 : vector<1x8x32xf32> to vector<8x32xf32>
      %cst_21 = arith.constant dense<0.000000e+00> : vector<8x32xf32>
      %37 = tpu.matmul %34, %36, %cst_21 {dimension_numbers = #tpu.dot_dimension_numbers<[1], [0], [0], [1], [0, 0, 1, 1], [], []>} : vector<8x8xf32>, vector<8x32xf32>, vector<8x32xf32> -> vector<8x32xf32>
      %38 = arith.addf %32, %37 : vector<8x32xf32>
      %c0_22 = arith.constant 0 : index
      %c0_23 = arith.constant 0 : index
      %39 = vector.load %arg8[%c0_22, %c0_23] : memref<1x32xf32, #tpu.memory_space<vmem>>, vector<1x32xf32>
      %40 = vector.broadcast %39 : vector<1x32xf32> to vector<8x32xf32>
      %41 = arith.addf %38, %40 : vector<8x32xf32>
      %c0_24 = arith.constant 0 : index
      %c0_25 = arith.constant 0 : index
      %c0_26 = arith.constant 0 : index
      %42 = vector.load %arg3[%c0_24, %c0_25, %c0_26] : memref<1x8x32xf32, #tpu.memory_space<vmem>>, vector<1x8x32xf32>
      %43 = vector.shape_cast %42 : vector<1x8x32xf32> to vector<8x32xf32>
      %44 = arith.addf %43, %41 : vector<8x32xf32>
      %cst_27 = arith.constant dense<0.000000e+00> : vector<8xf32>
      %45 = vector.multi_reduction <add>, %44, %cst_27 [1] : vector<8x32xf32> to vector<8xf32>
      %46 = vector.shape_cast %45 : vector<8xf32> to vector<8x1xf32>
      %cst_28 = arith.constant 3.200000e+01 : f32
      %47 = vector.broadcast %cst_28 : f32 to vector<8x1xf32>
      %48 = arith.divf %46, %47 : vector<8x1xf32>
      %49 = vector.broadcast %48 : vector<8x1xf32> to vector<8x32xf32>
      %50 = arith.subf %44, %49 : vector<8x32xf32>
      %51 = vector.broadcast %48 : vector<8x1xf32> to vector<8x32xf32>
      %52 = arith.subf %44, %51 : vector<8x32xf32>
      %53 = arith.mulf %50, %52 : vector<8x32xf32>
      %cst_29 = arith.constant dense<0.000000e+00> : vector<8xf32>
      %54 = vector.multi_reduction <add>, %53, %cst_29 [1] : vector<8x32xf32> to vector<8xf32>
      %55 = vector.shape_cast %54 : vector<8xf32> to vector<8x1xf32>
      %cst_30 = arith.constant 3.200000e+01 : f32
      %56 = vector.broadcast %cst_30 : f32 to vector<8x1xf32>
      %57 = arith.divf %55, %56 : vector<8x1xf32>
      %58 = vector.broadcast %48 : vector<8x1xf32> to vector<8x32xf32>
      %59 = arith.subf %44, %58 : vector<8x32xf32>
      %cst_31 = arith.constant 9.99999974E-6 : f32
      %60 = vector.broadcast %cst_31 : f32 to vector<8x1xf32>
      %61 = arith.addf %57, %60 : vector<8x1xf32>
      %62 = math.rsqrt %61 : vector<8x1xf32>
      %63 = vector.broadcast %62 : vector<8x1xf32> to vector<8x32xf32>
      %64 = arith.mulf %59, %63 : vector<8x32xf32>
      %c0_32 = arith.constant 0 : index
      %c0_33 = arith.constant 0 : index
      %65 = vector.load %arg9[%c0_32, %c0_33] : memref<1x32xf32, #tpu.memory_space<vmem>>, vector<1x32xf32>
      %66 = vector.broadcast %65 : vector<1x32xf32> to vector<8x32xf32>
      %67 = arith.mulf %64, %66 : vector<8x32xf32>
      %c0_34 = arith.constant 0 : index
      %c0_35 = arith.constant 0 : index
      %68 = vector.load %arg10[%c0_34, %c0_35] : memref<1x32xf32, #tpu.memory_space<vmem>>, vector<1x32xf32>
      %69 = vector.broadcast %68 : vector<1x32xf32> to vector<8x32xf32>
      %70 = arith.addf %67, %69 : vector<8x32xf32>
      %c0_36 = arith.constant 0 : index
      %c0_37 = arith.constant 0 : index
      %c0_38 = arith.constant 0 : index
      %71 = vector.load %arg11[%c0_36, %c0_37, %c0_38] : memref<1x8x32xf32, #tpu.memory_space<vmem>>, vector<1x8x32xf32>
      %72 = vector.shape_cast %71 : vector<1x8x32xf32> to vector<8x32xf32>
      %73 = vector.shape_cast %70 : vector<8x32xf32> to vector<1x8x32xf32>
      tpu.vector_store %arg11[%c0_36, %c0_37, %c0_38], %73 {strides = array<i32>} : memref<1x8x32xf32, #tpu.memory_space<vmem>>, vector<1x8x32xf32>,
    } else {
    }
    return
  }
  func.func @transform_0(%arg0: i32, %arg1: i32, %arg2: i32) -> (i32, i32, i32) {
    %c0_i32 = arith.constant 0 : i32
    %c0_i32_0 = arith.constant 0 : i32
    return %arg0, %arg1, %c0_i32 : i32, i32, i32
  }
  func.func @transform_1(%arg0: i32, %arg1: i32, %arg2: i32) -> (i32, i32, i32, i32) {
    %c0_i32 = arith.constant 0 : i32
    %c0_i32_0 = arith.constant 0 : i32
    %c0_i32_1 = arith.constant 0 : i32
    return %arg0, %c0_i32, %arg1, %c0_i32_0 : i32, i32, i32, i32
  }
  func.func @transform_2(%arg0: i32, %arg1: i32, %arg2: i32) -> (i32, i32, i32, i32) {
    %c0_i32 = arith.constant 0 : i32
    %c0_i32_0 = arith.constant 0 : i32
    %c0_i32_1 = arith.constant 0 : i32
    return %arg0, %c0_i32, %arg2, %c0_i32_0 : i32, i32, i32, i32
  }
  func.func @transform_3(%arg0: i32, %arg1: i32, %arg2: i32) -> (i32, i32, i32, i32) {
    %c0_i32 = arith.constant 0 : i32
    %c0_i32_0 = arith.constant 0 : i32
    %c0_i32_1 = arith.constant 0 : i32
    return %arg0, %c0_i32, %arg2, %c0_i32_0 : i32, i32, i32, i32
  }
  func.func @transform_4(%arg0: i32, %arg1: i32, %arg2: i32) -> (i32, i32, i32) {
    %c0_i32 = arith.constant 0 : i32
    %c0_i32_0 = arith.constant 0 : i32
    %c0_i32_1 = arith.constant 0 : i32
    %c0_i32_2 = arith.constant 0 : i32
    return %c0_i32, %c0_i32_0, %c0_i32_1 : i32, i32, i32
  }
  func.func @transform_5(%arg0: i32, %arg1: i32, %arg2: i32) -> (i32, i32) {
    %c0_i32 = arith.constant 0 : i32
    %c0_i32_0 = arith.constant 0 : i32
    %c0_i32_1 = arith.constant 0 : i32
    return %c0_i32, %c0_i32_0 : i32, i32
  }
  func.func @transform_6(%arg0: i32, %arg1: i32, %arg2: i32) -> (i32, i32) {
    %c0_i32 = arith.constant 0 : i32
    %c0_i32_0 = arith.constant 0 : i32
    %c0_i32_1 = arith.constant 0 : i32
    return %c0_i32, %c0_i32_0 : i32, i32
  }
  func.func @transform_7(%arg0: i32, %arg1: i32, %arg2: i32) -> (i32, i32) {
    %c0_i32 = arith.constant 0 : i32
    %c0_i32_0 = arith.constant 0 : i32
    %c0_i32_1 = arith.constant 0 : i32
    return %c0_i32, %c0_i32_0 : i32, i32
  }
  func.func @transform_8(%arg0: i32, %arg1: i32, %arg2: i32) -> (i32, i32, i32) {
    %c0_i32 = arith.constant 0 : i32
    %c0_i32_0 = arith.constant 0 : i32
    return %arg0, %arg1, %c0_i32 : i32, i32, i32
  }
}

module attributes {stable_mosaic.version = 11 : i64} {
  func.func @_flash_mha_addnorm_kernel(%arg0: i32, %arg1: i32, %arg2: i32, %arg3: memref<1x8x32xf32, #tpu.memory_space<vmem>>, %arg4: memref<1x4x8x8xf32, #tpu.memory_space<vmem>>, %arg5: memref<1x4x8x8xf32, #tpu.memory_space<vmem>>, %arg6: memref<1x4x8x8xf32, #tpu.memory_space<vmem>>, %arg7: memref<1x1x8xf32, #tpu.memory_space<vmem>>, %arg8: memref<4x8x32xf32, #tpu.memory_space<vmem>>, %arg9: memref<1x32xf32, #tpu.memory_space<vmem>>, %arg10: memref<1x32xf32, #tpu.memory_space<vmem>>, %arg11: memref<1x32xf32, #tpu.memory_space<vmem>>, %arg12: memref<1x8x32xf32, #tpu.memory_space<vmem>>, %arg13: memref<4x8x1xf32, #tpu.memory_space<vmem>>, %arg14: memref<4x8x1xf32, #tpu.memory_space<vmem>>, %arg15: memref<4x8x8xf32, #tpu.memory_space<vmem>>) attributes {dimension_semantics = [#tpu.dimension_semantics<parallel>, #tpu.dimension_semantics<parallel>, #tpu.dimension_semantics<arbitrary>], iteration_bounds = array<i64: 2, 1, 1>, scalar_prefetch = 0 : i64, scratch_operands = 3 : i64, tpu.core_type = #tpu.core_type<tc>, window_params = [{transform_indices = @transform_0, window_bounds = array<i64: 1, 8, 32>}, {transform_indices = @transform_1, window_bounds = array<i64: 1, 4, 8, 8>}, {transform_indices = @transform_2, window_bounds = array<i64: 1, 4, 8, 8>}, {transform_indices = @transform_3, window_bounds = array<i64: 1, 4, 8, 8>}, {transform_indices = @transform_4, window_bounds = array<i64: 1, 1, 8>}, {pipeline_mode = #tpu.pipeline_mode<synchronous>, transform_indices = @transform_5, window_bounds = array<i64: 4, 8, 32>}, {pipeline_mode = #tpu.pipeline_mode<synchronous>, transform_indices = @transform_6, window_bounds = array<i64: 1, 32>}, {pipeline_mode = #tpu.pipeline_mode<synchronous>, transform_indices = @transform_7, window_bounds = array<i64: 1, 32>}, {pipeline_mode = #tpu.pipeline_mode<synchronous>, transform_indices = @transform_8, window_bounds = array<i64: 1, 32>}, {transform_indices = @transform_9, window_bounds = array<i64: 1, 8, 32>}]} {
    %c0_i32 = arith.constant 0 : i32
    %0 = arith.cmpi eq, %arg2, %c0_i32 : i32
    %1 = arith.extui %0 : i1 to i32
    %c0_i32_0 = arith.constant 0 : i32
    %2 = arith.cmpi ne, %1, %c0_i32_0 : i32
    scf.if %2 {
      %cst_38 = arith.constant -1.000000e+30 : f32
      %38 = vector.broadcast %cst_38 : f32 to vector<4x8x1xf32>
      %c0_39 = arith.constant 0 : index
      %c0_40 = arith.constant 0 : index
      %c0_41 = arith.constant 0 : index
      %39 = vector.load %arg13[%c0_39, %c0_40, %c0_41] : memref<4x8x1xf32, #tpu.memory_space<vmem>>, vector<4x8x1xf32>
      tpu.vector_store %arg13[%c0_39, %c0_40, %c0_41], %38 {strides = array<i32>} : memref<4x8x1xf32, #tpu.memory_space<vmem>>, vector<4x8x1xf32>,
      %cst_42 = arith.constant 0.000000e+00 : f32
      %40 = vector.broadcast %cst_42 : f32 to vector<4x8x1xf32>
      %c0_43 = arith.constant 0 : index
      %c0_44 = arith.constant 0 : index
      %c0_45 = arith.constant 0 : index
      %41 = vector.load %arg14[%c0_43, %c0_44, %c0_45] : memref<4x8x1xf32, #tpu.memory_space<vmem>>, vector<4x8x1xf32>
      tpu.vector_store %arg14[%c0_43, %c0_44, %c0_45], %40 {strides = array<i32>} : memref<4x8x1xf32, #tpu.memory_space<vmem>>, vector<4x8x1xf32>,
      %cst_46 = arith.constant 0.000000e+00 : f32
      %42 = vector.broadcast %cst_46 : f32 to vector<4x8x8xf32>
      %c0_47 = arith.constant 0 : index
      %c0_48 = arith.constant 0 : index
      %c0_49 = arith.constant 0 : index
      %43 = vector.load %arg15[%c0_47, %c0_48, %c0_49] : memref<4x8x8xf32, #tpu.memory_space<vmem>>, vector<4x8x8xf32>
      tpu.vector_store %arg15[%c0_47, %c0_48, %c0_49], %42 {strides = array<i32>} : memref<4x8x8xf32, #tpu.memory_space<vmem>>, vector<4x8x8xf32>,
    } else {
    }
    %c0 = arith.constant 0 : index
    %c0_1 = arith.constant 0 : index
    %c0_2 = arith.constant 0 : index
    %c0_3 = arith.constant 0 : index
    %3 = vector.load %arg4[%c0, %c0_1, %c0_2, %c0_3] : memref<1x4x8x8xf32, #tpu.memory_space<vmem>>, vector<1x4x8x8xf32>
    %4 = vector.shape_cast %3 : vector<1x4x8x8xf32> to vector<4x8x8xf32>
    %c0_4 = arith.constant 0 : index
    %c0_5 = arith.constant 0 : index
    %c0_6 = arith.constant 0 : index
    %c0_7 = arith.constant 0 : index
    %5 = vector.load %arg5[%c0_4, %c0_5, %c0_6, %c0_7] : memref<1x4x8x8xf32, #tpu.memory_space<vmem>>, vector<1x4x8x8xf32>
    %6 = vector.shape_cast %5 : vector<1x4x8x8xf32> to vector<4x8x8xf32>
    %c0_8 = arith.constant 0 : index
    %c0_9 = arith.constant 0 : index
    %c0_10 = arith.constant 0 : index
    %c0_11 = arith.constant 0 : index
    %7 = vector.load %arg6[%c0_8, %c0_9, %c0_10, %c0_11] : memref<1x4x8x8xf32, #tpu.memory_space<vmem>>, vector<1x4x8x8xf32>
    %8 = vector.shape_cast %7 : vector<1x4x8x8xf32> to vector<4x8x8xf32>
    "tpu.trace_start"() <{level = 10 : i32, message = "hqd,hkd->hqk"}> : () -> ()
    %cst = arith.constant dense<0.000000e+00> : vector<4x8x8xf32>
    %9 = tpu.matmul %4, %6, %cst {dimension_numbers = #tpu.dot_dimension_numbers<[2], [2], [1], [1], [0, 0, 0, 1, 1, 1], [0], [0]>} : vector<4x8x8xf32>, vector<4x8x8xf32>, vector<4x8x8xf32> -> vector<4x8x8xf32>
    "tpu.trace_stop"() : () -> ()
    %c0_12 = arith.constant 0 : index
    %c0_13 = arith.constant 0 : index
    %c0_14 = arith.constant 0 : index
    %10 = vector.load %arg7[%c0_12, %c0_13, %c0_14] : memref<1x1x8xf32, #tpu.memory_space<vmem>>, vector<1x1x8xf32>
    %11 = vector.broadcast %10 : vector<1x1x8xf32> to vector<4x8x8xf32>
    %12 = arith.addf %9, %11 : vector<4x8x8xf32>
    %c0_15 = arith.constant 0 : index
    %c0_16 = arith.constant 0 : index
    %c0_17 = arith.constant 0 : index
    %13 = vector.load %arg13[%c0_15, %c0_16, %c0_17] : memref<4x8x1xf32, #tpu.memory_space<vmem>>, vector<4x8x1xf32>
    %cst_18 = arith.constant dense<0xFF800000> : vector<4x8xf32>
    %14 = vector.multi_reduction <maximumf>, %12, %cst_18 [2] : vector<4x8x8xf32> to vector<4x8xf32>
    %15 = vector.shape_cast %14 : vector<4x8xf32> to vector<4x8x1xf32>
    %16 = arith.maximumf %13, %15 : vector<4x8x1xf32>
    %17 = arith.subf %13, %16 : vector<4x8x1xf32>
    %18 = math.exp %17 : vector<4x8x1xf32>
    %19 = vector.broadcast %16 : vector<4x8x1xf32> to vector<4x8x8xf32>
    %20 = arith.subf %12, %19 : vector<4x8x8xf32>
    %21 = math.exp %20 : vector<4x8x8xf32>
    %c0_19 = arith.constant 0 : index
    %c0_20 = arith.constant 0 : index
    %c0_21 = arith.constant 0 : index
    %22 = vector.load %arg14[%c0_19, %c0_20, %c0_21] : memref<4x8x1xf32, #tpu.memory_space<vmem>>, vector<4x8x1xf32>
    %23 = arith.mulf %18, %22 : vector<4x8x1xf32>
    %cst_22 = arith.constant dense<0.000000e+00> : vector<4x8xf32>
    %24 = vector.multi_reduction <add>, %21, %cst_22 [2] : vector<4x8x8xf32> to vector<4x8xf32>
    %25 = vector.shape_cast %24 : vector<4x8xf32> to vector<4x8x1xf32>
    %26 = arith.addf %23, %25 : vector<4x8x1xf32>
    %c0_23 = arith.constant 0 : index
    %c0_24 = arith.constant 0 : index
    %c0_25 = arith.constant 0 : index
    %27 = vector.load %arg14[%c0_23, %c0_24, %c0_25] : memref<4x8x1xf32, #tpu.memory_space<vmem>>, vector<4x8x1xf32>
    tpu.vector_store %arg14[%c0_23, %c0_24, %c0_25], %26 {strides = array<i32>} : memref<4x8x1xf32, #tpu.memory_space<vmem>>, vector<4x8x1xf32>,
    %c0_26 = arith.constant 0 : index
    %c0_27 = arith.constant 0 : index
    %c0_28 = arith.constant 0 : index
    %28 = vector.load %arg15[%c0_26, %c0_27, %c0_28] : memref<4x8x8xf32, #tpu.memory_space<vmem>>, vector<4x8x8xf32>
    %29 = vector.broadcast %18 : vector<4x8x1xf32> to vector<4x8x8xf32>
    %30 = arith.mulf %29, %28 : vector<4x8x8xf32>
    "tpu.trace_start"() <{level = 10 : i32, message = "hqk,hkd->hqd"}> : () -> ()
    %cst_29 = arith.constant dense<0.000000e+00> : vector<4x8x8xf32>
    %31 = tpu.matmul %21, %8, %cst_29 {dimension_numbers = #tpu.dot_dimension_numbers<[2], [1], [1], [2], [0, 0, 0, 1, 1, 2], [0], [0]>} : vector<4x8x8xf32>, vector<4x8x8xf32>, vector<4x8x8xf32> -> vector<4x8x8xf32>
    "tpu.trace_stop"() : () -> ()
    %32 = arith.addf %30, %31 : vector<4x8x8xf32>
    %c0_30 = arith.constant 0 : index
    %c0_31 = arith.constant 0 : index
    %c0_32 = arith.constant 0 : index
    %33 = vector.load %arg15[%c0_30, %c0_31, %c0_32] : memref<4x8x8xf32, #tpu.memory_space<vmem>>, vector<4x8x8xf32>
    tpu.vector_store %arg15[%c0_30, %c0_31, %c0_32], %32 {strides = array<i32>} : memref<4x8x8xf32, #tpu.memory_space<vmem>>, vector<4x8x8xf32>,
    %c0_33 = arith.constant 0 : index
    %c0_34 = arith.constant 0 : index
    %c0_35 = arith.constant 0 : index
    %34 = vector.load %arg13[%c0_33, %c0_34, %c0_35] : memref<4x8x1xf32, #tpu.memory_space<vmem>>, vector<4x8x1xf32>
    tpu.vector_store %arg13[%c0_33, %c0_34, %c0_35], %16 {strides = array<i32>} : memref<4x8x1xf32, #tpu.memory_space<vmem>>, vector<4x8x1xf32>,
    %c0_i32_36 = arith.constant 0 : i32
    %35 = arith.cmpi eq, %arg2, %c0_i32_36 : i32
    %36 = arith.extui %35 : i1 to i32
    %c0_i32_37 = arith.constant 0 : i32
    %37 = arith.cmpi ne, %36, %c0_i32_37 : i32
    scf.if %37 {
      %c0_38 = arith.constant 0 : index
      %c0_39 = arith.constant 0 : index
      %c0_40 = arith.constant 0 : index
      %38 = vector.load %arg15[%c0_38, %c0_39, %c0_40] : memref<4x8x8xf32, #tpu.memory_space<vmem>>, vector<4x8x8xf32>
      %c0_41 = arith.constant 0 : index
      %c0_42 = arith.constant 0 : index
      %c0_43 = arith.constant 0 : index
      %39 = vector.load %arg14[%c0_41, %c0_42, %c0_43] : memref<4x8x1xf32, #tpu.memory_space<vmem>>, vector<4x8x1xf32>
      %40 = vector.broadcast %39 : vector<4x8x1xf32> to vector<4x8x8xf32>
      %41 = arith.divf %38, %40 : vector<4x8x8xf32>
      %42 = vector.extract_strided_slice %41 {offsets = [0, 0, 0], sizes = [1, 8, 8], strides = [1, 1, 1]} : vector<4x8x8xf32> to vector<1x8x8xf32>
      %43 = vector.shape_cast %42 : vector<1x8x8xf32> to vector<8x8xf32>
      %c0_44 = arith.constant 0 : index
      %c0_45 = arith.constant 0 : index
      %c0_46 = arith.constant 0 : index
      %44 = vector.load %arg8[%c0_44, %c0_45, %c0_46] : memref<4x8x32xf32, #tpu.memory_space<vmem>>, vector<1x8x32xf32>
      %45 = vector.shape_cast %44 : vector<1x8x32xf32> to vector<8x32xf32>
      %cst_47 = arith.constant dense<0.000000e+00> : vector<8x32xf32>
      %46 = tpu.matmul %43, %45, %cst_47 {dimension_numbers = #tpu.dot_dimension_numbers<[1], [0], [0], [1], [0, 0, 1, 1], [], []>} : vector<8x8xf32>, vector<8x32xf32>, vector<8x32xf32> -> vector<8x32xf32>
      %47 = vector.extract_strided_slice %41 {offsets = [1, 0, 0], sizes = [1, 8, 8], strides = [1, 1, 1]} : vector<4x8x8xf32> to vector<1x8x8xf32>
      %48 = vector.shape_cast %47 : vector<1x8x8xf32> to vector<8x8xf32>
      %c1 = arith.constant 1 : index
      %c0_48 = arith.constant 0 : index
      %c0_49 = arith.constant 0 : index
      %49 = vector.load %arg8[%c1, %c0_48, %c0_49] : memref<4x8x32xf32, #tpu.memory_space<vmem>>, vector<1x8x32xf32>
      %50 = vector.shape_cast %49 : vector<1x8x32xf32> to vector<8x32xf32>
      %cst_50 = arith.constant dense<0.000000e+00> : vector<8x32xf32>
      %51 = tpu.matmul %48, %50, %cst_50 {dimension_numbers = #tpu.dot_dimension_numbers<[1], [0], [0], [1], [0, 0, 1, 1], [], []>} : vector<8x8xf32>, vector<8x32xf32>, vector<8x32xf32> -> vector<8x32xf32>
      %52 = arith.addf %46, %51 : vector<8x32xf32>
      %53 = vector.extract_strided_slice %41 {offsets = [2, 0, 0], sizes = [1, 8, 8], strides = [1, 1, 1]} : vector<4x8x8xf32> to vector<1x8x8xf32>
      %54 = vector.shape_cast %53 : vector<1x8x8xf32> to vector<8x8xf32>
      %c2 = arith.constant 2 : index
      %c0_51 = arith.constant 0 : index
      %c0_52 = arith.constant 0 : index
      %55 = vector.load %arg8[%c2, %c0_51, %c0_52] : memref<4x8x32xf32, #tpu.memory_space<vmem>>, vector<1x8x32xf32>
      %56 = vector.shape_cast %55 : vector<1x8x32xf32> to vector<8x32xf32>
      %cst_53 = arith.constant dense<0.000000e+00> : vector<8x32xf32>
      %57 = tpu.matmul %54, %56, %cst_53 {dimension_numbers = #tpu.dot_dimension_numbers<[1], [0], [0], [1], [0, 0, 1, 1], [], []>} : vector<8x8xf32>, vector<8x32xf32>, vector<8x32xf32> -> vector<8x32xf32>
      %58 = arith.addf %52, %57 : vector<8x32xf32>
      %59 = vector.extract_strided_slice %41 {offsets = [3, 0, 0], sizes = [1, 8, 8], strides = [1, 1, 1]} : vector<4x8x8xf32> to vector<1x8x8xf32>
      %60 = vector.shape_cast %59 : vector<1x8x8xf32> to vector<8x8xf32>
      %c3 = arith.constant 3 : index
      %c0_54 = arith.constant 0 : index
      %c0_55 = arith.constant 0 : index
      %61 = vector.load %arg8[%c3, %c0_54, %c0_55] : memref<4x8x32xf32, #tpu.memory_space<vmem>>, vector<1x8x32xf32>
      %62 = vector.shape_cast %61 : vector<1x8x32xf32> to vector<8x32xf32>
      %cst_56 = arith.constant dense<0.000000e+00> : vector<8x32xf32>
      %63 = tpu.matmul %60, %62, %cst_56 {dimension_numbers = #tpu.dot_dimension_numbers<[1], [0], [0], [1], [0, 0, 1, 1], [], []>} : vector<8x8xf32>, vector<8x32xf32>, vector<8x32xf32> -> vector<8x32xf32>
      %64 = arith.addf %58, %63 : vector<8x32xf32>
      %c0_57 = arith.constant 0 : index
      %c0_58 = arith.constant 0 : index
      %65 = vector.load %arg9[%c0_57, %c0_58] : memref<1x32xf32, #tpu.memory_space<vmem>>, vector<1x32xf32>
      %66 = vector.broadcast %65 : vector<1x32xf32> to vector<8x32xf32>
      %67 = arith.addf %64, %66 : vector<8x32xf32>
      %c0_59 = arith.constant 0 : index
      %c0_60 = arith.constant 0 : index
      %c0_61 = arith.constant 0 : index
      %68 = vector.load %arg3[%c0_59, %c0_60, %c0_61] : memref<1x8x32xf32, #tpu.memory_space<vmem>>, vector<1x8x32xf32>
      %69 = vector.shape_cast %68 : vector<1x8x32xf32> to vector<8x32xf32>
      %70 = arith.addf %69, %67 : vector<8x32xf32>
      %cst_62 = arith.constant dense<0.000000e+00> : vector<8xf32>
      %71 = vector.multi_reduction <add>, %70, %cst_62 [1] : vector<8x32xf32> to vector<8xf32>
      %72 = vector.shape_cast %71 : vector<8xf32> to vector<8x1xf32>
      %cst_63 = arith.constant 3.200000e+01 : f32
      %73 = vector.broadcast %cst_63 : f32 to vector<8x1xf32>
      %74 = arith.divf %72, %73 : vector<8x1xf32>
      %75 = vector.broadcast %74 : vector<8x1xf32> to vector<8x32xf32>
      %76 = arith.subf %70, %75 : vector<8x32xf32>
      %77 = vector.broadcast %74 : vector<8x1xf32> to vector<8x32xf32>
      %78 = arith.subf %70, %77 : vector<8x32xf32>
      %79 = arith.mulf %76, %78 : vector<8x32xf32>
      %cst_64 = arith.constant dense<0.000000e+00> : vector<8xf32>
      %80 = vector.multi_reduction <add>, %79, %cst_64 [1] : vector<8x32xf32> to vector<8xf32>
      %81 = vector.shape_cast %80 : vector<8xf32> to vector<8x1xf32>
      %cst_65 = arith.constant 3.200000e+01 : f32
      %82 = vector.broadcast %cst_65 : f32 to vector<8x1xf32>
      %83 = arith.divf %81, %82 : vector<8x1xf32>
      %84 = vector.broadcast %74 : vector<8x1xf32> to vector<8x32xf32>
      %85 = arith.subf %70, %84 : vector<8x32xf32>
      %cst_66 = arith.constant 9.99999974E-6 : f32
      %86 = vector.broadcast %cst_66 : f32 to vector<8x1xf32>
      %87 = arith.addf %83, %86 : vector<8x1xf32>
      %88 = math.rsqrt %87 : vector<8x1xf32>
      %89 = vector.broadcast %88 : vector<8x1xf32> to vector<8x32xf32>
      %90 = arith.mulf %85, %89 : vector<8x32xf32>
      %c0_67 = arith.constant 0 : index
      %c0_68 = arith.constant 0 : index
      %91 = vector.load %arg10[%c0_67, %c0_68] : memref<1x32xf32, #tpu.memory_space<vmem>>, vector<1x32xf32>
      %92 = vector.broadcast %91 : vector<1x32xf32> to vector<8x32xf32>
      %93 = arith.mulf %90, %92 : vector<8x32xf32>
      %c0_69 = arith.constant 0 : index
      %c0_70 = arith.constant 0 : index
      %94 = vector.load %arg11[%c0_69, %c0_70] : memref<1x32xf32, #tpu.memory_space<vmem>>, vector<1x32xf32>
      %95 = vector.broadcast %94 : vector<1x32xf32> to vector<8x32xf32>
      %96 = arith.addf %93, %95 : vector<8x32xf32>
      %c0_71 = arith.constant 0 : index
      %c0_72 = arith.constant 0 : index
      %c0_73 = arith.constant 0 : index
      %97 = vector.load %arg12[%c0_71, %c0_72, %c0_73] : memref<1x8x32xf32, #tpu.memory_space<vmem>>, vector<1x8x32xf32>
      %98 = vector.shape_cast %97 : vector<1x8x32xf32> to vector<8x32xf32>
      %99 = vector.shape_cast %96 : vector<8x32xf32> to vector<1x8x32xf32>
      tpu.vector_store %arg12[%c0_71, %c0_72, %c0_73], %99 {strides = array<i32>} : memref<1x8x32xf32, #tpu.memory_space<vmem>>, vector<1x8x32xf32>,
    } else {
    }
    return
  }
  func.func @transform_0(%arg0: i32, %arg1: i32, %arg2: i32) -> (i32, i32, i32) {
    %c0_i32 = arith.constant 0 : i32
    %c0_i32_0 = arith.constant 0 : i32
    return %arg0, %arg1, %c0_i32 : i32, i32, i32
  }
  func.func @transform_1(%arg0: i32, %arg1: i32, %arg2: i32) -> (i32, i32, i32, i32) {
    %c0_i32 = arith.constant 0 : i32
    %c0_i32_0 = arith.constant 0 : i32
    %c0_i32_1 = arith.constant 0 : i32
    return %arg0, %c0_i32, %arg1, %c0_i32_0 : i32, i32, i32, i32
  }
  func.func @transform_2(%arg0: i32, %arg1: i32, %arg2: i32) -> (i32, i32, i32, i32) {
    %c0_i32 = arith.constant 0 : i32
    %c0_i32_0 = arith.constant 0 : i32
    %c0_i32_1 = arith.constant 0 : i32
    return %arg0, %c0_i32, %arg2, %c0_i32_0 : i32, i32, i32, i32
  }
  func.func @transform_3(%arg0: i32, %arg1: i32, %arg2: i32) -> (i32, i32, i32, i32) {
    %c0_i32 = arith.constant 0 : i32
    %c0_i32_0 = arith.constant 0 : i32
    %c0_i32_1 = arith.constant 0 : i32
    return %arg0, %c0_i32, %arg2, %c0_i32_0 : i32, i32, i32, i32
  }
  func.func @transform_4(%arg0: i32, %arg1: i32, %arg2: i32) -> (i32, i32, i32) {
    %c0_i32 = arith.constant 0 : i32
    %c0_i32_0 = arith.constant 0 : i32
    return %arg0, %c0_i32, %arg2 : i32, i32, i32
  }
  func.func @transform_5(%arg0: i32, %arg1: i32, %arg2: i32) -> (i32, i32, i32) {
    %c0_i32 = arith.constant 0 : i32
    %c0_i32_0 = arith.constant 0 : i32
    %c0_i32_1 = arith.constant 0 : i32
    %c0_i32_2 = arith.constant 0 : i32
    return %c0_i32, %c0_i32_0, %c0_i32_1 : i32, i32, i32
  }
  func.func @transform_6(%arg0: i32, %arg1: i32, %arg2: i32) -> (i32, i32) {
    %c0_i32 = arith.constant 0 : i32
    %c0_i32_0 = arith.constant 0 : i32
    %c0_i32_1 = arith.constant 0 : i32
    return %c0_i32, %c0_i32_0 : i32, i32
  }
  func.func @transform_7(%arg0: i32, %arg1: i32, %arg2: i32) -> (i32, i32) {
    %c0_i32 = arith.constant 0 : i32
    %c0_i32_0 = arith.constant 0 : i32
    %c0_i32_1 = arith.constant 0 : i32
    return %c0_i32, %c0_i32_0 : i32, i32
  }
  func.func @transform_8(%arg0: i32, %arg1: i32, %arg2: i32) -> (i32, i32) {
    %c0_i32 = arith.constant 0 : i32
    %c0_i32_0 = arith.constant 0 : i32
    %c0_i32_1 = arith.constant 0 : i32
    return %c0_i32, %c0_i32_0 : i32, i32
  }
  func.func @transform_9(%arg0: i32, %arg1: i32, %arg2: i32) -> (i32, i32, i32) {
    %c0_i32 = arith.constant 0 : i32
    %c0_i32_0 = arith.constant 0 : i32
    return %arg0, %arg1, %c0_i32 : i32, i32, i32
  }
}

module attributes {stable_mosaic.version = 11 : i64} {
  func.func @_ffn_addnorm_kernel(%arg0: i32, %arg1: i32, %arg2: memref<16x32xf32, #tpu.memory_space<vmem>>, %arg3: memref<32x64xf32, #tpu.memory_space<vmem>>, %arg4: memref<1x64xf32, #tpu.memory_space<vmem>>, %arg5: memref<64x32xf32, #tpu.memory_space<vmem>>, %arg6: memref<1x32xf32, #tpu.memory_space<vmem>>, %arg7: memref<1x32xf32, #tpu.memory_space<vmem>>, %arg8: memref<1x32xf32, #tpu.memory_space<vmem>>, %arg9: memref<16x32xf32, #tpu.memory_space<vmem>>, %arg10: memref<16x32xf32, #tpu.memory_space<vmem>>) attributes {dimension_semantics = [#tpu.dimension_semantics<parallel>, #tpu.dimension_semantics<arbitrary>], iteration_bounds = array<i64: 1, 1>, scalar_prefetch = 0 : i64, scratch_operands = 1 : i64, tpu.core_type = #tpu.core_type<tc>, window_params = [{transform_indices = @transform_0, window_bounds = array<i64: 16, 32>}, {transform_indices = @transform_1, window_bounds = array<i64: 32, 64>}, {transform_indices = @transform_2, window_bounds = array<i64: 1, 64>}, {transform_indices = @transform_3, window_bounds = array<i64: 64, 32>}, {pipeline_mode = #tpu.pipeline_mode<synchronous>, transform_indices = @transform_4, window_bounds = array<i64: 1, 32>}, {pipeline_mode = #tpu.pipeline_mode<synchronous>, transform_indices = @transform_5, window_bounds = array<i64: 1, 32>}, {pipeline_mode = #tpu.pipeline_mode<synchronous>, transform_indices = @transform_6, window_bounds = array<i64: 1, 32>}, {transform_indices = @transform_7, window_bounds = array<i64: 16, 32>}]} {
    %c0_i32 = arith.constant 0 : i32
    %0 = arith.cmpi eq, %arg1, %c0_i32 : i32
    %1 = arith.extui %0 : i1 to i32
    %c0_i32_0 = arith.constant 0 : i32
    %2 = arith.cmpi ne, %1, %c0_i32_0 : i32
    scf.if %2 {
      %cst_16 = arith.constant 0.000000e+00 : f32
      %19 = vector.broadcast %cst_16 : f32 to vector<16x32xf32>
      %c0_17 = arith.constant 0 : index
      %c0_18 = arith.constant 0 : index
      %20 = vector.load %arg10[%c0_17, %c0_18] : memref<16x32xf32, #tpu.memory_space<vmem>>, vector<16x32xf32>
      tpu.vector_store %arg10[%c0_17, %c0_18], %19 {strides = array<i32>} : memref<16x32xf32, #tpu.memory_space<vmem>>, vector<16x32xf32>,
    } else {
    }
    %c0 = arith.constant 0 : index
    %c0_1 = arith.constant 0 : index
    %3 = vector.load %arg2[%c0, %c0_1] : memref<16x32xf32, #tpu.memory_space<vmem>>, vector<16x32xf32>
    %c0_2 = arith.constant 0 : index
    %c0_3 = arith.constant 0 : index
    %4 = vector.load %arg3[%c0_2, %c0_3] : memref<32x64xf32, #tpu.memory_space<vmem>>, vector<32x64xf32>
    %cst = arith.constant dense<0.000000e+00> : vector<16x64xf32>
    %5 = tpu.matmul %3, %4, %cst {dimension_numbers = #tpu.dot_dimension_numbers<[1], [0], [0], [1], [0, 0, 1, 1], [], []>} : vector<16x32xf32>, vector<32x64xf32>, vector<16x64xf32> -> vector<16x64xf32>
    %c0_4 = arith.constant 0 : index
    %c0_5 = arith.constant 0 : index
    %6 = vector.load %arg4[%c0_4, %c0_5] : memref<1x64xf32, #tpu.memory_space<vmem>>, vector<1x64xf32>
    %7 = vector.broadcast %6 : vector<1x64xf32> to vector<16x64xf32>
    %8 = arith.addf %5, %7 : vector<16x64xf32>
    %cst_6 = arith.constant 0.000000e+00 : f32
    %9 = vector.broadcast %cst_6 : f32 to vector<16x64xf32>
    %10 = arith.maximumf %8, %9 : vector<16x64xf32>
    %c0_7 = arith.constant 0 : index
    %c0_8 = arith.constant 0 : index
    %11 = vector.load %arg10[%c0_7, %c0_8] : memref<16x32xf32, #tpu.memory_space<vmem>>, vector<16x32xf32>
    %c0_9 = arith.constant 0 : index
    %c0_10 = arith.constant 0 : index
    %12 = vector.load %arg5[%c0_9, %c0_10] : memref<64x32xf32, #tpu.memory_space<vmem>>, vector<64x32xf32>
    %cst_11 = arith.constant dense<0.000000e+00> : vector<16x32xf32>
    %13 = tpu.matmul %10, %12, %cst_11 {dimension_numbers = #tpu.dot_dimension_numbers<[1], [0], [0], [1], [0, 0, 1, 1], [], []>} : vector<16x64xf32>, vector<64x32xf32>, vector<16x32xf32> -> vector<16x32xf32>
    %14 = arith.addf %11, %13 : vector<16x32xf32>
    %c0_12 = arith.constant 0 : index
    %c0_13 = arith.constant 0 : index
    %15 = vector.load %arg10[%c0_12, %c0_13] : memref<16x32xf32, #tpu.memory_space<vmem>>, vector<16x32xf32>
    tpu.vector_store %arg10[%c0_12, %c0_13], %14 {strides = array<i32>} : memref<16x32xf32, #tpu.memory_space<vmem>>, vector<16x32xf32>,
    %c0_i32_14 = arith.constant 0 : i32
    %16 = arith.cmpi eq, %arg1, %c0_i32_14 : i32
    %17 = arith.extui %16 : i1 to i32
    %c0_i32_15 = arith.constant 0 : i32
    %18 = arith.cmpi ne, %17, %c0_i32_15 : i32
    scf.if %18 {
      %c0_16 = arith.constant 0 : index
      %c0_17 = arith.constant 0 : index
      %19 = vector.load %arg10[%c0_16, %c0_17] : memref<16x32xf32, #tpu.memory_space<vmem>>, vector<16x32xf32>
      %20 = arith.addf %3, %19 : vector<16x32xf32>
      %c0_18 = arith.constant 0 : index
      %c0_19 = arith.constant 0 : index
      %21 = vector.load %arg6[%c0_18, %c0_19] : memref<1x32xf32, #tpu.memory_space<vmem>>, vector<1x32xf32>
      %22 = vector.broadcast %21 : vector<1x32xf32> to vector<16x32xf32>
      %23 = arith.addf %20, %22 : vector<16x32xf32>
      %cst_20 = arith.constant dense<0.000000e+00> : vector<16xf32>
      %24 = vector.multi_reduction <add>, %23, %cst_20 [1] : vector<16x32xf32> to vector<16xf32>
      %25 = vector.shape_cast %24 : vector<16xf32> to vector<16x1xf32>
      %cst_21 = arith.constant 3.200000e+01 : f32
      %26 = vector.broadcast %cst_21 : f32 to vector<16x1xf32>
      %27 = arith.divf %25, %26 : vector<16x1xf32>
      %28 = vector.broadcast %27 : vector<16x1xf32> to vector<16x32xf32>
      %29 = arith.subf %23, %28 : vector<16x32xf32>
      %30 = vector.broadcast %27 : vector<16x1xf32> to vector<16x32xf32>
      %31 = arith.subf %23, %30 : vector<16x32xf32>
      %32 = arith.mulf %29, %31 : vector<16x32xf32>
      %cst_22 = arith.constant dense<0.000000e+00> : vector<16xf32>
      %33 = vector.multi_reduction <add>, %32, %cst_22 [1] : vector<16x32xf32> to vector<16xf32>
      %34 = vector.shape_cast %33 : vector<16xf32> to vector<16x1xf32>
      %cst_23 = arith.constant 3.200000e+01 : f32
      %35 = vector.broadcast %cst_23 : f32 to vector<16x1xf32>
      %36 = arith.divf %34, %35 : vector<16x1xf32>
      %37 = vector.broadcast %27 : vector<16x1xf32> to vector<16x32xf32>
      %38 = arith.subf %23, %37 : vector<16x32xf32>
      %cst_24 = arith.constant 9.99999974E-6 : f32
      %39 = vector.broadcast %cst_24 : f32 to vector<16x1xf32>
      %40 = arith.addf %36, %39 : vector<16x1xf32>
      %41 = math.rsqrt %40 : vector<16x1xf32>
      %42 = vector.broadcast %41 : vector<16x1xf32> to vector<16x32xf32>
      %43 = arith.mulf %38, %42 : vector<16x32xf32>
      %c0_25 = arith.constant 0 : index
      %c0_26 = arith.constant 0 : index
      %44 = vector.load %arg7[%c0_25, %c0_26] : memref<1x32xf32, #tpu.memory_space<vmem>>, vector<1x32xf32>
      %45 = vector.broadcast %44 : vector<1x32xf32> to vector<16x32xf32>
      %46 = arith.mulf %43, %45 : vector<16x32xf32>
      %c0_27 = arith.constant 0 : index
      %c0_28 = arith.constant 0 : index
      %47 = vector.load %arg8[%c0_27, %c0_28] : memref<1x32xf32, #tpu.memory_space<vmem>>, vector<1x32xf32>
      %48 = vector.broadcast %47 : vector<1x32xf32> to vector<16x32xf32>
      %49 = arith.addf %46, %48 : vector<16x32xf32>
      %c0_29 = arith.constant 0 : index
      %c0_30 = arith.constant 0 : index
      %50 = vector.load %arg9[%c0_29, %c0_30] : memref<16x32xf32, #tpu.memory_space<vmem>>, vector<16x32xf32>
      tpu.vector_store %arg9[%c0_29, %c0_30], %49 {strides = array<i32>} : memref<16x32xf32, #tpu.memory_space<vmem>>, vector<16x32xf32>,
    } else {
    }
    return
  }
  func.func @transform_0(%arg0: i32, %arg1: i32) -> (i32, i32) {
    %c0_i32 = arith.constant 0 : i32
    %c0_i32_0 = arith.constant 0 : i32
    return %arg0, %c0_i32 : i32, i32
  }
  func.func @transform_1(%arg0: i32, %arg1: i32) -> (i32, i32) {
    %c0_i32 = arith.constant 0 : i32
    %c0_i32_0 = arith.constant 0 : i32
    return %c0_i32, %arg1 : i32, i32
  }
  func.func @transform_2(%arg0: i32, %arg1: i32) -> (i32, i32) {
    %c0_i32 = arith.constant 0 : i32
    %c0_i32_0 = arith.constant 0 : i32
    return %c0_i32, %arg1 : i32, i32
  }
  func.func @transform_3(%arg0: i32, %arg1: i32) -> (i32, i32) {
    %c0_i32 = arith.constant 0 : i32
    %c0_i32_0 = arith.constant 0 : i32
    return %arg1, %c0_i32 : i32, i32
  }
  func.func @transform_4(%arg0: i32, %arg1: i32) -> (i32, i32) {
    %c0_i32 = arith.constant 0 : i32
    %c0_i32_0 = arith.constant 0 : i32
    %c0_i32_1 = arith.constant 0 : i32
    return %c0_i32, %c0_i32_0 : i32, i32
  }
  func.func @transform_5(%arg0: i32, %arg1: i32) -> (i32, i32) {
    %c0_i32 = arith.constant 0 : i32
    %c0_i32_0 = arith.constant 0 : i32
    %c0_i32_1 = arith.constant 0 : i32
    return %c0_i32, %c0_i32_0 : i32, i32
  }
  func.func @transform_6(%arg0: i32, %arg1: i32) -> (i32, i32) {
    %c0_i32 = arith.constant 0 : i32
    %c0_i32_0 = arith.constant 0 : i32
    %c0_i32_1 = arith.constant 0 : i32
    return %c0_i32, %c0_i32_0 : i32, i32
  }
  func.func @transform_7(%arg0: i32, %arg1: i32) -> (i32, i32) {
    %c0_i32 = arith.constant 0 : i32
    %c0_i32_0 = arith.constant 0 : i32
    return %arg0, %c0_i32 : i32, i32
  }
}

</mosaic_0001>

<llo_original>
// kernel: decoder_layer.6
$region0: #{decoder_layer.6}
  #allocation0 [shape = 'u32[]', space=smem, size = 0x4, offset = 0x4, fixed_abs, tag = 'smem constant byte address 0x4 - core index']
  #allocation1 [shape = 'u32[144,128]{1,0:T(1,128)}', space=vmem, size = 0x12000, scoped, tag = 'internal scratch']
  %s0 = inlined_call_operand.vmem [shape: f32[16,32], index: 0, kind: input, shape index: {}]
  %s1 = inlined_call_operand.vmem [shape: f32[32,32], index: 1, kind: input, shape index: {}]
  %s2 = inlined_call_operand.vmem [shape: f32[1,32], index: 2, kind: input, shape index: {}]
  %s3 = inlined_call_operand.hbm [shape: f32[32,32], index: 3, kind: input, shape index: {}]
  %s4 = inlined_call_operand.vmem [shape: f32[1,32], index: 4, kind: input, shape index: {}]
  %s5 = inlined_call_operand.hbm [shape: f32[32,32], index: 5, kind: input, shape index: {}]
  %s6 = inlined_call_operand.vmem [shape: f32[1,32], index: 6, kind: input, shape index: {}]
  %s7 = inlined_call_operand.vmem [shape: f32[16,32], index: 7, kind: output, shape index: {0}]
  %s8 = inlined_call_operand.vmem [shape: f32[16,32], index: 8, kind: output, shape index: {1}]
  %s9 = inlined_call_operand.vmem [shape: f32[16,32], index: 9, kind: output, shape index: {2}]
  %10 = xla_tuple %s7, %s8, %s9
  %s11 = sld [smem:[#allocation0]]
  $region62: #{decoder_layer.6} parent=0
    _
  %s13 = ssub.s32 1, %s11
  %s14 = scalar_select 0, %s13, %s11
  $region1: #{decoder_layer.6} parent=0
    #allocation2 [shape = 'u8[16384]{0}', space=vmem, size = 0x4000, scoped, tag = 'input window, operand 3, single buffered']
    #allocation3 [shape = 's32[1]{0}', space=sflag, size = 0x4, scoped, tag = 'scoped memory for decoder_layer.6']
    #allocation4 [shape = 'u8[16384]{0}', space=vmem, size = 0x4000, scoped, tag = 'input window, operand 5, single buffered']
    #allocation5 [shape = 's32[1]{0}', space=sflag, size = 0x4, scoped, tag = 'scoped memory for decoder_layer.6']
    %15 = vsyncpa [#allocation3], 0
    %16 = vsyncpa [#allocation5], 0
    // Predicated region
    $region2: #{decoder_layer.6} parent=1 // pred_check
      _
    $region3: #{decoder_layer.6} parent=1 // pred_check_branch
      %18 = sbr.rel (0) target = $region5
    $region4: #{decoder_layer.6} parent=1 // pred_region
      _
    $region5: #{decoder_layer.6} parent=1 // pred_fallthru
      _
    // Predicated region
    $region6: #{decoder_layer.6} parent=1 // pred_check
      _
    $region7: #{decoder_layer.6} parent=1 // pred_check_branch
      %20 = sbr.rel (0) target = $region9
    $region8: #{decoder_layer.6} parent=1 // pred_region
      _
    $region9: #{decoder_layer.6} parent=1 // pred_fallthru
      _
    // Predicated region
    $region10: #{decoder_layer.6} parent=1 // pred_check
      _
    $region11: #{decoder_layer.6} parent=1 // pred_check_branch
      %22 = sbr.rel (0) target = $region13
    $region12: #{decoder_layer.6} parent=1 // pred_region
      _
    $region13: #{decoder_layer.6} parent=1 // pred_fallthru
      _
    // Predicated region
    $region14: #{decoder_layer.6} parent=1 // pred_check
      _
    $region15: #{decoder_layer.6} parent=1 // pred_check_branch
      %24 = sbr.rel (0) target = $region17
    $region16: #{decoder_layer.6} parent=1 // pred_region
      %s26 = ssub.s32 512, 512
      %27 = vsyncadd [#allocation3], %s26
      %s28 = sshll.u32 [#allocation2], 4
      %s29 = int_to_ptr.vmem [resolvable:$true] %s28
      %34 = dma.hbm_to_vmem [thread:$0]  %s3, 512, %s29, [#allocation3], 128, 128, 8
    $region17: #{decoder_layer.6} parent=1 // pred_fallthru
      _
    // Predicated region
    $region18: #{decoder_layer.6} parent=1 // pred_check
      _
    $region19: #{decoder_layer.6} parent=1 // pred_check_branch
      %36 = sbr.rel (0) target = $region21
    $region20: #{decoder_layer.6} parent=1 // pred_region
      _
    $region21: #{decoder_layer.6} parent=1 // pred_fallthru
      _
    // Predicated region
    $region22: #{decoder_layer.6} parent=1 // pred_check
      _
    $region23: #{decoder_layer.6} parent=1 // pred_check_branch
      %38 = sbr.rel (0) target = $region25
    $region24: #{decoder_layer.6} parent=1 // pred_region
      %s40 = ssub.s32 512, 512
      %41 = vsyncadd [#allocation5], %s40
      %s42 = sshll.u32 [#allocation4], 4
      %s43 = int_to_ptr.vmem [resolvable:$true] %s42
      %48 = dma.hbm_to_vmem [thread:$0]  %s5, 512, %s43, [#allocation5], 128, 128, 8
    $region25: #{decoder_layer.6} parent=1 // pred_fallthru
      _
    // Predicated region
    $region26: #{decoder_layer.6} parent=1 // pred_check
      _
    $region27: #{decoder_layer.6} parent=1 // pred_check_branch
      %50 = sbr.rel (0) target = $region29
    $region28: #{decoder_layer.6} parent=1 // pred_region
      _
    $region29: #{decoder_layer.6} parent=1 // pred_fallthru
      _
    // Predicated region
    $region30: #{decoder_layer.6} parent=1 // pred_check
      _
    $region31: #{decoder_layer.6} parent=1 // pred_check_branch
      %52 = sbr.rel (0) target = $region33
    $region32: #{decoder_layer.6} parent=1 // pred_region
      %53 = dma.done [#allocation3], 512
    $region33: #{decoder_layer.6} parent=1 // pred_fallthru
      _
    // Predicated region
    $region34: #{decoder_layer.6} parent=1 // pred_check
      _
    $region35: #{decoder_layer.6} parent=1 // pred_check_branch
      %55 = sbr.rel (0) target = $region37
    $region36: #{decoder_layer.6} parent=1 // pred_region
      %56 = dma.done [#allocation5], 512
    $region37: #{decoder_layer.6} parent=1 // pred_fallthru
      _
    %v57 = vld [vmem:[%s0] sm:$0xff]
    %v58 = vld [vmem:[%s0 + $0x8] sm:$0xff]
    %v59 = vld [vmem:[%s1] sm:$0xff]
    %v60 = vld [vmem:[%s1 + $0x8] sm:$0xff]
    %v61 = vld [vmem:[%s1 + $0x10] sm:$0xff]
    %v62 = vld [vmem:[%s1 + $0x18] sm:$0xff]
    %v63 = vld [vmem:[%s2] sm:$0x1]
    %v65 = vlaneseq
    %v66 = vshrl.u32 %v65, 7
    %v67 = vsub.s32 0, %v66
    %v68 = vrot.slane %v63, %v67
    %vm70 = vcmask 261120
    %v72 = vsel %vm70, %v57, 0
    %v75 = vsel %vm70, %v58, 0
    %77 = vmatprep.subr.mxu0 0.0
    %78 = vmatpush1.msra.mxu0 0.0
    %79 = vmatprep.subr.mxu0 0.0
    %80 = vmatpush1.msra.mxu0 0.0
    %81 = vmatprep.subr.mxu0 0.0
    %82 = vmatpush1.msra.mxu0 0.0
    %83 = vmatprep.subr.mxu0 0.0
    %84 = vmatpush1.msra.mxu0 0.0
    %85 = vmatprep.subr.mxu0 0.0
    %86 = vmatpush1.msra.mxu0 0.0
    %87 = vmatprep.subr.mxu0 0.0
    %88 = vmatpush1.msra.mxu0 0.0
    %89 = vmatprep.subr.mxu0 0.0
    %90 = vmatpush1.msra.mxu0 0.0
    %91 = vmatprep.subr.mxu0 0.0
    %92 = vmatpush1.msra.mxu0 0.0
    %93 = vmatprep.subr.mxu0 0.0
    %94 = vmatpush1.msra.mxu0 0.0
    %95 = vmatprep.subr.mxu0 0.0
    %96 = vmatpush1.msra.mxu0 0.0
    %97 = vmatprep.subr.mxu0 0.0
    %98 = vmatpush1.msra.mxu0 0.0
    %99 = vmatprep.subr.mxu0 0.0
    %100 = vmatpush1.msra.mxu0 0.0
    %101 = vmatprep.subr.mxu0 0.0
    %102 = vmatpush1.msra.mxu0 %v62
    %103 = vmatprep.subr.mxu0 0.0
    %104 = vmatpush1.msra.mxu0 %v61
    %105 = vmatprep.subr.mxu0 0.0
    %106 = vmatpush1.msra.mxu0 %v60
    %107 = vmatprep.subr.mxu0 0.0
    %108 = vmatpush1.msra.mxu0 %v59
    %109 = vmatprep.subr.mxu0 0.0
    %110 = vmatpush2.msra.mxu0 0.0
    %111 = vmatprep.subr.mxu0 0.0
    %112 = vmatpush2.msra.mxu0 0.0
    %113 = vmatprep.subr.mxu0 0.0
    %114 = vmatpush2.msra.mxu0 0.0
    %115 = vmatprep.subr.mxu0 0.0
    %116 = vmatpush2.msra.mxu0 0.0
    %117 = vmatprep.subr.mxu0 0.0
    %118 = vmatpush2.msra.mxu0 0.0
    %119 = vmatprep.subr.mxu0 0.0
    %120 = vmatpush2.msra.mxu0 0.0
    %121 = vmatprep.subr.mxu0 0.0
    %122 = vmatpush2.msra.mxu0 0.0
    %123 = vmatprep.subr.mxu0 0.0
    %124 = vmatpush2.msra.mxu0 0.0
    %125 = vmatprep.subr.mxu0 0.0
    %126 = vmatpush2.msra.mxu0 0.0
    %127 = vmatprep.subr.mxu0 0.0
    %128 = vmatpush2.msra.mxu0 0.0
    %129 = vmatprep.subr.mxu0 0.0
    %130 = vmatpush2.msra.mxu0 0.0
    %131 = vmatprep.subr.mxu0 0.0
    %132 = vmatpush2.msra.mxu0 0.0
    %133 = vmatprep.subr.mxu0 0.0
    %134 = vmatpush2.msra.mxu0 0.0
    %135 = vmatprep.subr.mxu0 0.0
    %136 = vmatpush2.msra.mxu0 0.0
    %137 = vmatprep.subr.mxu0 0.0
    %138 = vmatpush2.msra.mxu0 0.0
    %139 = vmatprep.subr.mxu0 0.0
    %140 = vmatpush2.msra.mxu0 0.0
    %141 = vmatprep.mubr.f32.mxu0 0.0
    %142 = vmatmul.mubr.f32.gmra.mxu0 %v72
    %v143 = vpop.f32.mrf.mxu0
    %v144 = vadd.f32 %v68, %v143
    %v145 = vpop.f32.mrf.mxu0
    %146 = vmatprep.mubr.f32.mxu0 0.0
    %147 = vmatmul.mubr.f32.gmra.mxu0 %v75
    %v148 = vpop.f32.mrf.mxu0
    %v149 = vadd.f32 %v68, %v148
    %v150 = vpop.f32.mrf.mxu0
    %151 = vdwg.mxu0
    %v152 = vmul.f32 %v144, 0.35355338
    %v153 = vmul.f32 %v149, 0.35355338
    %154 = vst.msk [vmem:[%s7] sm:$0xff] %vm70, %v152
    %155 = vst.msk [vmem:[%s7 + $0x8] sm:$0xff] %vm70, %v153
    %v156 = vld [vmem:[#allocation2] sm:$0xff]
    %v157 = vld [vmem:[#allocation2 + $0x8] sm:$0xff]
    %v158 = vld [vmem:[#allocation2 + $0x10] sm:$0xff]
    %v159 = vld [vmem:[#allocation2 + $0x18] sm:$0xff]
    %v160 = vld [vmem:[%s4] sm:$0x1]
    %v162 = vlaneseq
    %v163 = vshrl.u32 %v162, 7
    %v164 = vsub.s32 0, %v163
    %v165 = vrot.slane %v160, %v164
    %167 = vmatprep.subr.mxu0 0.0
    %168 = vmatpush1.msra.mxu0 0.0
    %169 = vmatprep.subr.mxu0 0.0
    %170 = vmatpush1.msra.mxu0 0.0
    %171 = vmatprep.subr.mxu0 0.0
    %172 = vmatpush1.msra.mxu0 0.0
    %173 = vmatprep.subr.mxu0 0.0
    %174 = vmatpush1.msra.mxu0 0.0
    %175 = vmatprep.subr.mxu0 0.0
    %176 = vmatpush1.msra.mxu0 0.0
    %177 = vmatprep.subr.mxu0 0.0
    %178 = vmatpush1.msra.mxu0 0.0
    %179 = vmatprep.subr.mxu0 0.0
    %180 = vmatpush1.msra.mxu0 0.0
    %181 = vmatprep.subr.mxu0 0.0
    %182 = vmatpush1.msra.mxu0 0.0
    %183 = vmatprep.subr.mxu0 0.0
    %184 = vmatpush1.msra.mxu0 0.0
    %185 = vmatprep.subr.mxu0 0.0
    %186 = vmatpush1.msra.mxu0 0.0
    %187 = vmatprep.subr.mxu0 0.0
    %188 = vmatpush1.msra.mxu0 0.0
    %189 = vmatprep.subr.mxu0 0.0
    %190 = vmatpush1.msra.mxu0 0.0
    %191 = vmatprep.subr.mxu0 0.0
    %192 = vmatpush1.msra.mxu0 %v159
    %193 = vmatprep.subr.mxu0 0.0
    %194 = vmatpush1.msra.mxu0 %v158
    %195 = vmatprep.subr.mxu0 0.0
    %196 = vmatpush1.msra.mxu0 %v157
    %197 = vmatprep.subr.mxu0 0.0
    %198 = vmatpush1.msra.mxu0 %v156
    %199 = vmatprep.subr.mxu0 0.0
    %200 = vmatpush2.msra.mxu0 0.0
    %201 = vmatprep.subr.mxu0 0.0
    %202 = vmatpush2.msra.mxu0 0.0
    %203 = vmatprep.subr.mxu0 0.0
    %204 = vmatpush2.msra.mxu0 0.0
    %205 = vmatprep.subr.mxu0 0.0
    %206 = vmatpush2.msra.mxu0 0.0
    %207 = vmatprep.subr.mxu0 0.0
    %208 = vmatpush2.msra.mxu0 0.0
    %209 = vmatprep.subr.mxu0 0.0
    %210 = vmatpush2.msra.mxu0 0.0
    %211 = vmatprep.subr.mxu0 0.0
    %212 = vmatpush2.msra.mxu0 0.0
    %213 = vmatprep.subr.mxu0 0.0
    %214 = vmatpush2.msra.mxu0 0.0
    %215 = vmatprep.subr.mxu0 0.0
    %216 = vmatpush2.msra.mxu0 0.0
    %217 = vmatprep.subr.mxu0 0.0
    %218 = vmatpush2.msra.mxu0 0.0
    %219 = vmatprep.subr.mxu0 0.0
    %220 = vmatpush2.msra.mxu0 0.0
    %221 = vmatprep.subr.mxu0 0.0
    %222 = vmatpush2.msra.mxu0 0.0
    %223 = vmatprep.subr.mxu0 0.0
    %224 = vmatpush2.msra.mxu0 0.0
    %225 = vmatprep.subr.mxu0 0.0
    %226 = vmatpush2.msra.mxu0 0.0
    %227 = vmatprep.subr.mxu0 0.0
    %228 = vmatpush2.msra.mxu0 0.0
    %229 = vmatprep.subr.mxu0 0.0
    %230 = vmatpush2.msra.mxu0 0.0
    %231 = vmatprep.mubr.f32.mxu0 0.0
    %232 = vmatmul.mubr.f32.gmra.mxu0 %v72
    %v233 = vpop.f32.mrf.mxu0
    %v234 = vadd.f32 %v165, %v233
    %v235 = vpop.f32.mrf.mxu0
    %236 = vmatprep.mubr.f32.mxu0 0.0
    %237 = vmatmul.mubr.f32.gmra.mxu0 %v75
    %v238 = vpop.f32.mrf.mxu0
    %v239 = vadd.f32 %v165, %v238
    %v240 = vpop.f32.mrf.mxu0
    %241 = vdwg.mxu0
    %242 = vst.msk [vmem:[%s8] sm:$0xff] %vm70, %v234
    %243 = vst.msk [vmem:[%s8 + $0x8] sm:$0xff] %vm70, %v239
    %v244 = vld [vmem:[#allocation4] sm:$0xff]
    %v245 = vld [vmem:[#allocation4 + $0x8] sm:$0xff]
    %v246 = vld [vmem:[#allocation4 + $0x10] sm:$0xff]
    %v247 = vld [vmem:[#allocation4 + $0x18] sm:$0xff]
    %v248 = vld [vmem:[%s6] sm:$0x1]
    %v250 = vlaneseq
    %v251 = vshrl.u32 %v250, 7
    %v252 = vsub.s32 0, %v251
    %v253 = vrot.slane %v248, %v252
    %255 = vmatprep.subr.mxu0 0.0
    %256 = vmatpush1.msra.mxu0 0.0
    %257 = vmatprep.subr.mxu0 0.0
    %258 = vmatpush1.msra.mxu0 0.0
    %259 = vmatprep.subr.mxu0 0.0
    %260 = vmatpush1.msra.mxu0 0.0
    %261 = vmatprep.subr.mxu0 0.0
    %262 = vmatpush1.msra.mxu0 0.0
    %263 = vmatprep.subr.mxu0 0.0
    %264 = vmatpush1.msra.mxu0 0.0
    %265 = vmatprep.subr.mxu0 0.0
    %266 = vmatpush1.msra.mxu0 0.0
    %267 = vmatprep.subr.mxu0 0.0
    %268 = vmatpush1.msra.mxu0 0.0
    %269 = vmatprep.subr.mxu0 0.0
    %270 = vmatpush1.msra.mxu0 0.0
    %271 = vmatprep.subr.mxu0 0.0
    %272 = vmatpush1.msra.mxu0 0.0
    %273 = vmatprep.subr.mxu0 0.0
    %274 = vmatpush1.msra.mxu0 0.0
    %275 = vmatprep.subr.mxu0 0.0
    %276 = vmatpush1.msra.mxu0 0.0
    %277 = vmatprep.subr.mxu0 0.0
    %278 = vmatpush1.msra.mxu0 0.0
    %279 = vmatprep.subr.mxu0 0.0
    %280 = vmatpush1.msra.mxu0 %v247
    %281 = vmatprep.subr.mxu0 0.0
    %282 = vmatpush1.msra.mxu0 %v246
    %283 = vmatprep.subr.mxu0 0.0
    %284 = vmatpush1.msra.mxu0 %v245
    %285 = vmatprep.subr.mxu0 0.0
    %286 = vmatpush1.msra.mxu0 %v244
    %287 = vmatprep.subr.mxu0 0.0
    %288 = vmatpush2.msra.mxu0 0.0
    %289 = vmatprep.subr.mxu0 0.0
    %290 = vmatpush2.msra.mxu0 0.0
    %291 = vmatprep.subr.mxu0 0.0
    %292 = vmatpush2.msra.mxu0 0.0
    %293 = vmatprep.subr.mxu0 0.0
    %294 = vmatpush2.msra.mxu0 0.0
    %295 = vmatprep.subr.mxu0 0.0
    %296 = vmatpush2.msra.mxu0 0.0
    %297 = vmatprep.subr.mxu0 0.0
    %298 = vmatpush2.msra.mxu0 0.0
    %299 = vmatprep.subr.mxu0 0.0
    %300 = vmatpush2.msra.mxu0 0.0
    %301 = vmatprep.subr.mxu0 0.0
    %302 = vmatpush2.msra.mxu0 0.0
    %303 = vmatprep.subr.mxu0 0.0
    %304 = vmatpush2.msra.mxu0 0.0
    %305 = vmatprep.subr.mxu0 0.0
    %306 = vmatpush2.msra.mxu0 0.0
    %307 = vmatprep.subr.mxu0 0.0
    %308 = vmatpush2.msra.mxu0 0.0
    %309 = vmatprep.subr.mxu0 0.0
    %310 = vmatpush2.msra.mxu0 0.0
    %311 = vmatprep.subr.mxu0 0.0
    %312 = vmatpush2.msra.mxu0 0.0
    %313 = vmatprep.subr.mxu0 0.0
    %314 = vmatpush2.msra.mxu0 0.0
    %315 = vmatprep.subr.mxu0 0.0
    %316 = vmatpush2.msra.mxu0 0.0
    %317 = vmatprep.subr.mxu0 0.0
    %318 = vmatpush2.msra.mxu0 0.0
    %319 = vmatprep.mubr.f32.mxu0 0.0
    %320 = vmatmul.mubr.f32.gmra.mxu0 %v72
    %v321 = vpop.f32.mrf.mxu0
    %v322 = vadd.f32 %v253, %v321
    %v323 = vpop.f32.mrf.mxu0
    %324 = vmatprep.mubr.f32.mxu0 0.0
    %325 = vmatmul.mubr.f32.gmra.mxu0 %v75
    %v326 = vpop.f32.mrf.mxu0
    %v327 = vadd.f32 %v253, %v326
    %v328 = vpop.f32.mrf.mxu0
    %329 = vdwg.mxu0
    %330 = vst.msk [vmem:[%s9] sm:$0xff] %vm70, %v322
    %331 = vst.msk [vmem:[%s9 + $0x8] sm:$0xff] %vm70, %v327
    // Predicated region
    $region38: #{decoder_layer.6} parent=1 // pred_check
      _
    $region39: #{decoder_layer.6} parent=1 // pred_check_branch
      %333 = sbr.rel (0) target = $region41
    $region40: #{decoder_layer.6} parent=1 // pred_region
      _
    $region41: #{decoder_layer.6} parent=1 // pred_fallthru
      _
    // Predicated region
    $region42: #{decoder_layer.6} parent=1 // pred_check
      _
    $region43: #{decoder_layer.6} parent=1 // pred_check_branch
      %335 = sbr.rel (0) target = $region45
    $region44: #{decoder_layer.6} parent=1 // pred_region
      _
    $region45: #{decoder_layer.6} parent=1 // pred_fallthru
      _
    // Predicated region
    $region46: #{decoder_layer.6} parent=1 // pred_check
      _
    $region47: #{decoder_layer.6} parent=1 // pred_check_branch
      %337 = sbr.rel (0) target = $region49
    $region48: #{decoder_layer.6} parent=1 // pred_region
      _
    $region49: #{decoder_layer.6} parent=1 // pred_fallthru
      _
    // Predicated region
    $region50: #{decoder_layer.6} parent=1 // pred_check
      _
    $region51: #{decoder_layer.6} parent=1 // pred_check_branch
      %339 = sbr.rel (0) target = $region53
    $region52: #{decoder_layer.6} parent=1 // pred_region
      _
    $region53: #{decoder_layer.6} parent=1 // pred_fallthru
      _
    // Predicated region
    $region54: #{decoder_layer.6} parent=1 // pred_check
      _
    $region55: #{decoder_layer.6} parent=1 // pred_check_branch
      %341 = sbr.rel (0) target = $region57
    $region56: #{decoder_layer.6} parent=1 // pred_region
      _
    $region57: #{decoder_layer.6} parent=1 // pred_fallthru
      _
    // Predicated region
    $region58: #{decoder_layer.6} parent=1 // pred_check
      _
    $region59: #{decoder_layer.6} parent=1 // pred_check_branch
      %343 = sbr.rel (0) target = $region61
    $region60: #{decoder_layer.6} parent=1 // pred_region
      _
    $region61: #{decoder_layer.6} parent=1 // pred_fallthru
      _
    %344 = vsyncpa [#allocation3], 1
    %345 = vsyncpa [#allocation5], 1

// kernel: decoder_layer.8
$region0: #{decoder_layer.8}
  #allocation0 [shape = 'u32[]', space=smem, size = 0x4, offset = 0x4, fixed_abs, tag = 'smem constant byte address 0x4 - core index']
  #allocation1 [shape = 'u32[144,128]{1,0:T(1,128)}', space=vmem, size = 0x12000, scoped, tag = 'internal scratch']
  %s0 = inlined_call_operand.vmem [shape: f32[16,32], index: 0, kind: input, shape index: {}]
  %s1 = inlined_call_operand.vmem [shape: f32[32,32], index: 1, kind: input, shape index: {}]
  %s2 = inlined_call_operand.vmem [shape: f32[1,32], index: 2, kind: input, shape index: {}]
  %s3 = inlined_call_operand.vmem [shape: f32[16,32], index: 3, kind: output, shape index: {}]
  %s4 = sld [smem:[#allocation0]]
  $region22: #{decoder_layer.8} parent=0
    _
  %s6 = ssub.s32 1, %s4
  %s7 = scalar_select 0, %s6, %s4
  // Predicated region
  $region2: #{decoder_layer.8} parent=0 // pred_check
    _
  $region3: #{decoder_layer.8} parent=0 // pred_check_branch
    %9 = sbr.rel (0) target = $region5
  $region4: #{decoder_layer.8} parent=0 // pred_region
    _
  $region5: #{decoder_layer.8} parent=0 // pred_fallthru
    _
  // Predicated region
  $region6: #{decoder_layer.8} parent=0 // pred_check
    _
  $region7: #{decoder_layer.8} parent=0 // pred_check_branch
    %11 = sbr.rel (0) target = $region9
  $region8: #{decoder_layer.8} parent=0 // pred_region
    _
  $region9: #{decoder_layer.8} parent=0 // pred_fallthru
    _
  // Predicated region
  $region10: #{decoder_layer.8} parent=0 // pred_check
    _
  $region11: #{decoder_layer.8} parent=0 // pred_check_branch
    %13 = sbr.rel (0) target = $region13
  $region12: #{decoder_layer.8} parent=0 // pred_region
    _
  $region13: #{decoder_layer.8} parent=0 // pred_fallthru
    _
  %v14 = vld [vmem:[%s0] sm:$0xff]
  %v15 = vld [vmem:[%s0 + $0x8] sm:$0xff]
  %v16 = vld [vmem:[%s1] sm:$0xff]
  %v17 = vld [vmem:[%s1 + $0x8] sm:$0xff]
  %v18 = vld [vmem:[%s1 + $0x10] sm:$0xff]
  %v19 = vld [vmem:[%s1 + $0x18] sm:$0xff]
  %v20 = vld [vmem:[%s2] sm:$0x1]
  %v22 = vlaneseq
  %v23 = vshrl.u32 %v22, 7
  %v24 = vsub.s32 0, %v23
  %v25 = vrot.slane %v20, %v24
  %vm27 = vcmask 261120
  %v29 = vsel %vm27, %v14, 0
  %v32 = vsel %vm27, %v15, 0
  %34 = vmatprep.subr.mxu0 0.0
  %35 = vmatpush1.msra.mxu0 0.0
  %36 = vmatprep.subr.mxu0 0.0
  %37 = vmatpush1.msra.mxu0 0.0
  %38 = vmatprep.subr.mxu0 0.0
  %39 = vmatpush1.msra.mxu0 0.0
  %40 = vmatprep.subr.mxu0 0.0
  %41 = vmatpush1.msra.mxu0 0.0
  %42 = vmatprep.subr.mxu0 0.0
  %43 = vmatpush1.msra.mxu0 0.0
  %44 = vmatprep.subr.mxu0 0.0
  %45 = vmatpush1.msra.mxu0 0.0
  %46 = vmatprep.subr.mxu0 0.0
  %47 = vmatpush1.msra.mxu0 0.0
  %48 = vmatprep.subr.mxu0 0.0
  %49 = vmatpush1.msra.mxu0 0.0
  %50 = vmatprep.subr.mxu0 0.0
  %51 = vmatpush1.msra.mxu0 0.0
  %52 = vmatprep.subr.mxu0 0.0
  %53 = vmatpush1.msra.mxu0 0.0
  %54 = vmatprep.subr.mxu0 0.0
  %55 = vmatpush1.msra.mxu0 0.0
  %56 = vmatprep.subr.mxu0 0.0
  %57 = vmatpush1.msra.mxu0 0.0
  %58 = vmatprep.subr.mxu0 0.0
  %59 = vmatpush1.msra.mxu0 %v19
  %60 = vmatprep.subr.mxu0 0.0
  %61 = vmatpush1.msra.mxu0 %v18
  %62 = vmatprep.subr.mxu0 0.0
  %63 = vmatpush1.msra.mxu0 %v17
  %64 = vmatprep.subr.mxu0 0.0
  %65 = vmatpush1.msra.mxu0 %v16
  %66 = vmatprep.subr.mxu0 0.0
  %67 = vmatpush2.msra.mxu0 0.0
  %68 = vmatprep.subr.mxu0 0.0
  %69 = vmatpush2.msra.mxu0 0.0
  %70 = vmatprep.subr.mxu0 0.0
  %71 = vmatpush2.msra.mxu0 0.0
  %72 = vmatprep.subr.mxu0 0.0
  %73 = vmatpush2.msra.mxu0 0.0
  %74 = vmatprep.subr.mxu0 0.0
  %75 = vmatpush2.msra.mxu0 0.0
  %76 = vmatprep.subr.mxu0 0.0
  %77 = vmatpush2.msra.mxu0 0.0
  %78 = vmatprep.subr.mxu0 0.0
  %79 = vmatpush2.msra.mxu0 0.0
  %80 = vmatprep.subr.mxu0 0.0
  %81 = vmatpush2.msra.mxu0 0.0
  %82 = vmatprep.subr.mxu0 0.0
  %83 = vmatpush2.msra.mxu0 0.0
  %84 = vmatprep.subr.mxu0 0.0
  %85 = vmatpush2.msra.mxu0 0.0
  %86 = vmatprep.subr.mxu0 0.0
  %87 = vmatpush2.msra.mxu0 0.0
  %88 = vmatprep.subr.mxu0 0.0
  %89 = vmatpush2.msra.mxu0 0.0
  %90 = vmatprep.subr.mxu0 0.0
  %91 = vmatpush2.msra.mxu0 0.0
  %92 = vmatprep.subr.mxu0 0.0
  %93 = vmatpush2.msra.mxu0 0.0
  %94 = vmatprep.subr.mxu0 0.0
  %95 = vmatpush2.msra.mxu0 0.0
  %96 = vmatprep.subr.mxu0 0.0
  %97 = vmatpush2.msra.mxu0 0.0
  %98 = vmatprep.mubr.f32.mxu0 0.0
  %99 = vmatmul.mubr.f32.gmra.mxu0 %v29
  %v100 = vpop.f32.mrf.mxu0
  %v101 = vadd.f32 %v25, %v100
  %v102 = vpop.f32.mrf.mxu0
  %103 = vmatprep.mubr.f32.mxu0 0.0
  %104 = vmatmul.mubr.f32.gmra.mxu0 %v32
  %v105 = vpop.f32.mrf.mxu0
  %v106 = vadd.f32 %v25, %v105
  %v107 = vpop.f32.mrf.mxu0
  %108 = vdwg.mxu0
  %v109 = vmul.f32 %v101, 0.35355338
  %v110 = vmul.f32 %v106, 0.35355338
  %111 = vst.msk [vmem:[%s3] sm:$0xff] %vm27, %v109
  %112 = vst.msk [vmem:[%s3 + $0x8] sm:$0xff] %vm27, %v110
  // Predicated region
  $region14: #{decoder_layer.8} parent=0 // pred_check
    _
  $region15: #{decoder_layer.8} parent=0 // pred_check_branch
    %114 = sbr.rel (0) target = $region17
  $region16: #{decoder_layer.8} parent=0 // pred_region
    _
  $region17: #{decoder_layer.8} parent=0 // pred_fallthru
    _
  // Predicated region
  $region18: #{decoder_layer.8} parent=0 // pred_check
    _
  $region19: #{decoder_layer.8} parent=0 // pred_check_branch
    %116 = sbr.rel (0) target = $region21
  $region20: #{decoder_layer.8} parent=0 // pred_region
    _
  $region21: #{decoder_layer.8} parent=0 // pred_fallthru
    _

// kernel: decoder_layer.9
$region0: #{decoder_layer.9}
  #allocation0 [shape = 'u32[]', space=smem, size = 0x4, offset = 0x4, fixed_abs, tag = 'smem constant byte address 0x4 - core index']
  #allocation1 [shape = 'u32[144,128]{1,0:T(1,128)}', space=vmem, size = 0x12000, scoped, tag = 'internal scratch']
  %s0 = inlined_call_operand.vmem [shape: f32[16,32], index: 0, kind: input, shape index: {}]
  %s1 = inlined_call_operand.vmem [shape: f32[32,32], index: 1, kind: input, shape index: {}]
  %s2 = inlined_call_operand.vmem [shape: f32[1,32], index: 2, kind: input, shape index: {}]
  %s3 = inlined_call_operand.vmem [shape: f32[32,32], index: 3, kind: input, shape index: {}]
  %s4 = inlined_call_operand.vmem [shape: f32[1,32], index: 4, kind: input, shape index: {}]
  %s5 = inlined_call_operand.vmem [shape: f32[16,32], index: 5, kind: output, shape index: {0}]
  %s6 = inlined_call_operand.vmem [shape: f32[16,32], index: 6, kind: output, shape index: {1}]
  %7 = xla_tuple %s5, %s6
  %s8 = sld [smem:[#allocation0]]
  $region38: #{decoder_layer.9} parent=0
    _
  %s10 = ssub.s32 1, %s8
  %s11 = scalar_select 0, %s10, %s8
  // Predicated region
  $region2: #{decoder_layer.9} parent=0 // pred_check
    _
  $region3: #{decoder_layer.9} parent=0 // pred_check_branch
    %13 = sbr.rel (0) target = $region5
  $region4: #{decoder_layer.9} parent=0 // pred_region
    _
  $region5: #{decoder_layer.9} parent=0 // pred_fallthru
    _
  // Predicated region
  $region6: #{decoder_layer.9} parent=0 // pred_check
    _
  $region7: #{decoder_layer.9} parent=0 // pred_check_branch
    %15 = sbr.rel (0) target = $region9
  $region8: #{decoder_layer.9} parent=0 // pred_region
    _
  $region9: #{decoder_layer.9} parent=0 // pred_fallthru
    _
  // Predicated region
  $region10: #{decoder_layer.9} parent=0 // pred_check
    _
  $region11: #{decoder_layer.9} parent=0 // pred_check_branch
    %17 = sbr.rel (0) target = $region13
  $region12: #{decoder_layer.9} parent=0 // pred_region
    _
  $region13: #{decoder_layer.9} parent=0 // pred_fallthru
    _
  // Predicated region
  $region14: #{decoder_layer.9} parent=0 // pred_check
    _
  $region15: #{decoder_layer.9} parent=0 // pred_check_branch
    %19 = sbr.rel (0) target = $region17
  $region16: #{decoder_layer.9} parent=0 // pred_region
    _
  $region17: #{decoder_layer.9} parent=0 // pred_fallthru
    _
  // Predicated region
  $region18: #{decoder_layer.9} parent=0 // pred_check
    _
  $region19: #{decoder_layer.9} parent=0 // pred_check_branch
    %21 = sbr.rel (0) target = $region21
  $region20: #{decoder_layer.9} parent=0 // pred_region
    _
  $region21: #{decoder_layer.9} parent=0 // pred_fallthru
    _
  %v22 = vld [vmem:[%s0] sm:$0xff]
  %v23 = vld [vmem:[%s0 + $0x8] sm:$0xff]
  %v24 = vld [vmem:[%s1] sm:$0xff]
  %v25 = vld [vmem:[%s1 + $0x8] sm:$0xff]
  %v26 = vld [vmem:[%s1 + $0x10] sm:$0xff]
  %v27 = vld [vmem:[%s1 + $0x18] sm:$0xff]
  %v28 = vld [vmem:[%s2] sm:$0x1]
  %v30 = vlaneseq
  %v31 = vshrl.u32 %v30, 7
  %v32 = vsub.s32 0, %v31
  %v33 = vrot.slane %v28, %v32
  %vm35 = vcmask 261120
  %v37 = vsel %vm35, %v22, 0
  %v40 = vsel %vm35, %v23, 0
  %42 = vmatprep.subr.mxu0 0.0
  %43 = vmatpush1.msra.mxu0 0.0
  %44 = vmatprep.subr.mxu0 0.0
  %45 = vmatpush1.msra.mxu0 0.0
  %46 = vmatprep.subr.mxu0 0.0
  %47 = vmatpush1.msra.mxu0 0.0
  %48 = vmatprep.subr.mxu0 0.0
  %49 = vmatpush1.msra.mxu0 0.0
  %50 = vmatprep.subr.mxu0 0.0
  %51 = vmatpush1.msra.mxu0 0.0
  %52 = vmatprep.subr.mxu0 0.0
  %53 = vmatpush1.msra.mxu0 0.0
  %54 = vmatprep.subr.mxu0 0.0
  %55 = vmatpush1.msra.mxu0 0.0
  %56 = vmatprep.subr.mxu0 0.0
  %57 = vmatpush1.msra.mxu0 0.0
  %58 = vmatprep.subr.mxu0 0.0
  %59 = vmatpush1.msra.mxu0 0.0
  %60 = vmatprep.subr.mxu0 0.0
  %61 = vmatpush1.msra.mxu0 0.0
  %62 = vmatprep.subr.mxu0 0.0
  %63 = vmatpush1.msra.mxu0 0.0
  %64 = vmatprep.subr.mxu0 0.0
  %65 = vmatpush1.msra.mxu0 0.0
  %66 = vmatprep.subr.mxu0 0.0
  %67 = vmatpush1.msra.mxu0 %v27
  %68 = vmatprep.subr.mxu0 0.0
  %69 = vmatpush1.msra.mxu0 %v26
  %70 = vmatprep.subr.mxu0 0.0
  %71 = vmatpush1.msra.mxu0 %v25
  %72 = vmatprep.subr.mxu0 0.0
  %73 = vmatpush1.msra.mxu0 %v24
  %74 = vmatprep.subr.mxu0 0.0
  %75 = vmatpush2.msra.mxu0 0.0
  %76 = vmatprep.subr.mxu0 0.0
  %77 = vmatpush2.msra.mxu0 0.0
  %78 = vmatprep.subr.mxu0 0.0
  %79 = vmatpush2.msra.mxu0 0.0
  %80 = vmatprep.subr.mxu0 0.0
  %81 = vmatpush2.msra.mxu0 0.0
  %82 = vmatprep.subr.mxu0 0.0
  %83 = vmatpush2.msra.mxu0 0.0
  %84 = vmatprep.subr.mxu0 0.0
  %85 = vmatpush2.msra.mxu0 0.0
  %86 = vmatprep.subr.mxu0 0.0
  %87 = vmatpush2.msra.mxu0 0.0
  %88 = vmatprep.subr.mxu0 0.0
  %89 = vmatpush2.msra.mxu0 0.0
  %90 = vmatprep.subr.mxu0 0.0
  %91 = vmatpush2.msra.mxu0 0.0
  %92 = vmatprep.subr.mxu0 0.0
  %93 = vmatpush2.msra.mxu0 0.0
  %94 = vmatprep.subr.mxu0 0.0
  %95 = vmatpush2.msra.mxu0 0.0
  %96 = vmatprep.subr.mxu0 0.0
  %97 = vmatpush2.msra.mxu0 0.0
  %98 = vmatprep.subr.mxu0 0.0
  %99 = vmatpush2.msra.mxu0 0.0
  %100 = vmatprep.subr.mxu0 0.0
  %101 = vmatpush2.msra.mxu0 0.0
  %102 = vmatprep.subr.mxu0 0.0
  %103 = vmatpush2.msra.mxu0 0.0
  %104 = vmatprep.subr.mxu0 0.0
  %105 = vmatpush2.msra.mxu0 0.0
  %106 = vmatprep.mubr.f32.mxu0 0.0
  %107 = vmatmul.mubr.f32.gmra.mxu0 %v37
  %v108 = vpop.f32.mrf.mxu0
  %v109 = vadd.f32 %v33, %v108
  %v110 = vpop.f32.mrf.mxu0
  %111 = vmatprep.mubr.f32.mxu0 0.0
  %112 = vmatmul.mubr.f32.gmra.mxu0 %v40
  %v113 = vpop.f32.mrf.mxu0
  %v114 = vadd.f32 %v33, %v113
  %v115 = vpop.f32.mrf.mxu0
  %116 = vdwg.mxu0
  %117 = vst.msk [vmem:[%s5] sm:$0xff] %vm35, %v109
  %118 = vst.msk [vmem:[%s5 + $0x8] sm:$0xff] %vm35, %v114
  %v119 = vld [vmem:[%s3] sm:$0xff]
  %v120 = vld [vmem:[%s3 + $0x8] sm:$0xff]
  %v121 = vld [vmem:[%s3 + $0x10] sm:$0xff]
  %v122 = vld [vmem:[%s3 + $0x18] sm:$0xff]
  %v123 = vld [vmem:[%s4] sm:$0x1]
  %v125 = vlaneseq
  %v126 = vshrl.u32 %v125, 7
  %v127 = vsub.s32 0, %v126
  %v128 = vrot.slane %v123, %v127
  %130 = vmatprep.subr.mxu0 0.0
  %131 = vmatpush1.msra.mxu0 0.0
  %132 = vmatprep.subr.mxu0 0.0
  %133 = vmatpush1.msra.mxu0 0.0
  %134 = vmatprep.subr.mxu0 0.0
  %135 = vmatpush1.msra.mxu0 0.0
  %136 = vmatprep.subr.mxu0 0.0
  %137 = vmatpush1.msra.mxu0 0.0
  %138 = vmatprep.subr.mxu0 0.0
  %139 = vmatpush1.msra.mxu0 0.0
  %140 = vmatprep.subr.mxu0 0.0
  %141 = vmatpush1.msra.mxu0 0.0
  %142 = vmatprep.subr.mxu0 0.0
  %143 = vmatpush1.msra.mxu0 0.0
  %144 = vmatprep.subr.mxu0 0.0
  %145 = vmatpush1.msra.mxu0 0.0
  %146 = vmatprep.subr.mxu0 0.0
  %147 = vmatpush1.msra.mxu0 0.0
  %148 = vmatprep.subr.mxu0 0.0
  %149 = vmatpush1.msra.mxu0 0.0
  %150 = vmatprep.subr.mxu0 0.0
  %151 = vmatpush1.msra.mxu0 0.0
  %152 = vmatprep.subr.mxu0 0.0
  %153 = vmatpush1.msra.mxu0 0.0
  %154 = vmatprep.subr.mxu0 0.0
  %155 = vmatpush1.msra.mxu0 %v122
  %156 = vmatprep.subr.mxu0 0.0
  %157 = vmatpush1.msra.mxu0 %v121
  %158 = vmatprep.subr.mxu0 0.0
  %159 = vmatpush1.msra.mxu0 %v120
  %160 = vmatprep.subr.mxu0 0.0
  %161 = vmatpush1.msra.mxu0 %v119
  %162 = vmatprep.subr.mxu0 0.0
  %163 = vmatpush2.msra.mxu0 0.0
  %164 = vmatprep.subr.mxu0 0.0
  %165 = vmatpush2.msra.mxu0 0.0
  %166 = vmatprep.subr.mxu0 0.0
  %167 = vmatpush2.msra.mxu0 0.0
  %168 = vmatprep.subr.mxu0 0.0
  %169 = vmatpush2.msra.mxu0 0.0
  %170 = vmatprep.subr.mxu0 0.0
  %171 = vmatpush2.msra.mxu0 0.0
  %172 = vmatprep.subr.mxu0 0.0
  %173 = vmatpush2.msra.mxu0 0.0
  %174 = vmatprep.subr.mxu0 0.0
  %175 = vmatpush2.msra.mxu0 0.0
  %176 = vmatprep.subr.mxu0 0.0
  %177 = vmatpush2.msra.mxu0 0.0
  %178 = vmatprep.subr.mxu0 0.0
  %179 = vmatpush2.msra.mxu0 0.0
  %180 = vmatprep.subr.mxu0 0.0
  %181 = vmatpush2.msra.mxu0 0.0
  %182 = vmatprep.subr.mxu0 0.0
  %183 = vmatpush2.msra.mxu0 0.0
  %184 = vmatprep.subr.mxu0 0.0
  %185 = vmatpush2.msra.mxu0 0.0
  %186 = vmatprep.subr.mxu0 0.0
  %187 = vmatpush2.msra.mxu0 0.0
  %188 = vmatprep.subr.mxu0 0.0
  %189 = vmatpush2.msra.mxu0 0.0
  %190 = vmatprep.subr.mxu0 0.0
  %191 = vmatpush2.msra.mxu0 0.0
  %192 = vmatprep.subr.mxu0 0.0
  %193 = vmatpush2.msra.mxu0 0.0
  %194 = vmatprep.mubr.f32.mxu0 0.0
  %195 = vmatmul.mubr.f32.gmra.mxu0 %v37
  %v196 = vpop.f32.mrf.mxu0
  %v197 = vadd.f32 %v128, %v196
  %v198 = vpop.f32.mrf.mxu0
  %199 = vmatprep.mubr.f32.mxu0 0.0
  %200 = vmatmul.mubr.f32.gmra.mxu0 %v40
  %v201 = vpop.f32.mrf.mxu0
  %v202 = vadd.f32 %v128, %v201
  %v203 = vpop.f32.mrf.mxu0
  %204 = vdwg.mxu0
  %205 = vst.msk [vmem:[%s6] sm:$0xff] %vm35, %v197
  %206 = vst.msk [vmem:[%s6 + $0x8] sm:$0xff] %vm35, %v202
  // Predicated region
  $region22: #{decoder_layer.9} parent=0 // pred_check
    _
  $region23: #{decoder_layer.9} parent=0 // pred_check_branch
    %208 = sbr.rel (0) target = $region25
  $region24: #{decoder_layer.9} parent=0 // pred_region
    _
  $region25: #{decoder_layer.9} parent=0 // pred_fallthru
    _
  // Predicated region
  $region26: #{decoder_layer.9} parent=0 // pred_check
    _
  $region27: #{decoder_layer.9} parent=0 // pred_check_branch
    %210 = sbr.rel (0) target = $region29
  $region28: #{decoder_layer.9} parent=0 // pred_region
    _
  $region29: #{decoder_layer.9} parent=0 // pred_fallthru
    _
  // Predicated region
  $region30: #{decoder_layer.9} parent=0 // pred_check
    _
  $region31: #{decoder_layer.9} parent=0 // pred_check_branch
    %212 = sbr.rel (0) target = $region33
  $region32: #{decoder_layer.9} parent=0 // pred_region
    _
  $region33: #{decoder_layer.9} parent=0 // pred_fallthru
    _
  // Predicated region
  $region34: #{decoder_layer.9} parent=0 // pred_check
    _
  $region35: #{decoder_layer.9} parent=0 // pred_check_branch
    %214 = sbr.rel (0) target = $region37
  $region36: #{decoder_layer.9} parent=0 // pred_region
    _
  $region37: #{decoder_layer.9} parent=0 // pred_fallthru
    _

// kernel: decoder_layer.7
$region0: #{decoder_layer.7}
  #allocation0 [shape = 'u32[]', space=smem, size = 0x4, offset = 0x4, fixed_abs, tag = 'smem constant byte address 0x4 - core index']
  #allocation1 [shape = 'u32[144,128]{1,0:T(1,128)}', space=vmem, size = 0x12000, scoped, tag = 'internal scratch']
  #allocation2 [shape = 'f32[4,8,1]{2,1,0:T(8,128)}', space=vmem, size = 0x4000, scoped, tag = 'scratch operand']
  #allocation3 [shape = 'f32[4,8,1]{2,1,0:T(8,128)}', space=vmem, size = 0x4000, scoped, tag = 'scratch operand']
  #allocation4 [shape = 'f32[4,8,8]{2,1,0:T(8,128)}', space=vmem, size = 0x4000, scoped, tag = 'scratch operand']
  %s0 = inlined_call_operand.vmem [shape: f32[2,8,32], index: 0, kind: input, shape index: {}]
  %s1 = inlined_call_operand.vmem [shape: f32[2,4,8,8], index: 1, kind: input, shape index: {}]
  %s2 = inlined_call_operand.vmem [shape: f32[2,4,8,8], index: 2, kind: input, shape index: {}]
  %s3 = inlined_call_operand.vmem [shape: f32[2,4,8,8], index: 3, kind: input, shape index: {}]
  %s4 = inlined_call_operand.vmem [shape: f32[4,8,32], index: 4, kind: input, shape index: {}]
  %s5 = inlined_call_operand.vmem [shape: f32[1,32], index: 5, kind: input, shape index: {}]
  %s6 = inlined_call_operand.vmem [shape: f32[1,32], index: 6, kind: input, shape index: {}]
  %s7 = inlined_call_operand.vmem [shape: f32[1,32], index: 7, kind: input, shape index: {}]
  %s8 = inlined_call_operand.vmem [shape: f32[2,8,32], index: 8, kind: output, shape index: {}]
  %s9 = sld [smem:[#allocation0]]
  $region77: #{decoder_layer.7} parent=0
    _
  %s11 = ssub.s32 1, %s9
  %s12 = scalar_select 0, %s11, %s9
  loop: start=0, step=1, limit=4
  $region2: #{decoder_layer.7} parent=0 // loop_pre_header
    _
  $region3: #{decoder_layer.7} parent=0 // loop_header
    %s14 = sphi 0, %s18
    %p15 = scmp.ge.s32.totalorder %s14, 4
    %s21 = sphi 0, %s40
    %s22 = sphi 0, %s36
    %s23 = sphi 0, %s32
    %s24 = sphi 0, %s21
    %s25 = sphi 0, %s22
    %s26 = sphi 0, %s23
    %s27 = sphi 0, %s24
    %s28 = sphi 0, %s25
    %s29 = sphi 0, %s26
    %s45 = sphi 0, %s47
    %s48 = sphi 0, %s45
    %s49 = sphi 0, %s48
    %s65 = sphi 0, %s49
    %s73 = sphi 0, %s75
    %s76 = sphi 0, %s73
    %s77 = sphi 0, %s76
    %s93 = sphi 0, %s77
    %s101 = sphi 0, %s103
    %s104 = sphi 0, %s101
    %s105 = sphi 0, %s104
    %s121 = sphi 0, %s105
    %s129 = sphi 0, %s131
    %s132 = sphi 0, %s129
    %s133 = sphi 0, %s132
    %s149 = sphi 0, %s133
    %s153 = sphi 0, %s153
    %s155 = sphi 0, %s153
    %s156 = sphi 0, %s155
    %s170 = sphi 0, %s156
    %s174 = sphi 0, %s174
    %s176 = sphi 0, %s174
    %s177 = sphi 0, %s176
    %s191 = sphi 0, %s177
    %s195 = sphi 0, %s195
    %s197 = sphi 0, %s195
    %s198 = sphi 0, %s197
    %s212 = sphi 0, %s198
    %s216 = sphi 0, %s216
    %s218 = sphi 0, %s216
    %s219 = sphi 0, %s218
    %s233 = sphi 0, %s219
    %s241 = sphi 0, %s243
    %s244 = sphi 0, %s241
    %s245 = sphi 0, %s244
    %s261 = sphi 0, %s245
  $region4: #{decoder_layer.7} parent=0 // loop_header_branch
    %17 = sbr.rel (%p15) target = $region8
  $region5: #{decoder_layer.7} parent=0 // loop_body
    %s19 = ssub.s32 %s14, 1
    %s20 = ssub.s32 %s14, 2
    %s30 = sadd.s32 1, %s23
    %p31 = scmp.ge.s32.totalorder %s30, 1
    %s32 = scalar_select %p31, 0, %s30
    %s33 = sadd.s32 1, %s22
    %s34 = scalar_select %p31, %s33, %s22
    %p35 = scmp.ge.s32.totalorder %s34, 1
    %s36 = scalar_select %p35, 0, %s34
    %s37 = sadd.s32 1, %s21
    %s38 = scalar_select %p35, %s37, %s21
    %p39 = scmp.ge.s32.totalorder %s38, 2
    %s40 = scalar_select %p39, 0, %s38
    %s41 = ssub.s32 %s21, %s40
    %s42 = ssub.s32 %s22, %s36
    %s43 = sor.u32 %s41, %s42
    %p44 = scmp.eq.s32.totalorder %s43, 0
    %s46 = sadd.s32 %s45, 1
    %s47 = scalar_select %p44, %s45, %s46
    %p50 = pneg %p44
    %p51 = scmp.eq.s32.totalorder %s14, 1
    %p52 = por %p50, %p51
    %p53 = scmp.ne.s32.totalorder %s45, %s48
    %p54 = scmp.eq.s32.totalorder %s14, 0
    %p55 = por %p53, %p54
    %p56 = scmp.ne.s32.totalorder %s45, %s48
    %p57 = scmp.eq.s32.totalorder %s19, 1
    %p58 = por %p56, %p57
    %p59 = scmp.ne.s32.totalorder %s48, %s49
    %p60 = scmp.eq.s32.totalorder %s19, 0
    %p61 = por %p59, %p60
    %p62 = scmp.ne.s32.totalorder %s48, %s49
    %p63 = scmp.eq.s32.totalorder %s20, 1
    %p64 = por %p62, %p63
    %p66 = scmp.ne.s32.totalorder %s49, %s65
    %p67 = scmp.eq.s32.totalorder %s20, 0
    %p68 = por %p66, %p67
    %s69 = ssub.s32 %s21, %s40
    %s70 = ssub.s32 %s22, %s36
    %s71 = sor.u32 %s69, %s70
    %p72 = scmp.eq.s32.totalorder %s71, 0
    %s74 = sadd.s32 %s73, 1
    %s75 = scalar_select %p72, %s73, %s74
    %p78 = pneg %p72
    %p79 = scmp.eq.s32.totalorder %s14, 1
    %p80 = por %p78, %p79
    %p81 = scmp.ne.s32.totalorder %s73, %s76
    %p82 = scmp.eq.s32.totalorder %s14, 0
    %p83 = por %p81, %p82
    %p84 = scmp.ne.s32.totalorder %s73, %s76
    %p85 = scmp.eq.s32.totalorder %s19, 1
    %p86 = por %p84, %p85
    %p87 = scmp.ne.s32.totalorder %s76, %s77
    %p88 = scmp.eq.s32.totalorder %s19, 0
    %p89 = por %p87, %p88
    %p90 = scmp.ne.s32.totalorder %s76, %s77
    %p91 = scmp.eq.s32.totalorder %s20, 1
    %p92 = por %p90, %p91
    %p94 = scmp.ne.s32.totalorder %s77, %s93
    %p95 = scmp.eq.s32.totalorder %s20, 0
    %p96 = por %p94, %p95
    %s97 = ssub.s32 %s21, %s40
    %s98 = ssub.s32 %s23, %s32
    %s99 = sor.u32 %s97, %s98
    %p100 = scmp.eq.s32.totalorder %s99, 0
    %s102 = sadd.s32 %s101, 1
    %s103 = scalar_select %p100, %s101, %s102
    %p106 = pneg %p100
    %p107 = scmp.eq.s32.totalorder %s14, 1
    %p108 = por %p106, %p107
    %p109 = scmp.ne.s32.totalorder %s101, %s104
    %p110 = scmp.eq.s32.totalorder %s14, 0
    %p111 = por %p109, %p110
    %p112 = scmp.ne.s32.totalorder %s101, %s104
    %p113 = scmp.eq.s32.totalorder %s19, 1
    %p114 = por %p112, %p113
    %p115 = scmp.ne.s32.totalorder %s104, %s105
    %p116 = scmp.eq.s32.totalorder %s19, 0
    %p117 = por %p115, %p116
    %p118 = scmp.ne.s32.totalorder %s104, %s105
    %p119 = scmp.eq.s32.totalorder %s20, 1
    %p120 = por %p118, %p119
    %p122 = scmp.ne.s32.totalorder %s105, %s121
    %p123 = scmp.eq.s32.totalorder %s20, 0
    %p124 = por %p122, %p123
    %s125 = ssub.s32 %s21, %s40
    %s126 = ssub.s32 %s23, %s32
    %s127 = sor.u32 %s125, %s126
    %p128 = scmp.eq.s32.totalorder %s127, 0
    %s130 = sadd.s32 %s129, 1
    %s131 = scalar_select %p128, %s129, %s130
    %p134 = pneg %p128
    %p135 = scmp.eq.s32.totalorder %s14, 1
    %p136 = por %p134, %p135
    %p137 = scmp.ne.s32.totalorder %s129, %s132
    %p138 = scmp.eq.s32.totalorder %s14, 0
    %p139 = por %p137, %p138
    %p140 = scmp.ne.s32.totalorder %s129, %s132
    %p141 = scmp.eq.s32.totalorder %s19, 1
    %p142 = por %p140, %p141
    %p143 = scmp.ne.s32.totalorder %s132, %s133
    %p144 = scmp.eq.s32.totalorder %s19, 0
    %p145 = por %p143, %p144
    %p146 = scmp.ne.s32.totalorder %s132, %s133
    %p147 = scmp.eq.s32.totalorder %s20, 1
    %p148 = por %p146, %p147
    %p150 = scmp.ne.s32.totalorder %s133, %s149
    %p151 = scmp.eq.s32.totalorder %s20, 0
    %p152 = por %p150, %p151
    %s154 = sadd.s32 %s153, 1
    %p157 = scmp.eq.s32.totalorder %s14, 1
    %p158 = scmp.ne.s32.totalorder %s153, %s155
    %p159 = scmp.eq.s32.totalorder %s14, 0
    %p160 = por %p158, %p159
    %p161 = scmp.ne.s32.totalorder %s153, %s155
    %p162 = scmp.eq.s32.totalorder %s19, 1
    %p163 = por %p161, %p162
    %p164 = scmp.ne.s32.totalorder %s155, %s156
    %p165 = scmp.eq.s32.totalorder %s19, 0
    %p166 = por %p164, %p165
    %p167 = scmp.ne.s32.totalorder %s155, %s156
    %p168 = scmp.eq.s32.totalorder %s20, 1
    %p169 = por %p167, %p168
    %p171 = scmp.ne.s32.totalorder %s156, %s170
    %p172 = scmp.eq.s32.totalorder %s20, 0
    %p173 = por %p171, %p172
    %s175 = sadd.s32 %s174, 1
    %p178 = scmp.eq.s32.totalorder %s14, 1
    %p179 = scmp.ne.s32.totalorder %s174, %s176
    %p180 = scmp.eq.s32.totalorder %s14, 0
    %p181 = por %p179, %p180
    %p182 = scmp.ne.s32.totalorder %s174, %s176
    %p183 = scmp.eq.s32.totalorder %s19, 1
    %p184 = por %p182, %p183
    %p185 = scmp.ne.s32.totalorder %s176, %s177
    %p186 = scmp.eq.s32.totalorder %s19, 0
    %p187 = por %p185, %p186
    %p188 = scmp.ne.s32.totalorder %s176, %s177
    %p189 = scmp.eq.s32.totalorder %s20, 1
    %p190 = por %p188, %p189
    %p192 = scmp.ne.s32.totalorder %s177, %s191
    %p193 = scmp.eq.s32.totalorder %s20, 0
    %p194 = por %p192, %p193
    %s196 = sadd.s32 %s195, 1
    %p199 = scmp.eq.s32.totalorder %s14, 1
    %p200 = scmp.ne.s32.totalorder %s195, %s197
    %p201 = scmp.eq.s32.totalorder %s14, 0
    %p202 = por %p200, %p201
    %p203 = scmp.ne.s32.totalorder %s195, %s197
    %p204 = scmp.eq.s32.totalorder %s19, 1
    %p205 = por %p203, %p204
    %p206 = scmp.ne.s32.totalorder %s197, %s198
    %p207 = scmp.eq.s32.totalorder %s19, 0
    %p208 = por %p206, %p207
    %p209 = scmp.ne.s32.totalorder %s197, %s198
    %p210 = scmp.eq.s32.totalorder %s20, 1
    %p211 = por %p209, %p210
    %p213 = scmp.ne.s32.totalorder %s198, %s212
    %p214 = scmp.eq.s32.totalorder %s20, 0
    %p215 = por %p213, %p214
    %s217 = sadd.s32 %s216, 1
    %p220 = scmp.eq.s32.totalorder %s14, 1
    %p221 = scmp.ne.s32.totalorder %s216, %s218
    %p222 = scmp.eq.s32.totalorder %s14, 0
    %p223 = por %p221, %p222
    %p224 = scmp.ne.s32.totalorder %s216, %s218
    %p225 = scmp.eq.s32.totalorder %s19, 1
    %p226 = por %p224, %p225
    %p227 = scmp.ne.s32.totalorder %s218, %s219
    %p228 = scmp.eq.s32.totalorder %s19, 0
    %p229 = por %p227, %p228
    %p230 = scmp.ne.s32.totalorder %s218, %s219
    %p231 = scmp.eq.s32.totalorder %s20, 1
    %p232 = por %p230, %p231
    %p234 = scmp.ne.s32.totalorder %s219, %s233
    %p235 = scmp.eq.s32.totalorder %s20, 0
    %p236 = por %p234, %p235
    %s237 = ssub.s32 %s21, %s40
    %s238 = ssub.s32 %s22, %s36
    %s239 = sor.u32 %s237, %s238
    %p240 = scmp.eq.s32.totalorder %s239, 0
    %s242 = sadd.s32 %s241, 1
    %s243 = scalar_select %p240, %s241, %s242
    %p246 = pneg %p240
    %p247 = scmp.eq.s32.totalorder %s14, 1
    %p248 = por %p246, %p247
    %p249 = scmp.ne.s32.totalorder %s241, %s244
    %p250 = scmp.eq.s32.totalorder %s14, 0
    %p251 = por %p249, %p250
    %p252 = scmp.ne.s32.totalorder %s241, %s244
    %p253 = scmp.eq.s32.totalorder %s19, 1
    %p254 = por %p252, %p253
    %p255 = scmp.ne.s32.totalorder %s244, %s245
    %p256 = scmp.eq.s32.totalorder %s19, 0
    %p257 = por %p255, %p256
    %p258 = scmp.ne.s32.totalorder %s244, %s245
    %p259 = scmp.eq.s32.totalorder %s20, 1
    %p260 = por %p258, %p259
    %p262 = scmp.ne.s32.totalorder %s245, %s261
    %p263 = scmp.eq.s32.totalorder %s20, 0
    %p264 = por %p262, %p263
    %p265 = scmp.le.s32.totalorder 1, %s14
    %p266 = scmp.lt.s32.totalorder %s14, 3
    %p267 = pnand %p265, %p266
    %p268 = pneg %p267
    // Predicated region
    $region9: #{decoder_layer.7} parent=5 // pred_check
      _
    $region10: #{decoder_layer.7} parent=5 // pred_check_branch
      %270 = sbr.rel (%p267) target = $region12
    $region11: #{decoder_layer.7} parent=5 // pred_region
      %s271 = ssub.s32 %s14, 1
      // Predicated region
      $region13: #{decoder_layer.7} parent=11 // pred_check
        %p272 = pneg %p166
      $region14: #{decoder_layer.7} parent=11 // pred_check_branch
        %274 = sbr.rel (%p272) target = $region16
      $region15: #{decoder_layer.7} parent=11 // pred_region
        _
      $region16: #{decoder_layer.7} parent=11 // pred_fallthru
        _
      // Predicated region
      $region17: #{decoder_layer.7} parent=11 // pred_check
        %p275 = pneg %p187
      $region18: #{decoder_layer.7} parent=11 // pred_check_branch
        %277 = sbr.rel (%p275) target = $region20
      $region19: #{decoder_layer.7} parent=11 // pred_region
        _
      $region20: #{decoder_layer.7} parent=11 // pred_fallthru
        _
      // Predicated region
      $region21: #{decoder_layer.7} parent=11 // pred_check
        %p278 = pneg %p208
      $region22: #{decoder_layer.7} parent=11 // pred_check_branch
        %280 = sbr.rel (%p278) target = $region24
      $region23: #{decoder_layer.7} parent=11 // pred_region
        _
      $region24: #{decoder_layer.7} parent=11 // pred_fallthru
        _
      // Predicated region
      $region25: #{decoder_layer.7} parent=11 // pred_check
        %p281 = pneg %p229
      $region26: #{decoder_layer.7} parent=11 // pred_check_branch
        %283 = sbr.rel (%p281) target = $region28
      $region27: #{decoder_layer.7} parent=11 // pred_region
        _
      $region28: #{decoder_layer.7} parent=11 // pred_fallthru
        _
    $region12: #{decoder_layer.7} parent=5 // pred_fallthru
      _
    %p284 = scmp.lt.s32.totalorder %s14, 2
    // Predicated region
    $region29: #{decoder_layer.7} parent=5 // pred_check
      %p285 = pneg %p284
    $region30: #{decoder_layer.7} parent=5 // pred_check_branch
      %287 = sbr.rel (%p285) target = $region32
    $region31: #{decoder_layer.7} parent=5 // pred_region
      // Predicated region
      $region33: #{decoder_layer.7} parent=31 // pred_check
        %p288 = pneg %p55
      $region34: #{decoder_layer.7} parent=31 // pred_check_branch
        %290 = sbr.rel (%p288) target = $region36
      $region35: #{decoder_layer.7} parent=31 // pred_region
        %p291 = scmp.lt.s32.totalorder %s21, 1
        %s292 = scalar_select %p291, %s21, 1
        %p293 = scmp.lt.s32.totalorder %s22, 0
        %s294 = scalar_select %p293, %s22, 0
        %s295 = sadd.s32 %s294, %s292
        %s296 = smul.addr %s295, 8
        %s297 = scalar_lea.vmem %s0, %s296
      $region36: #{decoder_layer.7} parent=31 // pred_fallthru
        _
      // Predicated region
      $region37: #{decoder_layer.7} parent=31 // pred_check
        %p298 = pneg %p83
      $region38: #{decoder_layer.7} parent=31 // pred_check_branch
        %300 = sbr.rel (%p298) target = $region40
      $region39: #{decoder_layer.7} parent=31 // pred_region
        %p301 = scmp.lt.s32.totalorder %s21, 1
        %s302 = scalar_select %p301, %s21, 1
        %p303 = scmp.lt.s32.totalorder %s22, 0
        %s304 = scalar_select %p303, %s22, 0
        %s305 = smul.addr %s302, 4
        %s306 = sadd.s32 %s304, %s305
        %s307 = smul.addr %s306, 8
        %s308 = scalar_lea.vmem %s1, %s307
      $region40: #{decoder_layer.7} parent=31 // pred_fallthru
        _
      // Predicated region
      $region41: #{decoder_layer.7} parent=31 // pred_check
        %p309 = pneg %p111
      $region42: #{decoder_layer.7} parent=31 // pred_check_branch
        %311 = sbr.rel (%p309) target = $region44
      $region43: #{decoder_layer.7} parent=31 // pred_region
        %p312 = scmp.lt.s32.totalorder %s21, 1
        %s313 = scalar_select %p312, %s21, 1
        %p314 = scmp.lt.s32.totalorder %s23, 0
        %s315 = scalar_select %p314, %s23, 0
        %s316 = smul.addr %s313, 4
        %s317 = sadd.s32 %s315, %s316
        %s318 = smul.addr %s317, 8
        %s319 = scalar_lea.vmem %s2, %s318
      $region44: #{decoder_layer.7} parent=31 // pred_fallthru
        _
      // Predicated region
      $region45: #{decoder_layer.7} parent=31 // pred_check
        %p320 = pneg %p139
      $region46: #{decoder_layer.7} parent=31 // pred_check_branch
        %322 = sbr.rel (%p320) target = $region48
      $region47: #{decoder_layer.7} parent=31 // pred_region
        %p323 = scmp.lt.s32.totalorder %s21, 1
        %s324 = scalar_select %p323, %s21, 1
        %p325 = scmp.lt.s32.totalorder %s23, 0
        %s326 = scalar_select %p325, %s23, 0
        %s327 = smul.addr %s324, 4
        %s328 = sadd.s32 %s326, %s327
        %s329 = smul.addr %s328, 8
        %s330 = scalar_lea.vmem %s3, %s329
      $region48: #{decoder_layer.7} parent=31 // pred_fallthru
        _
    $region32: #{decoder_layer.7} parent=5 // pred_fallthru
      _
    %p331 = scmp.le.s32.totalorder 1, %s14
    %p332 = scmp.lt.s32.totalorder %s14, 3
    %p333 = pnand %p331, %p332
    %p334 = pneg %p333
    // Predicated region
    $region49: #{decoder_layer.7} parent=5 // pred_check
      _
    $region50: #{decoder_layer.7} parent=5 // pred_check_branch
      %336 = sbr.rel (%p333) target = $region52
    $region51: #{decoder_layer.7} parent=5 // pred_region
      %s337 = ssub.s32 %s14, 1
      %p338 = scmp.lt.s32.totalorder %s24, 1
      %s339 = scalar_select %p338, %s24, 1
      %p340 = scmp.lt.s32.totalorder %s25, 0
      %s341 = scalar_select %p340, %s25, 0
      %s342 = sadd.s32 %s341, %s339
      %s343 = smul.addr %s342, 8
      %s344 = scalar_lea.vmem %s0, %s343
      %p345 = pneg %p61
      %p346 = pneg %p58
      %p347 = scmp.lt.s32.totalorder %s24, 1
      %s348 = scalar_select %p347, %s24, 1
      %p349 = scmp.lt.s32.totalorder %s25, 0
      %s350 = scalar_select %p349, %s25, 0
      %s351 = smul.addr %s348, 4
      %s352 = sadd.s32 %s350, %s351
      %s353 = smul.addr %s352, 8
      %s354 = scalar_lea.vmem %s1, %s353
      %p355 = pneg %p89
      %p356 = pneg %p86
      %p357 = scmp.lt.s32.totalorder %s24, 1
      %s358 = scalar_select %p357, %s24, 1
      %p359 = scmp.lt.s32.totalorder %s26, 0
      %s360 = scalar_select %p359, %s26, 0
      %s361 = smul.addr %s358, 4
      %s362 = sadd.s32 %s360, %s361
      %s363 = smul.addr %s362, 8
      %s364 = scalar_lea.vmem %s2, %s363
      %p365 = pneg %p117
      %p366 = pneg %p114
      %p367 = scmp.lt.s32.totalorder %s24, 1
      %s368 = scalar_select %p367, %s24, 1
      %p369 = scmp.lt.s32.totalorder %s26, 0
      %s370 = scalar_select %p369, %s26, 0
      %s371 = smul.addr %s368, 4
      %s372 = sadd.s32 %s370, %s371
      %s373 = smul.addr %s372, 8
      %s374 = scalar_lea.vmem %s3, %s373
      %p375 = pneg %p145
      %p376 = pneg %p142
      %p377 = pneg %p166
      %p378 = pneg %p163
      %p379 = pneg %p187
      %p380 = pneg %p184
      %p381 = pneg %p208
      %p382 = pneg %p205
      %p383 = pneg %p229
      %p384 = pneg %p226
      %p385 = pneg %p257
      %p386 = pneg %p254
      %p387 = scmp.lt.s32.totalorder %s24, 1
      %s388 = scalar_select %p387, %s24, 1
      %p389 = scmp.lt.s32.totalorder %s25, 0
      %s390 = scalar_select %p389, %s25, 0
      %s391 = sadd.s32 %s390, %s388
      %s392 = smul.addr %s391, 8
      %s393 = scalar_lea.vmem %s8, %s392
      %p394 = scmp.lt.s32.totalorder %s24, 1
      %s395 = scalar_select %p394, %s24, 1
      %p396 = scmp.lt.s32.totalorder %s25, 0
      %s397 = scalar_select %p396, %s25, 0
      %s398 = sadd.s32 %s397, %s395
      %s399 = smul.addr %s398, 8
      %s400 = scalar_lea.vmem %s0, %s399
      %p401 = scmp.lt.s32.totalorder %s24, 1
      %s402 = scalar_select %p401, %s24, 1
      %p403 = scmp.lt.s32.totalorder %s25, 0
      %s404 = scalar_select %p403, %s25, 0
      %s405 = smul.addr %s402, 4
      %s406 = sadd.s32 %s404, %s405
      %s407 = smul.addr %s406, 8
      %s408 = scalar_lea.vmem %s1, %s407
      %p409 = scmp.lt.s32.totalorder %s24, 1
      %s410 = scalar_select %p409, %s24, 1
      %p411 = scmp.lt.s32.totalorder %s26, 0
      %s412 = scalar_select %p411, %s26, 0
      %s413 = smul.addr %s410, 4
      %s414 = sadd.s32 %s412, %s413
      %s415 = smul.addr %s414, 8
      %s416 = scalar_lea.vmem %s2, %s415
      %p417 = scmp.lt.s32.totalorder %s24, 1
      %s418 = scalar_select %p417, %s24, 1
      %p419 = scmp.lt.s32.totalorder %s26, 0
      %s420 = scalar_select %p419, %s26, 0
      %s421 = smul.addr %s418, 4
      %s422 = sadd.s32 %s420, %s421
      %s423 = smul.addr %s422, 8
      %s424 = scalar_lea.vmem %s3, %s423
      %p425 = scmp.lt.s32.totalorder %s24, 1
      %s426 = scalar_select %p425, %s24, 1
      %p427 = scmp.lt.s32.totalorder %s25, 0
      %s428 = scalar_select %p427, %s25, 0
      %s429 = sadd.s32 %s428, %s426
      %s430 = smul.addr %s429, 8
      %s431 = scalar_lea.vmem %s8, %s430
      %p432 = scmp.eq.s32.totalorder %s26, 0
      // Predicated region
      $region53: #{decoder_layer.7} parent=51 // pred_check
        %p433 = pneg %p432
      $region54: #{decoder_layer.7} parent=51 // pred_check_branch
        %435 = sbr.rel (%p433) target = $region56
      $region55: #{decoder_layer.7} parent=51 // pred_region
        %vm436 = vcmask 7168
        %437 = vst.msk [vmem:[#allocation2] sm:$0xff] %vm436, -1e+30
        %438 = vst.msk [vmem:[#allocation2 + $0x8] sm:$0xff] %vm436, -1e+30
        %439 = vst.msk [vmem:[#allocation2 + $0x10] sm:$0xff] %vm436, -1e+30
        %440 = vst.msk [vmem:[#allocation2 + $0x18] sm:$0xff] %vm436, -1e+30
        %441 = vst.msk [vmem:[#allocation3] sm:$0xff] %vm436, 0.0
        %442 = vst.msk [vmem:[#allocation3 + $0x8] sm:$0xff] %vm436, 0.0
        %443 = vst.msk [vmem:[#allocation3 + $0x10] sm:$0xff] %vm436, 0.0
        %444 = vst.msk [vmem:[#allocation3 + $0x18] sm:$0xff] %vm436, 0.0
        %vm445 = vcmask 64512
        %446 = vst.msk [vmem:[#allocation4] sm:$0xff] %vm445, 0.0
        %447 = vst.msk [vmem:[#allocation4 + $0x8] sm:$0xff] %vm445, 0.0
        %448 = vst.msk [vmem:[#allocation4 + $0x10] sm:$0xff] %vm445, 0.0
        %449 = vst.msk [vmem:[#allocation4 + $0x18] sm:$0xff] %vm445, 0.0
      $region56: #{decoder_layer.7} parent=51 // pred_fallthru
        _
      %s450 = smul.u32 %s25, 8
      %s451 = smul.u32 %s26, 8
      %s452 = sadd.s32 %s450, 7
      %p453 = scmp.le.s32.totalorder %s451, %s452
      // Predicated region
      $region57: #{decoder_layer.7} parent=51 // pred_check
        %p454 = pneg %p453
      $region58: #{decoder_layer.7} parent=51 // pred_check_branch
        %456 = sbr.rel (%p454) target = $region60
      $region59: #{decoder_layer.7} parent=51 // pred_region
        %v457 = vld [vmem:[%s408] sm:$0xff]
        %v458 = vld [vmem:[%s408 + $0x8] sm:$0xff]
        %v459 = vld [vmem:[%s408 + $0x10] sm:$0xff]
        %v460 = vld [vmem:[%s408 + $0x18] sm:$0xff]
        %v461 = vld [vmem:[%s416] sm:$0xff]
        %v462 = vld [vmem:[%s416 + $0x8] sm:$0xff]
        %v463 = vld [vmem:[%s416 + $0x10] sm:$0xff]
        %v464 = vld [vmem:[%s416 + $0x18] sm:$0xff]
        %v465 = vld [vmem:[%s424] sm:$0xff]
        %v466 = vld [vmem:[%s424 + $0x8] sm:$0xff]
        %v467 = vld [vmem:[%s424 + $0x10] sm:$0xff]
        %v468 = vld [vmem:[%s424 + $0x18] sm:$0xff]
        %vm469 = vcmask 64512
        %v471 = vsel %vm469, %v457, 0
        %v474 = vsel %vm469, %v461, 0
        %476 = vmatprep.subr.mxu0 0.0
        %477 = vmatpush1.xpose.msra.mxu0 0.0
        %478 = vmatprep.subr.mxu0 0.0
        %479 = vmatpush1.xpose.msra.mxu0 0.0
        %480 = vmatprep.subr.mxu0 0.0
        %481 = vmatpush1.xpose.msra.mxu0 0.0
        %482 = vmatprep.subr.mxu0 0.0
        %483 = vmatpush1.xpose.msra.mxu0 0.0
        %484 = vmatprep.subr.mxu0 0.0
        %485 = vmatpush1.xpose.msra.mxu0 0.0
        %486 = vmatprep.subr.mxu0 0.0
        %487 = vmatpush1.xpose.msra.mxu0 0.0
        %488 = vmatprep.subr.mxu0 0.0
        %489 = vmatpush1.xpose.msra.mxu0 0.0
        %490 = vmatprep.subr.mxu0 0.0
        %491 = vmatpush1.xpose.msra.mxu0 0.0
        %492 = vmatprep.subr.mxu0 0.0
        %493 = vmatpush1.xpose.msra.mxu0 0.0
        %494 = vmatprep.subr.mxu0 0.0
        %495 = vmatpush1.xpose.msra.mxu0 0.0
        %496 = vmatprep.subr.mxu0 0.0
        %497 = vmatpush1.xpose.msra.mxu0 0.0
        %498 = vmatprep.subr.mxu0 0.0
        %499 = vmatpush1.xpose.msra.mxu0 0.0
        %500 = vmatprep.subr.mxu0 0.0
        %501 = vmatpush1.xpose.msra.mxu0 0.0
        %502 = vmatprep.subr.mxu0 0.0
        %503 = vmatpush1.xpose.msra.mxu0 0.0
        %504 = vmatprep.subr.mxu0 0.0
        %505 = vmatpush1.xpose.msra.mxu0 0.0
        %506 = vmatprep.subr.mxu0 0.0
        %507 = vmatpush1.xpose.msra.mxu0 %v474
        %508 = vmatprep.subr.mxu0 0.0
        %509 = vmatpush2.xpose.msra.mxu0 0.0
        %510 = vmatprep.subr.mxu0 0.0
        %511 = vmatpush2.xpose.msra.mxu0 0.0
        %512 = vmatprep.subr.mxu0 0.0
        %513 = vmatpush2.xpose.msra.mxu0 0.0
        %514 = vmatprep.subr.mxu0 0.0
        %515 = vmatpush2.xpose.msra.mxu0 0.0
        %516 = vmatprep.subr.mxu0 0.0
        %517 = vmatpush2.xpose.msra.mxu0 0.0
        %518 = vmatprep.subr.mxu0 0.0
        %519 = vmatpush2.xpose.msra.mxu0 0.0
        %520 = vmatprep.subr.mxu0 0.0
        %521 = vmatpush2.xpose.msra.mxu0 0.0
        %522 = vmatprep.subr.mxu0 0.0
        %523 = vmatpush2.xpose.msra.mxu0 0.0
        %524 = vmatprep.subr.mxu0 0.0
        %525 = vmatpush2.xpose.msra.mxu0 0.0
        %526 = vmatprep.subr.mxu0 0.0
        %527 = vmatpush2.xpose.msra.mxu0 0.0
        %528 = vmatprep.subr.mxu0 0.0
        %529 = vmatpush2.xpose.msra.mxu0 0.0
        %530 = vmatprep.subr.mxu0 0.0
        %531 = vmatpush2.xpose.msra.mxu0 0.0
        %532 = vmatprep.subr.mxu0 0.0
        %533 = vmatpush2.xpose.msra.mxu0 0.0
        %534 = vmatprep.subr.mxu0 0.0
        %535 = vmatpush2.xpose.msra.mxu0 0.0
        %536 = vmatprep.subr.mxu0 0.0
        %537 = vmatpush2.xpose.msra.mxu0 0.0
        %538 = vmatprep.subr.mxu0 0.0
        %539 = vmatpush2.xpose.msra.mxu0 0.0
        %540 = vmatprep.mubr.f32.mxu0 0.0
        %541 = vmatmul.mubr.f32.gmra.mxu0 %v471
        %v542 = vpop.f32.mrf.mxu0
        %v543 = vadd.f32 0.0, %v542
        %v544 = vpop.f32.mrf.mxu0
        %545 = vdwg.mxu0
        %v547 = vsel %vm469, %v458, 0
        %v550 = vsel %vm469, %v462, 0
        %552 = vmatprep.subr.mxu0 0.0
        %553 = vmatpush1.xpose.msra.mxu0 0.0
        %554 = vmatprep.subr.mxu0 0.0
        %555 = vmatpush1.xpose.msra.mxu0 0.0
        %556 = vmatprep.subr.mxu0 0.0
        %557 = vmatpush1.xpose.msra.mxu0 0.0
        %558 = vmatprep.subr.mxu0 0.0
        %559 = vmatpush1.xpose.msra.mxu0 0.0
        %560 = vmatprep.subr.mxu0 0.0
        %561 = vmatpush1.xpose.msra.mxu0 0.0
        %562 = vmatprep.subr.mxu0 0.0
        %563 = vmatpush1.xpose.msra.mxu0 0.0
        %564 = vmatprep.subr.mxu0 0.0
        %565 = vmatpush1.xpose.msra.mxu0 0.0
        %566 = vmatprep.subr.mxu0 0.0
        %567 = vmatpush1.xpose.msra.mxu0 0.0
        %568 = vmatprep.subr.mxu0 0.0
        %569 = vmatpush1.xpose.msra.mxu0 0.0
        %570 = vmatprep.subr.mxu0 0.0
        %571 = vmatpush1.xpose.msra.mxu0 0.0
        %572 = vmatprep.subr.mxu0 0.0
        %573 = vmatpush1.xpose.msra.mxu0 0.0
        %574 = vmatprep.subr.mxu0 0.0
        %575 = vmatpush1.xpose.msra.mxu0 0.0
        %576 = vmatprep.subr.mxu0 0.0
        %577 = vmatpush1.xpose.msra.mxu0 0.0
        %578 = vmatprep.subr.mxu0 0.0
        %579 = vmatpush1.xpose.msra.mxu0 0.0
        %580 = vmatprep.subr.mxu0 0.0
        %581 = vmatpush1.xpose.msra.mxu0 0.0
        %582 = vmatprep.subr.mxu0 0.0
        %583 = vmatpush1.xpose.msra.mxu0 %v550
        %584 = vmatprep.subr.mxu0 0.0
        %585 = vmatpush2.xpose.msra.mxu0 0.0
        %586 = vmatprep.subr.mxu0 0.0
        %587 = vmatpush2.xpose.msra.mxu0 0.0
        %588 = vmatprep.subr.mxu0 0.0
        %589 = vmatpush2.xpose.msra.mxu0 0.0
        %590 = vmatprep.subr.mxu0 0.0
        %591 = vmatpush2.xpose.msra.mxu0 0.0
        %592 = vmatprep.subr.mxu0 0.0
        %593 = vmatpush2.xpose.msra.mxu0 0.0
        %594 = vmatprep.subr.mxu0 0.0
        %595 = vmatpush2.xpose.msra.mxu0 0.0
        %596 = vmatprep.subr.mxu0 0.0
        %597 = vmatpush2.xpose.msra.mxu0 0.0
        %598 = vmatprep.subr.mxu0 0.0
        %599 = vmatpush2.xpose.msra.mxu0 0.0
        %600 = vmatprep.subr.mxu0 0.0
        %601 = vmatpush2.xpose.msra.mxu0 0.0
        %602 = vmatprep.subr.mxu0 0.0
        %603 = vmatpush2.xpose.msra.mxu0 0.0
        %604 = vmatprep.subr.mxu0 0.0
        %605 = vmatpush2.xpose.msra.mxu0 0.0
        %606 = vmatprep.subr.mxu0 0.0
        %607 = vmatpush2.xpose.msra.mxu0 0.0
        %608 = vmatprep.subr.mxu0 0.0
        %609 = vmatpush2.xpose.msra.mxu0 0.0
        %610 = vmatprep.subr.mxu0 0.0
        %611 = vmatpush2.xpose.msra.mxu0 0.0
        %612 = vmatprep.subr.mxu0 0.0
        %613 = vmatpush2.xpose.msra.mxu0 0.0
        %614 = vmatprep.subr.mxu0 0.0
        %615 = vmatpush2.xpose.msra.mxu0 0.0
        %616 = vmatprep.mubr.f32.mxu0 0.0
        %617 = vmatmul.mubr.f32.gmra.mxu0 %v547
        %v618 = vpop.f32.mrf.mxu0
        %v619 = vadd.f32 0.0, %v618
        %v620 = vpop.f32.mrf.mxu0
        %621 = vdwg.mxu0
        %v623 = vsel %vm469, %v459, 0
        %v626 = vsel %vm469, %v463, 0
        %628 = vmatprep.subr.mxu0 0.0
        %629 = vmatpush1.xpose.msra.mxu0 0.0
        %630 = vmatprep.subr.mxu0 0.0
        %631 = vmatpush1.xpose.msra.mxu0 0.0
        %632 = vmatprep.subr.mxu0 0.0
        %633 = vmatpush1.xpose.msra.mxu0 0.0
        %634 = vmatprep.subr.mxu0 0.0
        %635 = vmatpush1.xpose.msra.mxu0 0.0
        %636 = vmatprep.subr.mxu0 0.0
        %637 = vmatpush1.xpose.msra.mxu0 0.0
        %638 = vmatprep.subr.mxu0 0.0
        %639 = vmatpush1.xpose.msra.mxu0 0.0
        %640 = vmatprep.subr.mxu0 0.0
        %641 = vmatpush1.xpose.msra.mxu0 0.0
        %642 = vmatprep.subr.mxu0 0.0
        %643 = vmatpush1.xpose.msra.mxu0 0.0
        %644 = vmatprep.subr.mxu0 0.0
        %645 = vmatpush1.xpose.msra.mxu0 0.0
        %646 = vmatprep.subr.mxu0 0.0
        %647 = vmatpush1.xpose.msra.mxu0 0.0
        %648 = vmatprep.subr.mxu0 0.0
        %649 = vmatpush1.xpose.msra.mxu0 0.0
        %650 = vmatprep.subr.mxu0 0.0
        %651 = vmatpush1.xpose.msra.mxu0 0.0
        %652 = vmatprep.subr.mxu0 0.0
        %653 = vmatpush1.xpose.msra.mxu0 0.0
        %654 = vmatprep.subr.mxu0 0.0
        %655 = vmatpush1.xpose.msra.mxu0 0.0
        %656 = vmatprep.subr.mxu0 0.0
        %657 = vmatpush1.xpose.msra.mxu0 0.0
        %658 = vmatprep.subr.mxu0 0.0
        %659 = vmatpush1.xpose.msra.mxu0 %v626
        %660 = vmatprep.subr.mxu0 0.0
        %661 = vmatpush2.xpose.msra.mxu0 0.0
        %662 = vmatprep.subr.mxu0 0.0
        %663 = vmatpush2.xpose.msra.mxu0 0.0
        %664 = vmatprep.subr.mxu0 0.0
        %665 = vmatpush2.xpose.msra.mxu0 0.0
        %666 = vmatprep.subr.mxu0 0.0
        %667 = vmatpush2.xpose.msra.mxu0 0.0
        %668 = vmatprep.subr.mxu0 0.0
        %669 = vmatpush2.xpose.msra.mxu0 0.0
        %670 = vmatprep.subr.mxu0 0.0
        %671 = vmatpush2.xpose.msra.mxu0 0.0
        %672 = vmatprep.subr.mxu0 0.0
        %673 = vmatpush2.xpose.msra.mxu0 0.0
        %674 = vmatprep.subr.mxu0 0.0
        %675 = vmatpush2.xpose.msra.mxu0 0.0
        %676 = vmatprep.subr.mxu0 0.0
        %677 = vmatpush2.xpose.msra.mxu0 0.0
        %678 = vmatprep.subr.mxu0 0.0
        %679 = vmatpush2.xpose.msra.mxu0 0.0
        %680 = vmatprep.subr.mxu0 0.0
        %681 = vmatpush2.xpose.msra.mxu0 0.0
        %682 = vmatprep.subr.mxu0 0.0
        %683 = vmatpush2.xpose.msra.mxu0 0.0
        %684 = vmatprep.subr.mxu0 0.0
        %685 = vmatpush2.xpose.msra.mxu0 0.0
        %686 = vmatprep.subr.mxu0 0.0
        %687 = vmatpush2.xpose.msra.mxu0 0.0
        %688 = vmatprep.subr.mxu0 0.0
        %689 = vmatpush2.xpose.msra.mxu0 0.0
        %690 = vmatprep.subr.mxu0 0.0
        %691 = vmatpush2.xpose.msra.mxu0 0.0
        %692 = vmatprep.mubr.f32.mxu0 0.0
        %693 = vmatmul.mubr.f32.gmra.mxu0 %v623
        %v694 = vpop.f32.mrf.mxu0
        %v695 = vadd.f32 0.0, %v694
        %v696 = vpop.f32.mrf.mxu0
        %697 = vdwg.mxu0
        %v699 = vsel %vm469, %v460, 0
        %v702 = vsel %vm469, %v464, 0
        %704 = vmatprep.subr.mxu0 0.0
        %705 = vmatpush1.xpose.msra.mxu0 0.0
        %706 = vmatprep.subr.mxu0 0.0
        %707 = vmatpush1.xpose.msra.mxu0 0.0
        %708 = vmatprep.subr.mxu0 0.0
        %709 = vmatpush1.xpose.msra.mxu0 0.0
        %710 = vmatprep.subr.mxu0 0.0
        %711 = vmatpush1.xpose.msra.mxu0 0.0
        %712 = vmatprep.subr.mxu0 0.0
        %713 = vmatpush1.xpose.msra.mxu0 0.0
        %714 = vmatprep.subr.mxu0 0.0
        %715 = vmatpush1.xpose.msra.mxu0 0.0
        %716 = vmatprep.subr.mxu0 0.0
        %717 = vmatpush1.xpose.msra.mxu0 0.0
        %718 = vmatprep.subr.mxu0 0.0
        %719 = vmatpush1.xpose.msra.mxu0 0.0
        %720 = vmatprep.subr.mxu0 0.0
        %721 = vmatpush1.xpose.msra.mxu0 0.0
        %722 = vmatprep.subr.mxu0 0.0
        %723 = vmatpush1.xpose.msra.mxu0 0.0
        %724 = vmatprep.subr.mxu0 0.0
        %725 = vmatpush1.xpose.msra.mxu0 0.0
        %726 = vmatprep.subr.mxu0 0.0
        %727 = vmatpush1.xpose.msra.mxu0 0.0
        %728 = vmatprep.subr.mxu0 0.0
        %729 = vmatpush1.xpose.msra.mxu0 0.0
        %730 = vmatprep.subr.mxu0 0.0
        %731 = vmatpush1.xpose.msra.mxu0 0.0
        %732 = vmatprep.subr.mxu0 0.0
        %733 = vmatpush1.xpose.msra.mxu0 0.0
        %734 = vmatprep.subr.mxu0 0.0
        %735 = vmatpush1.xpose.msra.mxu0 %v702
        %736 = vmatprep.subr.mxu0 0.0
        %737 = vmatpush2.xpose.msra.mxu0 0.0
        %738 = vmatprep.subr.mxu0 0.0
        %739 = vmatpush2.xpose.msra.mxu0 0.0
        %740 = vmatprep.subr.mxu0 0.0
        %741 = vmatpush2.xpose.msra.mxu0 0.0
        %742 = vmatprep.subr.mxu0 0.0
        %743 = vmatpush2.xpose.msra.mxu0 0.0
        %744 = vmatprep.subr.mxu0 0.0
        %745 = vmatpush2.xpose.msra.mxu0 0.0
        %746 = vmatprep.subr.mxu0 0.0
        %747 = vmatpush2.xpose.msra.mxu0 0.0
        %748 = vmatprep.subr.mxu0 0.0
        %749 = vmatpush2.xpose.msra.mxu0 0.0
        %750 = vmatprep.subr.mxu0 0.0
        %751 = vmatpush2.xpose.msra.mxu0 0.0
        %752 = vmatprep.subr.mxu0 0.0
        %753 = vmatpush2.xpose.msra.mxu0 0.0
        %754 = vmatprep.subr.mxu0 0.0
        %755 = vmatpush2.xpose.msra.mxu0 0.0
        %756 = vmatprep.subr.mxu0 0.0
        %757 = vmatpush2.xpose.msra.mxu0 0.0
        %758 = vmatprep.subr.mxu0 0.0
        %759 = vmatpush2.xpose.msra.mxu0 0.0
        %760 = vmatprep.subr.mxu0 0.0
        %761 = vmatpush2.xpose.msra.mxu0 0.0
        %762 = vmatprep.subr.mxu0 0.0
        %763 = vmatpush2.xpose.msra.mxu0 0.0
        %764 = vmatprep.subr.mxu0 0.0
        %765 = vmatpush2.xpose.msra.mxu0 0.0
        %766 = vmatprep.subr.mxu0 0.0
        %767 = vmatpush2.xpose.msra.mxu0 0.0
        %768 = vmatprep.mubr.f32.mxu0 0.0
        %769 = vmatmul.mubr.f32.gmra.mxu0 %v699
        %v770 = vpop.f32.mrf.mxu0
        %v771 = vadd.f32 0.0, %v770
        %v772 = vpop.f32.mrf.mxu0
        %773 = vdwg.mxu0
        %v774 = vlaneseq
        %v775 = vshrl.u32 %v774, 7
        %v776 = vstv %s450
        %v777 = vadd.s32 %v776, %v775
        %v778 = vlaneseq
        %v779 = vand.u32 %v778, 127
        %v780 = vstv %s451
        %v781 = vadd.s32 %v780, %v779
        %vm782 = vcmp.ge.s32.totalorder %v777, %v781
        %v783 = vsel %vm782, 1, 0
        %vm784 = vcmp.eq.s32.totalorder %v783, 1
        %v785 = vsel %vm784, %v543, -1e+09
        %v786 = vsel %vm784, %v619, -1e+09
        %v787 = vsel %vm784, %v695, -1e+09
        %v788 = vsel %vm784, %v771, -1e+09
        %v789 = vld [vmem:[#allocation2] sm:$0xff]
        %v790 = vld [vmem:[#allocation2 + $0x8] sm:$0xff]
        %v791 = vld [vmem:[#allocation2 + $0x10] sm:$0xff]
        %v792 = vld [vmem:[#allocation2 + $0x18] sm:$0xff]
        %v793 = vsel %vm469, %v785, -inf
        %794 = vmax.xlane.f32.xlu0 %v793
        %v795 = vpop.xlane.xlu0 %794
        %v796 = vsel %vm469, %v786, -inf
        %797 = vmax.xlane.f32.xlu0 %v796
        %v798 = vpop.xlane.xlu0 %797
        %v799 = vsel %vm469, %v787, -inf
        %800 = vmax.xlane.f32.xlu0 %v799
        %v801 = vpop.xlane.xlu0 %800
        %v802 = vsel %vm469, %v788, -inf
        %803 = vmax.xlane.f32.xlu0 %v802
        %v804 = vpop.xlane.xlu0 %803
        %v805 = vmax.f32 %v789, %v795
        %v806 = vmax.f32 %v790, %v798
        %v807 = vmax.f32 %v791, %v801
        %v808 = vmax.f32 %v792, %v804
        %v809 = vsub.f32 %v789, %v805
        %v810 = vsub.f32 %v790, %v806
        %v811 = vsub.f32 %v791, %v807
        %v812 = vsub.f32 %v792, %v808
        %v813 = vmul.f32 %v809, 1.442695
        %v814 = vpow.pop %v813
        %v815 = vmul.f32 %v810, 1.442695
        %v816 = vpow.pop %v815
        %v817 = vmul.f32 %v811, 1.442695
        %v818 = vpow.pop %v817
        %v819 = vmul.f32 %v812, 1.442695
        %v820 = vpow.pop %v819
        %822 = vset.pattern.permute.xlu0 0
        %823 = vperm.xlu0 %822, %v805
        %v824 = vpop.permute.xlu0 %823
        %827 = vset.pattern.permute.xlu0 0
        %828 = vperm.xlu0 %827, %v806
        %v829 = vpop.permute.xlu0 %828
        %832 = vset.pattern.permute.xlu0 0
        %833 = vperm.xlu0 %832, %v807
        %v834 = vpop.permute.xlu0 %833
        %837 = vset.pattern.permute.xlu0 0
        %838 = vperm.xlu0 %837, %v808
        %v839 = vpop.permute.xlu0 %838
        %v841 = vsub.f32 %v785, %v824
        %v842 = vsub.f32 %v786, %v829
        %v843 = vsub.f32 %v787, %v834
        %v844 = vsub.f32 %v788, %v839
        %v845 = vmul.f32 %v841, 1.442695
        %v846 = vpow.pop %v845
        %v847 = vmul.f32 %v842, 1.442695
        %v848 = vpow.pop %v847
        %v849 = vmul.f32 %v843, 1.442695
        %v850 = vpow.pop %v849
        %v851 = vmul.f32 %v844, 1.442695
        %v852 = vpow.pop %v851
        %v853 = vld [vmem:[#allocation3] sm:$0xff]
        %v854 = vld [vmem:[#allocation3 + $0x8] sm:$0xff]
        %v855 = vld [vmem:[#allocation3 + $0x10] sm:$0xff]
        %v856 = vld [vmem:[#allocation3 + $0x18] sm:$0xff]
        %v857 = vmul.f32 %v814, %v853
        %v858 = vmul.f32 %v816, %v854
        %v859 = vmul.f32 %v818, %v855
        %v860 = vmul.f32 %v820, %v856
        %v861 = vsel %vm469, %v846, 0.0
        %862 = vadd.xlane.f32.xlu0 %v861
        %v863 = vpop.xlane.xlu0 %862
        %v864 = vsel %vm469, %v848, 0.0
        %865 = vadd.xlane.f32.xlu0 %v864
        %v866 = vpop.xlane.xlu0 %865
        %v867 = vsel %vm469, %v850, 0.0
        %868 = vadd.xlane.f32.xlu0 %v867
        %v869 = vpop.xlane.xlu0 %868
        %v870 = vsel %vm469, %v852, 0.0
        %871 = vadd.xlane.f32.xlu0 %v870
        %v872 = vpop.xlane.xlu0 %871
        %v873 = vadd.f32 %v857, %v863
        %v874 = vadd.f32 %v858, %v866
        %v875 = vadd.f32 %v859, %v869
        %v876 = vadd.f32 %v860, %v872
        %vm877 = vcmask 7168
        %878 = vst.msk [vmem:[#allocation3] sm:$0xff] %vm877, %v873
        %879 = vst.msk [vmem:[#allocation3 + $0x8] sm:$0xff] %vm877, %v874
        %880 = vst.msk [vmem:[#allocation3 + $0x10] sm:$0xff] %vm877, %v875
        %881 = vst.msk [vmem:[#allocation3 + $0x18] sm:$0xff] %vm877, %v876
        %v882 = vld [vmem:[#allocation4] sm:$0xff]
        %v883 = vld [vmem:[#allocation4 + $0x8] sm:$0xff]
        %v884 = vld [vmem:[#allocation4 + $0x10] sm:$0xff]
        %v885 = vld [vmem:[#allocation4 + $0x18] sm:$0xff]
        %887 = vset.pattern.permute.xlu0 0
        %888 = vperm.xlu0 %887, %v814
        %v889 = vpop.permute.xlu0 %888
        %892 = vset.pattern.permute.xlu0 0
        %893 = vperm.xlu0 %892, %v816
        %v894 = vpop.permute.xlu0 %893
        %897 = vset.pattern.permute.xlu0 0
        %898 = vperm.xlu0 %897, %v818
        %v899 = vpop.permute.xlu0 %898
        %902 = vset.pattern.permute.xlu0 0
        %903 = vperm.xlu0 %902, %v820
        %v904 = vpop.permute.xlu0 %903
        %v906 = vmul.f32 %v889, %v882
        %v907 = vmul.f32 %v894, %v883
        %v908 = vmul.f32 %v899, %v884
        %v909 = vmul.f32 %v904, %v885
        %v911 = vsel %vm469, %v846, 0
        %913 = vmatprep.subr.mxu0 0.0
        %914 = vmatpush1.msra.mxu0 0.0
        %915 = vmatprep.subr.mxu0 0.0
        %916 = vmatpush1.msra.mxu0 0.0
        %917 = vmatprep.subr.mxu0 0.0
        %918 = vmatpush1.msra.mxu0 0.0
        %919 = vmatprep.subr.mxu0 0.0
        %920 = vmatpush1.msra.mxu0 0.0
        %921 = vmatprep.subr.mxu0 0.0
        %922 = vmatpush1.msra.mxu0 0.0
        %923 = vmatprep.subr.mxu0 0.0
        %924 = vmatpush1.msra.mxu0 0.0
        %925 = vmatprep.subr.mxu0 0.0
        %926 = vmatpush1.msra.mxu0 0.0
        %927 = vmatprep.subr.mxu0 0.0
        %928 = vmatpush1.msra.mxu0 0.0
        %929 = vmatprep.subr.mxu0 0.0
        %930 = vmatpush1.msra.mxu0 0.0
        %931 = vmatprep.subr.mxu0 0.0
        %932 = vmatpush1.msra.mxu0 0.0
        %933 = vmatprep.subr.mxu0 0.0
        %934 = vmatpush1.msra.mxu0 0.0
        %935 = vmatprep.subr.mxu0 0.0
        %936 = vmatpush1.msra.mxu0 0.0
        %937 = vmatprep.subr.mxu0 0.0
        %938 = vmatpush1.msra.mxu0 0.0
        %939 = vmatprep.subr.mxu0 0.0
        %940 = vmatpush1.msra.mxu0 0.0
        %941 = vmatprep.subr.mxu0 0.0
        %942 = vmatpush1.msra.mxu0 0.0
        %943 = vmatprep.subr.mxu0 0.0
        %944 = vmatpush1.msra.mxu0 %v465
        %945 = vmatprep.subr.mxu0 0.0
        %946 = vmatpush2.msra.mxu0 0.0
        %947 = vmatprep.subr.mxu0 0.0
        %948 = vmatpush2.msra.mxu0 0.0
        %949 = vmatprep.subr.mxu0 0.0
        %950 = vmatpush2.msra.mxu0 0.0
        %951 = vmatprep.subr.mxu0 0.0
        %952 = vmatpush2.msra.mxu0 0.0
        %953 = vmatprep.subr.mxu0 0.0
        %954 = vmatpush2.msra.mxu0 0.0
        %955 = vmatprep.subr.mxu0 0.0
        %956 = vmatpush2.msra.mxu0 0.0
        %957 = vmatprep.subr.mxu0 0.0
        %958 = vmatpush2.msra.mxu0 0.0
        %959 = vmatprep.subr.mxu0 0.0
        %960 = vmatpush2.msra.mxu0 0.0
        %961 = vmatprep.subr.mxu0 0.0
        %962 = vmatpush2.msra.mxu0 0.0
        %963 = vmatprep.subr.mxu0 0.0
        %964 = vmatpush2.msra.mxu0 0.0
        %965 = vmatprep.subr.mxu0 0.0
        %966 = vmatpush2.msra.mxu0 0.0
        %967 = vmatprep.subr.mxu0 0.0
        %968 = vmatpush2.msra.mxu0 0.0
        %969 = vmatprep.subr.mxu0 0.0
        %970 = vmatpush2.msra.mxu0 0.0
        %971 = vmatprep.subr.mxu0 0.0
        %972 = vmatpush2.msra.mxu0 0.0
        %973 = vmatprep.subr.mxu0 0.0
        %974 = vmatpush2.msra.mxu0 0.0
        %975 = vmatprep.subr.mxu0 0.0
        %976 = vmatpush2.msra.mxu0 0.0
        %977 = vmatprep.mubr.f32.mxu0 0.0
        %978 = vmatmul.mubr.f32.gmra.mxu0 %v911
        %v979 = vpop.f32.mrf.mxu0
        %v980 = vadd.f32 0.0, %v979
        %v981 = vpop.f32.mrf.mxu0
        %982 = vdwg.mxu0
        %v984 = vsel %vm469, %v848, 0
        %986 = vmatprep.subr.mxu0 0.0
        %987 = vmatpush1.msra.mxu0 0.0
        %988 = vmatprep.subr.mxu0 0.0
        %989 = vmatpush1.msra.mxu0 0.0
        %990 = vmatprep.subr.mxu0 0.0
        %991 = vmatpush1.msra.mxu0 0.0
        %992 = vmatprep.subr.mxu0 0.0
        %993 = vmatpush1.msra.mxu0 0.0
        %994 = vmatprep.subr.mxu0 0.0
        %995 = vmatpush1.msra.mxu0 0.0
        %996 = vmatprep.subr.mxu0 0.0
        %997 = vmatpush1.msra.mxu0 0.0
        %998 = vmatprep.subr.mxu0 0.0
        %999 = vmatpush1.msra.mxu0 0.0
        %1000 = vmatprep.subr.mxu0 0.0
        %1001 = vmatpush1.msra.mxu0 0.0
        %1002 = vmatprep.subr.mxu0 0.0
        %1003 = vmatpush1.msra.mxu0 0.0
        %1004 = vmatprep.subr.mxu0 0.0
        %1005 = vmatpush1.msra.mxu0 0.0
        %1006 = vmatprep.subr.mxu0 0.0
        %1007 = vmatpush1.msra.mxu0 0.0
        %1008 = vmatprep.subr.mxu0 0.0
        %1009 = vmatpush1.msra.mxu0 0.0
        %1010 = vmatprep.subr.mxu0 0.0
        %1011 = vmatpush1.msra.mxu0 0.0
        %1012 = vmatprep.subr.mxu0 0.0
        %1013 = vmatpush1.msra.mxu0 0.0
        %1014 = vmatprep.subr.mxu0 0.0
        %1015 = vmatpush1.msra.mxu0 0.0
        %1016 = vmatprep.subr.mxu0 0.0
        %1017 = vmatpush1.msra.mxu0 %v466
        %1018 = vmatprep.subr.mxu0 0.0
        %1019 = vmatpush2.msra.mxu0 0.0
        %1020 = vmatprep.subr.mxu0 0.0
        %1021 = vmatpush2.msra.mxu0 0.0
        %1022 = vmatprep.subr.mxu0 0.0
        %1023 = vmatpush2.msra.mxu0 0.0
        %1024 = vmatprep.subr.mxu0 0.0
        %1025 = vmatpush2.msra.mxu0 0.0
        %1026 = vmatprep.subr.mxu0 0.0
        %1027 = vmatpush2.msra.mxu0 0.0
        %1028 = vmatprep.subr.mxu0 0.0
        %1029 = vmatpush2.msra.mxu0 0.0
        %1030 = vmatprep.subr.mxu0 0.0
        %1031 = vmatpush2.msra.mxu0 0.0
        %1032 = vmatprep.subr.mxu0 0.0
        %1033 = vmatpush2.msra.mxu0 0.0
        %1034 = vmatprep.subr.mxu0 0.0
        %1035 = vmatpush2.msra.mxu0 0.0
        %1036 = vmatprep.subr.mxu0 0.0
        %1037 = vmatpush2.msra.mxu0 0.0
        %1038 = vmatprep.subr.mxu0 0.0
        %1039 = vmatpush2.msra.mxu0 0.0
        %1040 = vmatprep.subr.mxu0 0.0
        %1041 = vmatpush2.msra.mxu0 0.0
        %1042 = vmatprep.subr.mxu0 0.0
        %1043 = vmatpush2.msra.mxu0 0.0
        %1044 = vmatprep.subr.mxu0 0.0
        %1045 = vmatpush2.msra.mxu0 0.0
        %1046 = vmatprep.subr.mxu0 0.0
        %1047 = vmatpush2.msra.mxu0 0.0
        %1048 = vmatprep.subr.mxu0 0.0
        %1049 = vmatpush2.msra.mxu0 0.0
        %1050 = vmatprep.mubr.f32.mxu0 0.0
        %1051 = vmatmul.mubr.f32.gmra.mxu0 %v984
        %v1052 = vpop.f32.mrf.mxu0
        %v1053 = vadd.f32 0.0, %v1052
        %v1054 = vpop.f32.mrf.mxu0
        %1055 = vdwg.mxu0
        %v1057 = vsel %vm469, %v850, 0
        %1059 = vmatprep.subr.mxu0 0.0
        %1060 = vmatpush1.msra.mxu0 0.0
        %1061 = vmatprep.subr.mxu0 0.0
        %1062 = vmatpush1.msra.mxu0 0.0
        %1063 = vmatprep.subr.mxu0 0.0
        %1064 = vmatpush1.msra.mxu0 0.0
        %1065 = vmatprep.subr.mxu0 0.0
        %1066 = vmatpush1.msra.mxu0 0.0
        %1067 = vmatprep.subr.mxu0 0.0
        %1068 = vmatpush1.msra.mxu0 0.0
        %1069 = vmatprep.subr.mxu0 0.0
        %1070 = vmatpush1.msra.mxu0 0.0
        %1071 = vmatprep.subr.mxu0 0.0
        %1072 = vmatpush1.msra.mxu0 0.0
        %1073 = vmatprep.subr.mxu0 0.0
        %1074 = vmatpush1.msra.mxu0 0.0
        %1075 = vmatprep.subr.mxu0 0.0
        %1076 = vmatpush1.msra.mxu0 0.0
        %1077 = vmatprep.subr.mxu0 0.0
        %1078 = vmatpush1.msra.mxu0 0.0
        %1079 = vmatprep.subr.mxu0 0.0
        %1080 = vmatpush1.msra.mxu0 0.0
        %1081 = vmatprep.subr.mxu0 0.0
        %1082 = vmatpush1.msra.mxu0 0.0
        %1083 = vmatprep.subr.mxu0 0.0
        %1084 = vmatpush1.msra.mxu0 0.0
        %1085 = vmatprep.subr.mxu0 0.0
        %1086 = vmatpush1.msra.mxu0 0.0
        %1087 = vmatprep.subr.mxu0 0.0
        %1088 = vmatpush1.msra.mxu0 0.0
        %1089 = vmatprep.subr.mxu0 0.0
        %1090 = vmatpush1.msra.mxu0 %v467
        %1091 = vmatprep.subr.mxu0 0.0
        %1092 = vmatpush2.msra.mxu0 0.0
        %1093 = vmatprep.subr.mxu0 0.0
        %1094 = vmatpush2.msra.mxu0 0.0
        %1095 = vmatprep.subr.mxu0 0.0
        %1096 = vmatpush2.msra.mxu0 0.0
        %1097 = vmatprep.subr.mxu0 0.0
        %1098 = vmatpush2.msra.mxu0 0.0
        %1099 = vmatprep.subr.mxu0 0.0
        %1100 = vmatpush2.msra.mxu0 0.0
        %1101 = vmatprep.subr.mxu0 0.0
        %1102 = vmatpush2.msra.mxu0 0.0
        %1103 = vmatprep.subr.mxu0 0.0
        %1104 = vmatpush2.msra.mxu0 0.0
        %1105 = vmatprep.subr.mxu0 0.0
        %1106 = vmatpush2.msra.mxu0 0.0
        %1107 = vmatprep.subr.mxu0 0.0
        %1108 = vmatpush2.msra.mxu0 0.0
        %1109 = vmatprep.subr.mxu0 0.0
        %1110 = vmatpush2.msra.mxu0 0.0
        %1111 = vmatprep.subr.mxu0 0.0
        %1112 = vmatpush2.msra.mxu0 0.0
        %1113 = vmatprep.subr.mxu0 0.0
        %1114 = vmatpush2.msra.mxu0 0.0
        %1115 = vmatprep.subr.mxu0 0.0
        %1116 = vmatpush2.msra.mxu0 0.0
        %1117 = vmatprep.subr.mxu0 0.0
        %1118 = vmatpush2.msra.mxu0 0.0
        %1119 = vmatprep.subr.mxu0 0.0
        %1120 = vmatpush2.msra.mxu0 0.0
        %1121 = vmatprep.subr.mxu0 0.0
        %1122 = vmatpush2.msra.mxu0 0.0
        %1123 = vmatprep.mubr.f32.mxu0 0.0
        %1124 = vmatmul.mubr.f32.gmra.mxu0 %v1057
        %v1125 = vpop.f32.mrf.mxu0
        %v1126 = vadd.f32 0.0, %v1125
        %v1127 = vpop.f32.mrf.mxu0
        %1128 = vdwg.mxu0
        %v1130 = vsel %vm469, %v852, 0
        %1132 = vmatprep.subr.mxu0 0.0
        %1133 = vmatpush1.msra.mxu0 0.0
        %1134 = vmatprep.subr.mxu0 0.0
        %1135 = vmatpush1.msra.mxu0 0.0
        %1136 = vmatprep.subr.mxu0 0.0
        %1137 = vmatpush1.msra.mxu0 0.0
        %1138 = vmatprep.subr.mxu0 0.0
        %1139 = vmatpush1.msra.mxu0 0.0
        %1140 = vmatprep.subr.mxu0 0.0
        %1141 = vmatpush1.msra.mxu0 0.0
        %1142 = vmatprep.subr.mxu0 0.0
        %1143 = vmatpush1.msra.mxu0 0.0
        %1144 = vmatprep.subr.mxu0 0.0
        %1145 = vmatpush1.msra.mxu0 0.0
        %1146 = vmatprep.subr.mxu0 0.0
        %1147 = vmatpush1.msra.mxu0 0.0
        %1148 = vmatprep.subr.mxu0 0.0
        %1149 = vmatpush1.msra.mxu0 0.0
        %1150 = vmatprep.subr.mxu0 0.0
        %1151 = vmatpush1.msra.mxu0 0.0
        %1152 = vmatprep.subr.mxu0 0.0
        %1153 = vmatpush1.msra.mxu0 0.0
        %1154 = vmatprep.subr.mxu0 0.0
        %1155 = vmatpush1.msra.mxu0 0.0
        %1156 = vmatprep.subr.mxu0 0.0
        %1157 = vmatpush1.msra.mxu0 0.0
        %1158 = vmatprep.subr.mxu0 0.0
        %1159 = vmatpush1.msra.mxu0 0.0
        %1160 = vmatprep.subr.mxu0 0.0
        %1161 = vmatpush1.msra.mxu0 0.0
        %1162 = vmatprep.subr.mxu0 0.0
        %1163 = vmatpush1.msra.mxu0 %v468
        %1164 = vmatprep.subr.mxu0 0.0
        %1165 = vmatpush2.msra.mxu0 0.0
        %1166 = vmatprep.subr.mxu0 0.0
        %1167 = vmatpush2.msra.mxu0 0.0
        %1168 = vmatprep.subr.mxu0 0.0
        %1169 = vmatpush2.msra.mxu0 0.0
        %1170 = vmatprep.subr.mxu0 0.0
        %1171 = vmatpush2.msra.mxu0 0.0
        %1172 = vmatprep.subr.mxu0 0.0
        %1173 = vmatpush2.msra.mxu0 0.0
        %1174 = vmatprep.subr.mxu0 0.0
        %1175 = vmatpush2.msra.mxu0 0.0
        %1176 = vmatprep.subr.mxu0 0.0
        %1177 = vmatpush2.msra.mxu0 0.0
        %1178 = vmatprep.subr.mxu0 0.0
        %1179 = vmatpush2.msra.mxu0 0.0
        %1180 = vmatprep.subr.mxu0 0.0
        %1181 = vmatpush2.msra.mxu0 0.0
        %1182 = vmatprep.subr.mxu0 0.0
        %1183 = vmatpush2.msra.mxu0 0.0
        %1184 = vmatprep.subr.mxu0 0.0
        %1185 = vmatpush2.msra.mxu0 0.0
        %1186 = vmatprep.subr.mxu0 0.0
        %1187 = vmatpush2.msra.mxu0 0.0
        %1188 = vmatprep.subr.mxu0 0.0
        %1189 = vmatpush2.msra.mxu0 0.0
        %1190 = vmatprep.subr.mxu0 0.0
        %1191 = vmatpush2.msra.mxu0 0.0
        %1192 = vmatprep.subr.mxu0 0.0
        %1193 = vmatpush2.msra.mxu0 0.0
        %1194 = vmatprep.subr.mxu0 0.0
        %1195 = vmatpush2.msra.mxu0 0.0
        %1196 = vmatprep.mubr.f32.mxu0 0.0
        %1197 = vmatmul.mubr.f32.gmra.mxu0 %v1130
        %v1198 = vpop.f32.mrf.mxu0
        %v1199 = vadd.f32 0.0, %v1198
        %v1200 = vpop.f32.mrf.mxu0
        %1201 = vdwg.mxu0
        %v1202 = vadd.f32 %v906, %v980
        %v1203 = vadd.f32 %v907, %v1053
        %v1204 = vadd.f32 %v908, %v1126
        %v1205 = vadd.f32 %v909, %v1199
        %1206 = vst.msk [vmem:[#allocation4] sm:$0xff] %vm469, %v1202
        %1207 = vst.msk [vmem:[#allocation4 + $0x8] sm:$0xff] %vm469, %v1203
        %1208 = vst.msk [vmem:[#allocation4 + $0x10] sm:$0xff] %vm469, %v1204
        %1209 = vst.msk [vmem:[#allocation4 + $0x18] sm:$0xff] %vm469, %v1205
        %1210 = vst.msk [vmem:[#allocation2] sm:$0xff] %vm877, %v805
        %1211 = vst.msk [vmem:[#allocation2 + $0x8] sm:$0xff] %vm877, %v806
        %1212 = vst.msk [vmem:[#allocation2 + $0x10] sm:$0xff] %vm877, %v807
        %1213 = vst.msk [vmem:[#allocation2 + $0x18] sm:$0xff] %vm877, %v808
      $region60: #{decoder_layer.7} parent=51 // pred_fallthru
        _
      // Predicated region
      $region61: #{decoder_layer.7} parent=51 // pred_check
        %p1214 = pneg %p432
      $region62: #{decoder_layer.7} parent=51 // pred_check_branch
        %1216 = sbr.rel (%p1214) target = $region64
      $region63: #{decoder_layer.7} parent=51 // pred_region
        %v1217 = vld [vmem:[#allocation4] sm:$0xff]
        %v1218 = vld [vmem:[#allocation4 + $0x8] sm:$0xff]
        %v1219 = vld [vmem:[#allocation4 + $0x10] sm:$0xff]
        %v1220 = vld [vmem:[#allocation4 + $0x18] sm:$0xff]
        %v1221 = vld [vmem:[#allocation3] sm:$0xff]
        %v1222 = vld [vmem:[#allocation3 + $0x8] sm:$0xff]
        %v1223 = vld [vmem:[#allocation3 + $0x10] sm:$0xff]
        %v1224 = vld [vmem:[#allocation3 + $0x18] sm:$0xff]
        %1226 = vset.pattern.permute.xlu0 0
        %1227 = vperm.xlu0 %1226, %v1221
        %v1228 = vpop.permute.xlu0 %1227
        %1231 = vset.pattern.permute.xlu0 0
        %1232 = vperm.xlu0 %1231, %v1222
        %v1233 = vpop.permute.xlu0 %1232
        %1236 = vset.pattern.permute.xlu0 0
        %1237 = vperm.xlu0 %1236, %v1223
        %v1238 = vpop.permute.xlu0 %1237
        %1241 = vset.pattern.permute.xlu0 0
        %1242 = vperm.xlu0 %1241, %v1224
        %v1243 = vpop.permute.xlu0 %1242
        %v1245 = vrcp.pop %v1228
        %v1246 = vmul.f32 %v1217, %v1245
        %v1247 = vrcp.pop %v1233
        %v1248 = vmul.f32 %v1218, %v1247
        %v1249 = vrcp.pop %v1238
        %v1250 = vmul.f32 %v1219, %v1249
        %v1251 = vrcp.pop %v1243
        %v1252 = vmul.f32 %v1220, %v1251
        %v1253 = vld [vmem:[%s4] sm:$0xff]
        %s1254 = scalar_lea.vmem %s4, 8
        %v1255 = vld [vmem:[%s1254] sm:$0xff]
        %vm1256 = vcmask 64512
        %v1258 = vsel %vm1256, %v1248, 0
        %1260 = vmatprep.subr.mxu0 0.0
        %1261 = vmatpush1.msra.mxu0 0.0
        %1262 = vmatprep.subr.mxu0 0.0
        %1263 = vmatpush1.msra.mxu0 0.0
        %1264 = vmatprep.subr.mxu0 0.0
        %1265 = vmatpush1.msra.mxu0 0.0
        %1266 = vmatprep.subr.mxu0 0.0
        %1267 = vmatpush1.msra.mxu0 0.0
        %1268 = vmatprep.subr.mxu0 0.0
        %1269 = vmatpush1.msra.mxu0 0.0
        %1270 = vmatprep.subr.mxu0 0.0
        %1271 = vmatpush1.msra.mxu0 0.0
        %1272 = vmatprep.subr.mxu0 0.0
        %1273 = vmatpush1.msra.mxu0 0.0
        %1274 = vmatprep.subr.mxu0 0.0
        %1275 = vmatpush1.msra.mxu0 0.0
        %1276 = vmatprep.subr.mxu0 0.0
        %1277 = vmatpush1.msra.mxu0 0.0
        %1278 = vmatprep.subr.mxu0 0.0
        %1279 = vmatpush1.msra.mxu0 0.0
        %1280 = vmatprep.subr.mxu0 0.0
        %1281 = vmatpush1.msra.mxu0 0.0
        %1282 = vmatprep.subr.mxu0 0.0
        %1283 = vmatpush1.msra.mxu0 0.0
        %1284 = vmatprep.subr.mxu0 0.0
        %1285 = vmatpush1.msra.mxu0 0.0
        %1286 = vmatprep.subr.mxu0 0.0
        %1287 = vmatpush1.msra.mxu0 0.0
        %1288 = vmatprep.subr.mxu0 0.0
        %1289 = vmatpush1.msra.mxu0 0.0
        %1290 = vmatprep.subr.mxu0 0.0
        %1291 = vmatpush1.msra.mxu0 %v1255
        %1292 = vmatprep.subr.mxu0 0.0
        %1293 = vmatpush2.msra.mxu0 0.0
        %1294 = vmatprep.subr.mxu0 0.0
        %1295 = vmatpush2.msra.mxu0 0.0
        %1296 = vmatprep.subr.mxu0 0.0
        %1297 = vmatpush2.msra.mxu0 0.0
        %1298 = vmatprep.subr.mxu0 0.0
        %1299 = vmatpush2.msra.mxu0 0.0
        %1300 = vmatprep.subr.mxu0 0.0
        %1301 = vmatpush2.msra.mxu0 0.0
        %1302 = vmatprep.subr.mxu0 0.0
        %1303 = vmatpush2.msra.mxu0 0.0
        %1304 = vmatprep.subr.mxu0 0.0
        %1305 = vmatpush2.msra.mxu0 0.0
        %1306 = vmatprep.subr.mxu0 0.0
        %1307 = vmatpush2.msra.mxu0 0.0
        %1308 = vmatprep.subr.mxu0 0.0
        %1309 = vmatpush2.msra.mxu0 0.0
        %1310 = vmatprep.subr.mxu0 0.0
        %1311 = vmatpush2.msra.mxu0 0.0
        %1312 = vmatprep.subr.mxu0 0.0
        %1313 = vmatpush2.msra.mxu0 0.0
        %1314 = vmatprep.subr.mxu0 0.0
        %1315 = vmatpush2.msra.mxu0 0.0
        %1316 = vmatprep.subr.mxu0 0.0
        %1317 = vmatpush2.msra.mxu0 0.0
        %1318 = vmatprep.subr.mxu0 0.0
        %1319 = vmatpush2.msra.mxu0 0.0
        %1320 = vmatprep.subr.mxu0 0.0
        %1321 = vmatpush2.msra.mxu0 0.0
        %1322 = vmatprep.subr.mxu0 0.0
        %1323 = vmatpush2.msra.mxu0 0.0
        %1324 = vmatprep.mubr.f32.mxu0 0.0
        %1325 = vmatmul.mubr.f32.gmra.mxu0 %v1258
        %v1326 = vpop.f32.mrf.mxu0
        %v1327 = vadd.f32 0.0, %v1326
        %v1328 = vpop.f32.mrf.mxu0
        %1329 = vdwg.mxu0
        %v1331 = vsel %vm1256, %v1246, 0
        %1333 = vmatprep.subr.mxu0 0.0
        %1334 = vmatpush1.msra.mxu0 0.0
        %1335 = vmatprep.subr.mxu0 0.0
        %1336 = vmatpush1.msra.mxu0 0.0
        %1337 = vmatprep.subr.mxu0 0.0
        %1338 = vmatpush1.msra.mxu0 0.0
        %1339 = vmatprep.subr.mxu0 0.0
        %1340 = vmatpush1.msra.mxu0 0.0
        %1341 = vmatprep.subr.mxu0 0.0
        %1342 = vmatpush1.msra.mxu0 0.0
        %1343 = vmatprep.subr.mxu0 0.0
        %1344 = vmatpush1.msra.mxu0 0.0
        %1345 = vmatprep.subr.mxu0 0.0
        %1346 = vmatpush1.msra.mxu0 0.0
        %1347 = vmatprep.subr.mxu0 0.0
        %1348 = vmatpush1.msra.mxu0 0.0
        %1349 = vmatprep.subr.mxu0 0.0
        %1350 = vmatpush1.msra.mxu0 0.0
        %1351 = vmatprep.subr.mxu0 0.0
        %1352 = vmatpush1.msra.mxu0 0.0
        %1353 = vmatprep.subr.mxu0 0.0
        %1354 = vmatpush1.msra.mxu0 0.0
        %1355 = vmatprep.subr.mxu0 0.0
        %1356 = vmatpush1.msra.mxu0 0.0
        %1357 = vmatprep.subr.mxu0 0.0
        %1358 = vmatpush1.msra.mxu0 0.0
        %1359 = vmatprep.subr.mxu0 0.0
        %1360 = vmatpush1.msra.mxu0 0.0
        %1361 = vmatprep.subr.mxu0 0.0
        %1362 = vmatpush1.msra.mxu0 0.0
        %1363 = vmatprep.subr.mxu0 0.0
        %1364 = vmatpush1.msra.mxu0 %v1253
        %1365 = vmatprep.subr.mxu0 0.0
        %1366 = vmatpush2.msra.mxu0 0.0
        %1367 = vmatprep.subr.mxu0 0.0
        %1368 = vmatpush2.msra.mxu0 0.0
        %1369 = vmatprep.subr.mxu0 0.0
        %1370 = vmatpush2.msra.mxu0 0.0
        %1371 = vmatprep.subr.mxu0 0.0
        %1372 = vmatpush2.msra.mxu0 0.0
        %1373 = vmatprep.subr.mxu0 0.0
        %1374 = vmatpush2.msra.mxu0 0.0
        %1375 = vmatprep.subr.mxu0 0.0
        %1376 = vmatpush2.msra.mxu0 0.0
        %1377 = vmatprep.subr.mxu0 0.0
        %1378 = vmatpush2.msra.mxu0 0.0
        %1379 = vmatprep.subr.mxu0 0.0
        %1380 = vmatpush2.msra.mxu0 0.0
        %1381 = vmatprep.subr.mxu0 0.0
        %1382 = vmatpush2.msra.mxu0 0.0
        %1383 = vmatprep.subr.mxu0 0.0
        %1384 = vmatpush2.msra.mxu0 0.0
        %1385 = vmatprep.subr.mxu0 0.0
        %1386 = vmatpush2.msra.mxu0 0.0
        %1387 = vmatprep.subr.mxu0 0.0
        %1388 = vmatpush2.msra.mxu0 0.0
        %1389 = vmatprep.subr.mxu0 0.0
        %1390 = vmatpush2.msra.mxu0 0.0
        %1391 = vmatprep.subr.mxu0 0.0
        %1392 = vmatpush2.msra.mxu0 0.0
        %1393 = vmatprep.subr.mxu0 0.0
        %1394 = vmatpush2.msra.mxu0 0.0
        %1395 = vmatprep.subr.mxu0 0.0
        %1396 = vmatpush2.msra.mxu0 0.0
        %1397 = vmatprep.mubr.f32.mxu0 0.0
        %1398 = vmatmul.mubr.f32.gmra.mxu0 %v1331
        %v1399 = vpop.f32.mrf.mxu0
        %v1400 = vadd.f32 %v1327, %v1399
        %v1401 = vpop.f32.mrf.mxu0
        %1402 = vdwg.mxu0
        %s1403 = scalar_lea.vmem %s4, 16
        %v1404 = vld [vmem:[%s1403] sm:$0xff]
        %v1406 = vsel %vm1256, %v1250, 0
        %1408 = vmatprep.subr.mxu0 0.0
        %1409 = vmatpush1.msra.mxu0 0.0
        %1410 = vmatprep.subr.mxu0 0.0
        %1411 = vmatpush1.msra.mxu0 0.0
        %1412 = vmatprep.subr.mxu0 0.0
        %1413 = vmatpush1.msra.mxu0 0.0
        %1414 = vmatprep.subr.mxu0 0.0
        %1415 = vmatpush1.msra.mxu0 0.0
        %1416 = vmatprep.subr.mxu0 0.0
        %1417 = vmatpush1.msra.mxu0 0.0
        %1418 = vmatprep.subr.mxu0 0.0
        %1419 = vmatpush1.msra.mxu0 0.0
        %1420 = vmatprep.subr.mxu0 0.0
        %1421 = vmatpush1.msra.mxu0 0.0
        %1422 = vmatprep.subr.mxu0 0.0
        %1423 = vmatpush1.msra.mxu0 0.0
        %1424 = vmatprep.subr.mxu0 0.0
        %1425 = vmatpush1.msra.mxu0 0.0
        %1426 = vmatprep.subr.mxu0 0.0
        %1427 = vmatpush1.msra.mxu0 0.0
        %1428 = vmatprep.subr.mxu0 0.0
        %1429 = vmatpush1.msra.mxu0 0.0
        %1430 = vmatprep.subr.mxu0 0.0
        %1431 = vmatpush1.msra.mxu0 0.0
        %1432 = vmatprep.subr.mxu0 0.0
        %1433 = vmatpush1.msra.mxu0 0.0
        %1434 = vmatprep.subr.mxu0 0.0
        %1435 = vmatpush1.msra.mxu0 0.0
        %1436 = vmatprep.subr.mxu0 0.0
        %1437 = vmatpush1.msra.mxu0 0.0
        %1438 = vmatprep.subr.mxu0 0.0
        %1439 = vmatpush1.msra.mxu0 %v1404
        %1440 = vmatprep.subr.mxu0 0.0
        %1441 = vmatpush2.msra.mxu0 0.0
        %1442 = vmatprep.subr.mxu0 0.0
        %1443 = vmatpush2.msra.mxu0 0.0
        %1444 = vmatprep.subr.mxu0 0.0
        %1445 = vmatpush2.msra.mxu0 0.0
        %1446 = vmatprep.subr.mxu0 0.0
        %1447 = vmatpush2.msra.mxu0 0.0
        %1448 = vmatprep.subr.mxu0 0.0
        %1449 = vmatpush2.msra.mxu0 0.0
        %1450 = vmatprep.subr.mxu0 0.0
        %1451 = vmatpush2.msra.mxu0 0.0
        %1452 = vmatprep.subr.mxu0 0.0
        %1453 = vmatpush2.msra.mxu0 0.0
        %1454 = vmatprep.subr.mxu0 0.0
        %1455 = vmatpush2.msra.mxu0 0.0
        %1456 = vmatprep.subr.mxu0 0.0
        %1457 = vmatpush2.msra.mxu0 0.0
        %1458 = vmatprep.subr.mxu0 0.0
        %1459 = vmatpush2.msra.mxu0 0.0
        %1460 = vmatprep.subr.mxu0 0.0
        %1461 = vmatpush2.msra.mxu0 0.0
        %1462 = vmatprep.subr.mxu0 0.0
        %1463 = vmatpush2.msra.mxu0 0.0
        %1464 = vmatprep.subr.mxu0 0.0
        %1465 = vmatpush2.msra.mxu0 0.0
        %1466 = vmatprep.subr.mxu0 0.0
        %1467 = vmatpush2.msra.mxu0 0.0
        %1468 = vmatprep.subr.mxu0 0.0
        %1469 = vmatpush2.msra.mxu0 0.0
        %1470 = vmatprep.subr.mxu0 0.0
        %1471 = vmatpush2.msra.mxu0 0.0
        %1472 = vmatprep.mubr.f32.mxu0 0.0
        %1473 = vmatmul.mubr.f32.gmra.mxu0 %v1406
        %v1474 = vpop.f32.mrf.mxu0
        %v1475 = vadd.f32 0.0, %v1474
        %v1476 = vpop.f32.mrf.mxu0
        %1477 = vdwg.mxu0
        %v1478 = vadd.f32 %v1400, %v1475
        %s1479 = scalar_lea.vmem %s4, 24
        %v1480 = vld [vmem:[%s1479] sm:$0xff]
        %v1482 = vsel %vm1256, %v1252, 0
        %1484 = vmatprep.subr.mxu0 0.0
        %1485 = vmatpush1.msra.mxu0 0.0
        %1486 = vmatprep.subr.mxu0 0.0
        %1487 = vmatpush1.msra.mxu0 0.0
        %1488 = vmatprep.subr.mxu0 0.0
        %1489 = vmatpush1.msra.mxu0 0.0
        %1490 = vmatprep.subr.mxu0 0.0
        %1491 = vmatpush1.msra.mxu0 0.0
        %1492 = vmatprep.subr.mxu0 0.0
        %1493 = vmatpush1.msra.mxu0 0.0
        %1494 = vmatprep.subr.mxu0 0.0
        %1495 = vmatpush1.msra.mxu0 0.0
        %1496 = vmatprep.subr.mxu0 0.0
        %1497 = vmatpush1.msra.mxu0 0.0
        %1498 = vmatprep.subr.mxu0 0.0
        %1499 = vmatpush1.msra.mxu0 0.0
        %1500 = vmatprep.subr.mxu0 0.0
        %1501 = vmatpush1.msra.mxu0 0.0
        %1502 = vmatprep.subr.mxu0 0.0
        %1503 = vmatpush1.msra.mxu0 0.0
        %1504 = vmatprep.subr.mxu0 0.0
        %1505 = vmatpush1.msra.mxu0 0.0
        %1506 = vmatprep.subr.mxu0 0.0
        %1507 = vmatpush1.msra.mxu0 0.0
        %1508 = vmatprep.subr.mxu0 0.0
        %1509 = vmatpush1.msra.mxu0 0.0
        %1510 = vmatprep.subr.mxu0 0.0
        %1511 = vmatpush1.msra.mxu0 0.0
        %1512 = vmatprep.subr.mxu0 0.0
        %1513 = vmatpush1.msra.mxu0 0.0
        %1514 = vmatprep.subr.mxu0 0.0
        %1515 = vmatpush1.msra.mxu0 %v1480
        %1516 = vmatprep.subr.mxu0 0.0
        %1517 = vmatpush2.msra.mxu0 0.0
        %1518 = vmatprep.subr.mxu0 0.0
        %1519 = vmatpush2.msra.mxu0 0.0
        %1520 = vmatprep.subr.mxu0 0.0
        %1521 = vmatpush2.msra.mxu0 0.0
        %1522 = vmatprep.subr.mxu0 0.0
        %1523 = vmatpush2.msra.mxu0 0.0
        %1524 = vmatprep.subr.mxu0 0.0
        %1525 = vmatpush2.msra.mxu0 0.0
        %1526 = vmatprep.subr.mxu0 0.0
        %1527 = vmatpush2.msra.mxu0 0.0
        %1528 = vmatprep.subr.mxu0 0.0
        %1529 = vmatpush2.msra.mxu0 0.0
        %1530 = vmatprep.subr.mxu0 0.0
        %1531 = vmatpush2.msra.mxu0 0.0
        %1532 = vmatprep.subr.mxu0 0.0
        %1533 = vmatpush2.msra.mxu0 0.0
        %1534 = vmatprep.subr.mxu0 0.0
        %1535 = vmatpush2.msra.mxu0 0.0
        %1536 = vmatprep.subr.mxu0 0.0
        %1537 = vmatpush2.msra.mxu0 0.0
        %1538 = vmatprep.subr.mxu0 0.0
        %1539 = vmatpush2.msra.mxu0 0.0
        %1540 = vmatprep.subr.mxu0 0.0
        %1541 = vmatpush2.msra.mxu0 0.0
        %1542 = vmatprep.subr.mxu0 0.0
        %1543 = vmatpush2.msra.mxu0 0.0
        %1544 = vmatprep.subr.mxu0 0.0
        %1545 = vmatpush2.msra.mxu0 0.0
        %1546 = vmatprep.subr.mxu0 0.0
        %1547 = vmatpush2.msra.mxu0 0.0
        %1548 = vmatprep.mubr.f32.mxu0 0.0
        %1549 = vmatmul.mubr.f32.gmra.mxu0 %v1482
        %v1550 = vpop.f32.mrf.mxu0
        %v1551 = vadd.f32 0.0, %v1550
        %v1552 = vpop.f32.mrf.mxu0
        %1553 = vdwg.mxu0
        %v1554 = vadd.f32 %v1478, %v1551
        %v1555 = vld [vmem:[%s5] sm:$0x1]
        %v1557 = vlaneseq
        %v1558 = vshrl.u32 %v1557, 7
        %v1559 = vsub.s32 0, %v1558
        %v1560 = vrot.slane %v1555, %v1559
        %v1562 = vadd.f32 %v1554, %v1560
        %v1563 = vld [vmem:[%s400] sm:$0xff]
        %v1564 = vadd.f32 %v1563, %v1562
        %vm1565 = vcmask 261120
        %v1566 = vsel %vm1565, %v1564, 0.0
        %1567 = vadd.xlane.f32.xlu0 %v1566
        %v1568 = vpop.xlane.xlu0 %1567
        %v1569 = vrcp.pop 32.0
        %v1570 = vmul.f32 %v1568, %v1569
        %v1571 = vsub.f32 %v1564, %v1570
        %v1572 = vmul.f32 %v1571, %v1571
        %v1573 = vsel %vm1565, %v1572, 0.0
        %1574 = vadd.xlane.f32.xlu0 %v1573
        %v1575 = vpop.xlane.xlu0 %1574
        %v1576 = vmul.f32 %v1575, %v1569
        %v1577 = vadd.f32 %v1576, 1e-05
        %v1578 = vrsqrt.pop %v1577
        %v1579 = vmul.f32 %v1571, %v1578
        %v1580 = vld [vmem:[%s6] sm:$0x1]
        %v1582 = vlaneseq
        %v1583 = vshrl.u32 %v1582, 7
        %v1584 = vsub.s32 0, %v1583
        %v1585 = vrot.slane %v1580, %v1584
        %v1587 = vmul.f32 %v1579, %v1585
        %v1588 = vld [vmem:[%s7] sm:$0x1]
        %v1590 = vlaneseq
        %v1591 = vshrl.u32 %v1590, 7
        %v1592 = vsub.s32 0, %v1591
        %v1593 = vrot.slane %v1588, %v1592
        %v1595 = vadd.f32 %v1587, %v1593
        %1596 = vst.msk [vmem:[%s431] sm:$0xff] %vm1565, %v1595
      $region64: #{decoder_layer.7} parent=51 // pred_fallthru
        _
      %p1597 = scmp.lt.s32.totalorder %s24, 1
      %s1598 = scalar_select %p1597, %s24, 1
      %p1599 = scmp.lt.s32.totalorder %s25, 0
      %s1600 = scalar_select %p1599, %s25, 0
      %s1601 = sadd.s32 %s1600, %s1598
      %s1602 = smul.addr %s1601, 8
      %s1603 = scalar_lea.vmem %s8, %s1602
      // Predicated region
      $region65: #{decoder_layer.7} parent=51 // pred_check
        %p1604 = pneg %p254
      $region66: #{decoder_layer.7} parent=51 // pred_check_branch
        %1606 = sbr.rel (%p1604) target = $region68
      $region67: #{decoder_layer.7} parent=51 // pred_region
        _
      $region68: #{decoder_layer.7} parent=51 // pred_fallthru
        _
    $region52: #{decoder_layer.7} parent=5 // pred_fallthru
      _
    %p1607 = scmp.le.s32.totalorder 2, %s14
    // Predicated region
    $region69: #{decoder_layer.7} parent=5 // pred_check
      %p1608 = pneg %p1607
    $region70: #{decoder_layer.7} parent=5 // pred_check_branch
      %1610 = sbr.rel (%p1608) target = $region72
    $region71: #{decoder_layer.7} parent=5 // pred_region
      %s1611 = ssub.s32 %s14, 2
      // Predicated region
      $region73: #{decoder_layer.7} parent=71 // pred_check
        %p1612 = pneg %p260
      $region74: #{decoder_layer.7} parent=71 // pred_check_branch
        %1614 = sbr.rel (%p1612) target = $region76
      $region75: #{decoder_layer.7} parent=71 // pred_region
        %p1615 = scmp.lt.s32.totalorder %s27, 1
        %s1616 = scalar_select %p1615, %s27, 1
        %p1617 = scmp.lt.s32.totalorder %s28, 0
        %s1618 = scalar_select %p1617, %s28, 0
        %s1619 = sadd.s32 %s1618, %s1616
        %s1620 = smul.addr %s1619, 8
        %s1621 = scalar_lea.vmem %s8, %s1620
      $region76: #{decoder_layer.7} parent=71 // pred_fallthru
        _
    $region72: #{decoder_layer.7} parent=5 // pred_fallthru
      _
  $region6: #{decoder_layer.7} parent=0 // loop_footer
    %s18 = sadd.s32 1, %s14
  $region7: #{decoder_layer.7} parent=0 // loop_footer_branch
    %13 = sbr.rel target = $region3
  $region8: #{decoder_layer.7} parent=0 // loop_exit
    _

// kernel: decoder_layer.11
$region0: #{decoder_layer.11}
  #allocation0 [shape = 'u32[]', space=smem, size = 0x4, offset = 0x4, fixed_abs, tag = 'smem constant byte address 0x4 - core index']
  #allocation1 [shape = 'u32[144,128]{1,0:T(1,128)}', space=vmem, size = 0x12000, scoped, tag = 'internal scratch']
  #allocation2 [shape = 'f32[16,32]{1,0:T(8,128)}', space=vmem, size = 0x2000, scoped, tag = 'scratch operand']
  %s0 = inlined_call_operand.vmem [shape: f32[16,32], index: 0, kind: input, shape index: {}]
  %s1 = inlined_call_operand.vmem [shape: f32[32,64], index: 1, kind: input, shape index: {}]
  %s2 = inlined_call_operand.vmem [shape: f32[1,64], index: 2, kind: input, shape index: {}]
  %s3 = inlined_call_operand.vmem [shape: f32[64,32], index: 3, kind: input, shape index: {}]
  %s4 = inlined_call_operand.vmem [shape: f32[1,32], index: 4, kind: input, shape index: {}]
  %s5 = inlined_call_operand.vmem [shape: f32[1,32], index: 5, kind: input, shape index: {}]
  %s6 = inlined_call_operand.vmem [shape: f32[1,32], index: 6, kind: input, shape index: {}]
  %s7 = inlined_call_operand.hbm [shape: f32[16,32], index: 7, kind: output, shape index: {}]
  %s8 = sld [smem:[#allocation0]]
  $region46: #{decoder_layer.11} parent=0
    _
  %s10 = ssub.s32 1, %s8
  %s11 = scalar_select 0, %s10, %s8
  $region1: #{decoder_layer.11} parent=0
    #allocation3 [shape = 'u8[8192]{0}', space=vmem, size = 0x2000, scoped, tag = 'output window, operand 0, single buffered']
    #allocation4 [shape = 's32[1]{0}', space=sflag, size = 0x4, scoped, tag = 'scoped memory for decoder_layer.11']
    %12 = vsyncpa [#allocation4], 0
    // Predicated region
    $region2: #{decoder_layer.11} parent=1 // pred_check
      _
    $region3: #{decoder_layer.11} parent=1 // pred_check_branch
      %14 = sbr.rel (0) target = $region5
    $region4: #{decoder_layer.11} parent=1 // pred_region
      _
    $region5: #{decoder_layer.11} parent=1 // pred_fallthru
      _
    // Predicated region
    $region6: #{decoder_layer.11} parent=1 // pred_check
      _
    $region7: #{decoder_layer.11} parent=1 // pred_check_branch
      %16 = sbr.rel (0) target = $region9
    $region8: #{decoder_layer.11} parent=1 // pred_region
      _
    $region9: #{decoder_layer.11} parent=1 // pred_fallthru
      _
    // Predicated region
    $region10: #{decoder_layer.11} parent=1 // pred_check
      _
    $region11: #{decoder_layer.11} parent=1 // pred_check_branch
      %18 = sbr.rel (0) target = $region13
    $region12: #{decoder_layer.11} parent=1 // pred_region
      _
    $region13: #{decoder_layer.11} parent=1 // pred_fallthru
      _
    // Predicated region
    $region14: #{decoder_layer.11} parent=1 // pred_check
      _
    $region15: #{decoder_layer.11} parent=1 // pred_check_branch
      %20 = sbr.rel (0) target = $region17
    $region16: #{decoder_layer.11} parent=1 // pred_region
      _
    $region17: #{decoder_layer.11} parent=1 // pred_fallthru
      _
    // Predicated region
    $region18: #{decoder_layer.11} parent=1 // pred_check
      _
    $region19: #{decoder_layer.11} parent=1 // pred_check_branch
      %22 = sbr.rel (0) target = $region21
    $region20: #{decoder_layer.11} parent=1 // pred_region
      _
    $region21: #{decoder_layer.11} parent=1 // pred_fallthru
      _
    // Predicated region
    $region22: #{decoder_layer.11} parent=1 // pred_check
      _
    $region23: #{decoder_layer.11} parent=1 // pred_check_branch
      %24 = sbr.rel (0) target = $region25
    $region24: #{decoder_layer.11} parent=1 // pred_region
      _
    $region25: #{decoder_layer.11} parent=1 // pred_fallthru
      _
    // Predicated region
    $region26: #{decoder_layer.11} parent=1 // pred_check
      _
    $region27: #{decoder_layer.11} parent=1 // pred_check_branch
      %26 = sbr.rel (0) target = $region29
    $region28: #{decoder_layer.11} parent=1 // pred_region
      _
    $region29: #{decoder_layer.11} parent=1 // pred_fallthru
      _
    %p27 = scmp.eq.s32.totalorder 0, 0
    // Predicated region
    $region30: #{decoder_layer.11} parent=1 // pred_check
      %p28 = pneg %p27
    $region31: #{decoder_layer.11} parent=1 // pred_check_branch
      %30 = sbr.rel (%p28) target = $region33
    $region32: #{decoder_layer.11} parent=1 // pred_region
      %vm31 = vcmask 261120
      %32 = vst.msk [vmem:[#allocation2] sm:$0xff] %vm31, 0.0
      %33 = vst.msk [vmem:[#allocation2 + $0x8] sm:$0xff] %vm31, 0.0
    $region33: #{decoder_layer.11} parent=1 // pred_fallthru
      _
    %v34 = vld [vmem:[%s0] sm:$0xff]
    %v35 = vld [vmem:[%s0 + $0x8] sm:$0xff]
    %v36 = vld [vmem:[%s1] sm:$0xff]
    %v37 = vld [vmem:[%s1 + $0x8] sm:$0xff]
    %v38 = vld [vmem:[%s1 + $0x10] sm:$0xff]
    %v39 = vld [vmem:[%s1 + $0x18] sm:$0xff]
    %v40 = vld [vmem:[%s2] sm:$0x1]
    %v42 = vlaneseq
    %v43 = vshrl.u32 %v42, 7
    %v44 = vsub.s32 0, %v43
    %v45 = vrot.slane %v40, %v44
    %vm47 = vcmask 261120
    %v49 = vsel %vm47, %v34, 0
    %v52 = vsel %vm47, %v35, 0
    %54 = vmatprep.subr.mxu0 0.0
    %55 = vmatpush1.msra.mxu0 0.0
    %56 = vmatprep.subr.mxu0 0.0
    %57 = vmatpush1.msra.mxu0 0.0
    %58 = vmatprep.subr.mxu0 0.0
    %59 = vmatpush1.msra.mxu0 0.0
    %60 = vmatprep.subr.mxu0 0.0
    %61 = vmatpush1.msra.mxu0 0.0
    %62 = vmatprep.subr.mxu0 0.0
    %63 = vmatpush1.msra.mxu0 0.0
    %64 = vmatprep.subr.mxu0 0.0
    %65 = vmatpush1.msra.mxu0 0.0
    %66 = vmatprep.subr.mxu0 0.0
    %67 = vmatpush1.msra.mxu0 0.0
    %68 = vmatprep.subr.mxu0 0.0
    %69 = vmatpush1.msra.mxu0 0.0
    %70 = vmatprep.subr.mxu0 0.0
    %71 = vmatpush1.msra.mxu0 0.0
    %72 = vmatprep.subr.mxu0 0.0
    %73 = vmatpush1.msra.mxu0 0.0
    %74 = vmatprep.subr.mxu0 0.0
    %75 = vmatpush1.msra.mxu0 0.0
    %76 = vmatprep.subr.mxu0 0.0
    %77 = vmatpush1.msra.mxu0 0.0
    %78 = vmatprep.subr.mxu0 0.0
    %79 = vmatpush1.msra.mxu0 %v39
    %80 = vmatprep.subr.mxu0 0.0
    %81 = vmatpush1.msra.mxu0 %v38
    %82 = vmatprep.subr.mxu0 0.0
    %83 = vmatpush1.msra.mxu0 %v37
    %84 = vmatprep.subr.mxu0 0.0
    %85 = vmatpush1.msra.mxu0 %v36
    %86 = vmatprep.subr.mxu0 0.0
    %87 = vmatpush2.msra.mxu0 0.0
    %88 = vmatprep.subr.mxu0 0.0
    %89 = vmatpush2.msra.mxu0 0.0
    %90 = vmatprep.subr.mxu0 0.0
    %91 = vmatpush2.msra.mxu0 0.0
    %92 = vmatprep.subr.mxu0 0.0
    %93 = vmatpush2.msra.mxu0 0.0
    %94 = vmatprep.subr.mxu0 0.0
    %95 = vmatpush2.msra.mxu0 0.0
    %96 = vmatprep.subr.mxu0 0.0
    %97 = vmatpush2.msra.mxu0 0.0
    %98 = vmatprep.subr.mxu0 0.0
    %99 = vmatpush2.msra.mxu0 0.0
    %100 = vmatprep.subr.mxu0 0.0
    %101 = vmatpush2.msra.mxu0 0.0
    %102 = vmatprep.subr.mxu0 0.0
    %103 = vmatpush2.msra.mxu0 0.0
    %104 = vmatprep.subr.mxu0 0.0
    %105 = vmatpush2.msra.mxu0 0.0
    %106 = vmatprep.subr.mxu0 0.0
    %107 = vmatpush2.msra.mxu0 0.0
    %108 = vmatprep.subr.mxu0 0.0
    %109 = vmatpush2.msra.mxu0 0.0
    %110 = vmatprep.subr.mxu0 0.0
    %111 = vmatpush2.msra.mxu0 0.0
    %112 = vmatprep.subr.mxu0 0.0
    %113 = vmatpush2.msra.mxu0 0.0
    %114 = vmatprep.subr.mxu0 0.0
    %115 = vmatpush2.msra.mxu0 0.0
    %116 = vmatprep.subr.mxu0 0.0
    %117 = vmatpush2.msra.mxu0 0.0
    %118 = vmatprep.mubr.f32.mxu0 0.0
    %119 = vmatmul.mubr.f32.gmra.mxu0 %v49
    %v120 = vpop.f32.mrf.mxu0
    %v121 = vadd.f32 %v45, %v120
    %v122 = vpop.f32.mrf.mxu0
    %123 = vmatprep.mubr.f32.mxu0 0.0
    %124 = vmatmul.mubr.f32.gmra.mxu0 %v52
    %v125 = vpop.f32.mrf.mxu0
    %v126 = vadd.f32 %v45, %v125
    %v127 = vpop.f32.mrf.mxu0
    %128 = vdwg.mxu0
    %v129 = vmax.f32 %v121, 0.0
    %v130 = vmax.f32 %v126, 0.0
    %v131 = vld [vmem:[#allocation2] sm:$0xff]
    %v132 = vld [vmem:[#allocation2 + $0x8] sm:$0xff]
    %v133 = vld [vmem:[%s3] sm:$0xff]
    %v134 = vld [vmem:[%s3 + $0x8] sm:$0xff]
    %v135 = vld [vmem:[%s3 + $0x10] sm:$0xff]
    %v136 = vld [vmem:[%s3 + $0x18] sm:$0xff]
    %v137 = vld [vmem:[%s3 + $0x20] sm:$0xff]
    %v138 = vld [vmem:[%s3 + $0x28] sm:$0xff]
    %v139 = vld [vmem:[%s3 + $0x30] sm:$0xff]
    %v140 = vld [vmem:[%s3 + $0x38] sm:$0xff]
    %vm141 = vcmask 523264
    %v143 = vsel %vm141, %v129, 0
    %v146 = vsel %vm141, %v130, 0
    %148 = vmatprep.subr.mxu0 0.0
    %149 = vmatpush1.msra.mxu0 0.0
    %150 = vmatprep.subr.mxu0 0.0
    %151 = vmatpush1.msra.mxu0 0.0
    %152 = vmatprep.subr.mxu0 0.0
    %153 = vmatpush1.msra.mxu0 0.0
    %154 = vmatprep.subr.mxu0 0.0
    %155 = vmatpush1.msra.mxu0 0.0
    %156 = vmatprep.subr.mxu0 0.0
    %157 = vmatpush1.msra.mxu0 0.0
    %158 = vmatprep.subr.mxu0 0.0
    %159 = vmatpush1.msra.mxu0 0.0
    %160 = vmatprep.subr.mxu0 0.0
    %161 = vmatpush1.msra.mxu0 0.0
    %162 = vmatprep.subr.mxu0 0.0
    %163 = vmatpush1.msra.mxu0 0.0
    %164 = vmatprep.subr.mxu0 0.0
    %165 = vmatpush1.msra.mxu0 %v140
    %166 = vmatprep.subr.mxu0 0.0
    %167 = vmatpush1.msra.mxu0 %v139
    %168 = vmatprep.subr.mxu0 0.0
    %169 = vmatpush1.msra.mxu0 %v138
    %170 = vmatprep.subr.mxu0 0.0
    %171 = vmatpush1.msra.mxu0 %v137
    %172 = vmatprep.subr.mxu0 0.0
    %173 = vmatpush1.msra.mxu0 %v136
    %174 = vmatprep.subr.mxu0 0.0
    %175 = vmatpush1.msra.mxu0 %v135
    %176 = vmatprep.subr.mxu0 0.0
    %177 = vmatpush1.msra.mxu0 %v134
    %178 = vmatprep.subr.mxu0 0.0
    %179 = vmatpush1.msra.mxu0 %v133
    %180 = vmatprep.subr.mxu0 0.0
    %181 = vmatpush2.msra.mxu0 0.0
    %182 = vmatprep.subr.mxu0 0.0
    %183 = vmatpush2.msra.mxu0 0.0
    %184 = vmatprep.subr.mxu0 0.0
    %185 = vmatpush2.msra.mxu0 0.0
    %186 = vmatprep.subr.mxu0 0.0
    %187 = vmatpush2.msra.mxu0 0.0
    %188 = vmatprep.subr.mxu0 0.0
    %189 = vmatpush2.msra.mxu0 0.0
    %190 = vmatprep.subr.mxu0 0.0
    %191 = vmatpush2.msra.mxu0 0.0
    %192 = vmatprep.subr.mxu0 0.0
    %193 = vmatpush2.msra.mxu0 0.0
    %194 = vmatprep.subr.mxu0 0.0
    %195 = vmatpush2.msra.mxu0 0.0
    %196 = vmatprep.subr.mxu0 0.0
    %197 = vmatpush2.msra.mxu0 0.0
    %198 = vmatprep.subr.mxu0 0.0
    %199 = vmatpush2.msra.mxu0 0.0
    %200 = vmatprep.subr.mxu0 0.0
    %201 = vmatpush2.msra.mxu0 0.0
    %202 = vmatprep.subr.mxu0 0.0
    %203 = vmatpush2.msra.mxu0 0.0
    %204 = vmatprep.subr.mxu0 0.0
    %205 = vmatpush2.msra.mxu0 0.0
    %206 = vmatprep.subr.mxu0 0.0
    %207 = vmatpush2.msra.mxu0 0.0
    %208 = vmatprep.subr.mxu0 0.0
    %209 = vmatpush2.msra.mxu0 0.0
    %210 = vmatprep.subr.mxu0 0.0
    %211 = vmatpush2.msra.mxu0 0.0
    %212 = vmatprep.mubr.f32.mxu0 0.0
    %213 = vmatmul.mubr.f32.gmra.mxu0 %v143
    %v214 = vpop.f32.mrf.mxu0
    %v215 = vadd.f32 0.0, %v214
    %v216 = vpop.f32.mrf.mxu0
    %217 = vmatprep.mubr.f32.mxu0 0.0
    %218 = vmatmul.mubr.f32.gmra.mxu0 %v146
    %v219 = vpop.f32.mrf.mxu0
    %v220 = vadd.f32 0.0, %v219
    %v221 = vpop.f32.mrf.mxu0
    %222 = vdwg.mxu0
    %v223 = vadd.f32 %v131, %v215
    %v224 = vadd.f32 %v132, %v220
    %225 = vst.msk [vmem:[#allocation2] sm:$0xff] %vm47, %v223
    %226 = vst.msk [vmem:[#allocation2 + $0x8] sm:$0xff] %vm47, %v224
    // Predicated region
    $region34: #{decoder_layer.11} parent=1 // pred_check
      %p227 = pneg %p27
    $region35: #{decoder_layer.11} parent=1 // pred_check_branch
      %229 = sbr.rel (%p227) target = $region37
    $region36: #{decoder_layer.11} parent=1 // pred_region
      %v230 = vld [vmem:[#allocation2] sm:$0xff]
      %v231 = vld [vmem:[#allocation2 + $0x8] sm:$0xff]
      %v232 = vadd.f32 %v34, %v230
      %v233 = vadd.f32 %v35, %v231
      %v234 = vld [vmem:[%s4] sm:$0x1]
      %v236 = vlaneseq
      %v237 = vshrl.u32 %v236, 7
      %v238 = vsub.s32 0, %v237
      %v239 = vrot.slane %v234, %v238
      %v241 = vadd.f32 %v232, %v239
      %v242 = vadd.f32 %v233, %v239
      %v243 = vsel %vm47, %v241, 0.0
      %244 = vadd.xlane.f32.xlu0 %v243
      %v245 = vpop.xlane.xlu0 %244
      %v246 = vsel %vm47, %v242, 0.0
      %247 = vadd.xlane.f32.xlu0 %v246
      %v248 = vpop.xlane.xlu0 %247
      %v249 = vrcp.pop 32.0
      %v250 = vmul.f32 %v245, %v249
      %v251 = vmul.f32 %v248, %v249
      %v252 = vsub.f32 %v241, %v250
      %v253 = vsub.f32 %v242, %v251
      %v254 = vmul.f32 %v252, %v252
      %v255 = vmul.f32 %v253, %v253
      %v256 = vsel %vm47, %v254, 0.0
      %257 = vadd.xlane.f32.xlu0 %v256
      %v258 = vpop.xlane.xlu0 %257
      %v259 = vsel %vm47, %v255, 0.0
      %260 = vadd.xlane.f32.xlu0 %v259
      %v261 = vpop.xlane.xlu0 %260
      %v262 = vmul.f32 %v258, %v249
      %v263 = vmul.f32 %v261, %v249
      %v264 = vadd.f32 %v262, 1e-05
      %v265 = vadd.f32 %v263, 1e-05
      %v266 = vrsqrt.pop %v264
      %v267 = vrsqrt.pop %v265
      %v268 = vmul.f32 %v252, %v266
      %v269 = vmul.f32 %v253, %v267
      %v270 = vld [vmem:[%s5] sm:$0x1]
      %v272 = vlaneseq
      %v273 = vshrl.u32 %v272, 7
      %v274 = vsub.s32 0, %v273
      %v275 = vrot.slane %v270, %v274
      %v277 = vmul.f32 %v268, %v275
      %v278 = vmul.f32 %v269, %v275
      %v279 = vld [vmem:[%s6] sm:$0x1]
      %v281 = vlaneseq
      %v282 = vshrl.u32 %v281, 7
      %v283 = vsub.s32 0, %v282
      %v284 = vrot.slane %v279, %v283
      %v286 = vadd.f32 %v277, %v284
      %v287 = vadd.f32 %v278, %v284
      %288 = vst.msk [vmem:[#allocation3] sm:$0xff] %vm47, %v286
      %289 = vst.msk [vmem:[#allocation3 + $0x8] sm:$0xff] %vm47, %v287
    $region37: #{decoder_layer.11} parent=1 // pred_fallthru
      _
    // Predicated region
    $region38: #{decoder_layer.11} parent=1 // pred_check
      _
    $region39: #{decoder_layer.11} parent=1 // pred_check_branch
      %291 = sbr.rel (0) target = $region41
    $region40: #{decoder_layer.11} parent=1 // pred_region
      %s293 = ssub.s32 256, 256
      %294 = vsyncadd [#allocation4], %s293
      %s295 = sshll.u32 [#allocation3], 4
      %s296 = int_to_ptr.vmem [resolvable:$true] %s295
      %301 = dma.vmem_to_hbm [thread:$0]  %s296, 256, %s7, [#allocation4], 128, 128, 8
    $region41: #{decoder_layer.11} parent=1 // pred_fallthru
      _
    // Predicated region
    $region42: #{decoder_layer.11} parent=1 // pred_check
      _
    $region43: #{decoder_layer.11} parent=1 // pred_check_branch
      %303 = sbr.rel (0) target = $region45
    $region44: #{decoder_layer.11} parent=1 // pred_region
      %304 = dma.done [#allocation4], 256
    $region45: #{decoder_layer.11} parent=1 // pred_fallthru
      _
    %305 = vsyncpa [#allocation4], 1

// kernel: decoder_layer.10
$region0: #{decoder_layer.10}
  #allocation0 [shape = 'u32[]', space=smem, size = 0x4, offset = 0x4, fixed_abs, tag = 'smem constant byte address 0x4 - core index']
  #allocation1 [shape = 'u32[144,128]{1,0:T(1,128)}', space=vmem, size = 0x12000, scoped, tag = 'internal scratch']
  #allocation2 [shape = 'f32[4,8,1]{2,1,0:T(8,128)}', space=vmem, size = 0x4000, scoped, tag = 'scratch operand']
  #allocation3 [shape = 'f32[4,8,1]{2,1,0:T(8,128)}', space=vmem, size = 0x4000, scoped, tag = 'scratch operand']
  #allocation4 [shape = 'f32[4,8,8]{2,1,0:T(8,128)}', space=vmem, size = 0x4000, scoped, tag = 'scratch operand']
  %s0 = inlined_call_operand.vmem [shape: f32[2,8,32], index: 0, kind: input, shape index: {}]
  %s1 = inlined_call_operand.vmem [shape: f32[2,4,8,8], index: 1, kind: input, shape index: {}]
  %s2 = inlined_call_operand.vmem [shape: f32[2,4,8,8], index: 2, kind: input, shape index: {}]
  %s3 = inlined_call_operand.vmem [shape: f32[2,4,8,8], index: 3, kind: input, shape index: {}]
  %s4 = inlined_call_operand.vmem [shape: f32[2,1,8], index: 4, kind: input, shape index: {}]
  %s5 = inlined_call_operand.vmem [shape: f32[4,8,32], index: 5, kind: input, shape index: {}]
  %s6 = inlined_call_operand.vmem [shape: f32[1,32], index: 6, kind: input, shape index: {}]
  %s7 = inlined_call_operand.vmem [shape: f32[1,32], index: 7, kind: input, shape index: {}]
  %s8 = inlined_call_operand.vmem [shape: f32[1,32], index: 8, kind: input, shape index: {}]
  %s9 = inlined_call_operand.vmem [shape: f32[2,8,32], index: 9, kind: output, shape index: {}]
  %s10 = sld [smem:[#allocation0]]
  $region77: #{decoder_layer.10} parent=0
    _
  %s12 = ssub.s32 1, %s10
  %s13 = scalar_select 0, %s12, %s10
  loop: start=0, step=1, limit=4
  $region2: #{decoder_layer.10} parent=0 // loop_pre_header
    _
  $region3: #{decoder_layer.10} parent=0 // loop_header
    %s15 = sphi 0, %s19
    %p16 = scmp.ge.s32.totalorder %s15, 4
    %s22 = sphi 0, %s41
    %s23 = sphi 0, %s37
    %s24 = sphi 0, %s33
    %s25 = sphi 0, %s22
    %s26 = sphi 0, %s23
    %s27 = sphi 0, %s24
    %s28 = sphi 0, %s25
    %s29 = sphi 0, %s26
    %s30 = sphi 0, %s27
    %s46 = sphi 0, %s48
    %s49 = sphi 0, %s46
    %s50 = sphi 0, %s49
    %s66 = sphi 0, %s50
    %s74 = sphi 0, %s76
    %s77 = sphi 0, %s74
    %s78 = sphi 0, %s77
    %s94 = sphi 0, %s78
    %s102 = sphi 0, %s104
    %s105 = sphi 0, %s102
    %s106 = sphi 0, %s105
    %s122 = sphi 0, %s106
    %s130 = sphi 0, %s132
    %s133 = sphi 0, %s130
    %s134 = sphi 0, %s133
    %s150 = sphi 0, %s134
    %s158 = sphi 0, %s160
    %s161 = sphi 0, %s158
    %s162 = sphi 0, %s161
    %s178 = sphi 0, %s162
    %s182 = sphi 0, %s182
    %s184 = sphi 0, %s182
    %s185 = sphi 0, %s184
    %s199 = sphi 0, %s185
    %s203 = sphi 0, %s203
    %s205 = sphi 0, %s203
    %s206 = sphi 0, %s205
    %s220 = sphi 0, %s206
    %s224 = sphi 0, %s224
    %s226 = sphi 0, %s224
    %s227 = sphi 0, %s226
    %s241 = sphi 0, %s227
    %s245 = sphi 0, %s245
    %s247 = sphi 0, %s245
    %s248 = sphi 0, %s247
    %s262 = sphi 0, %s248
    %s270 = sphi 0, %s272
    %s273 = sphi 0, %s270
    %s274 = sphi 0, %s273
    %s290 = sphi 0, %s274
  $region4: #{decoder_layer.10} parent=0 // loop_header_branch
    %18 = sbr.rel (%p16) target = $region8
  $region5: #{decoder_layer.10} parent=0 // loop_body
    %s20 = ssub.s32 %s15, 1
    %s21 = ssub.s32 %s15, 2
    %s31 = sadd.s32 1, %s24
    %p32 = scmp.ge.s32.totalorder %s31, 1
    %s33 = scalar_select %p32, 0, %s31
    %s34 = sadd.s32 1, %s23
    %s35 = scalar_select %p32, %s34, %s23
    %p36 = scmp.ge.s32.totalorder %s35, 1
    %s37 = scalar_select %p36, 0, %s35
    %s38 = sadd.s32 1, %s22
    %s39 = scalar_select %p36, %s38, %s22
    %p40 = scmp.ge.s32.totalorder %s39, 2
    %s41 = scalar_select %p40, 0, %s39
    %s42 = ssub.s32 %s22, %s41
    %s43 = ssub.s32 %s23, %s37
    %s44 = sor.u32 %s42, %s43
    %p45 = scmp.eq.s32.totalorder %s44, 0
    %s47 = sadd.s32 %s46, 1
    %s48 = scalar_select %p45, %s46, %s47
    %p51 = pneg %p45
    %p52 = scmp.eq.s32.totalorder %s15, 1
    %p53 = por %p51, %p52
    %p54 = scmp.ne.s32.totalorder %s46, %s49
    %p55 = scmp.eq.s32.totalorder %s15, 0
    %p56 = por %p54, %p55
    %p57 = scmp.ne.s32.totalorder %s46, %s49
    %p58 = scmp.eq.s32.totalorder %s20, 1
    %p59 = por %p57, %p58
    %p60 = scmp.ne.s32.totalorder %s49, %s50
    %p61 = scmp.eq.s32.totalorder %s20, 0
    %p62 = por %p60, %p61
    %p63 = scmp.ne.s32.totalorder %s49, %s50
    %p64 = scmp.eq.s32.totalorder %s21, 1
    %p65 = por %p63, %p64
    %p67 = scmp.ne.s32.totalorder %s50, %s66
    %p68 = scmp.eq.s32.totalorder %s21, 0
    %p69 = por %p67, %p68
    %s70 = ssub.s32 %s22, %s41
    %s71 = ssub.s32 %s23, %s37
    %s72 = sor.u32 %s70, %s71
    %p73 = scmp.eq.s32.totalorder %s72, 0
    %s75 = sadd.s32 %s74, 1
    %s76 = scalar_select %p73, %s74, %s75
    %p79 = pneg %p73
    %p80 = scmp.eq.s32.totalorder %s15, 1
    %p81 = por %p79, %p80
    %p82 = scmp.ne.s32.totalorder %s74, %s77
    %p83 = scmp.eq.s32.totalorder %s15, 0
    %p84 = por %p82, %p83
    %p85 = scmp.ne.s32.totalorder %s74, %s77
    %p86 = scmp.eq.s32.totalorder %s20, 1
    %p87 = por %p85, %p86
    %p88 = scmp.ne.s32.totalorder %s77, %s78
    %p89 = scmp.eq.s32.totalorder %s20, 0
    %p90 = por %p88, %p89
    %p91 = scmp.ne.s32.totalorder %s77, %s78
    %p92 = scmp.eq.s32.totalorder %s21, 1
    %p93 = por %p91, %p92
    %p95 = scmp.ne.s32.totalorder %s78, %s94
    %p96 = scmp.eq.s32.totalorder %s21, 0
    %p97 = por %p95, %p96
    %s98 = ssub.s32 %s22, %s41
    %s99 = ssub.s32 %s24, %s33
    %s100 = sor.u32 %s98, %s99
    %p101 = scmp.eq.s32.totalorder %s100, 0
    %s103 = sadd.s32 %s102, 1
    %s104 = scalar_select %p101, %s102, %s103
    %p107 = pneg %p101
    %p108 = scmp.eq.s32.totalorder %s15, 1
    %p109 = por %p107, %p108
    %p110 = scmp.ne.s32.totalorder %s102, %s105
    %p111 = scmp.eq.s32.totalorder %s15, 0
    %p112 = por %p110, %p111
    %p113 = scmp.ne.s32.totalorder %s102, %s105
    %p114 = scmp.eq.s32.totalorder %s20, 1
    %p115 = por %p113, %p114
    %p116 = scmp.ne.s32.totalorder %s105, %s106
    %p117 = scmp.eq.s32.totalorder %s20, 0
    %p118 = por %p116, %p117
    %p119 = scmp.ne.s32.totalorder %s105, %s106
    %p120 = scmp.eq.s32.totalorder %s21, 1
    %p121 = por %p119, %p120
    %p123 = scmp.ne.s32.totalorder %s106, %s122
    %p124 = scmp.eq.s32.totalorder %s21, 0
    %p125 = por %p123, %p124
    %s126 = ssub.s32 %s22, %s41
    %s127 = ssub.s32 %s24, %s33
    %s128 = sor.u32 %s126, %s127
    %p129 = scmp.eq.s32.totalorder %s128, 0
    %s131 = sadd.s32 %s130, 1
    %s132 = scalar_select %p129, %s130, %s131
    %p135 = pneg %p129
    %p136 = scmp.eq.s32.totalorder %s15, 1
    %p137 = por %p135, %p136
    %p138 = scmp.ne.s32.totalorder %s130, %s133
    %p139 = scmp.eq.s32.totalorder %s15, 0
    %p140 = por %p138, %p139
    %p141 = scmp.ne.s32.totalorder %s130, %s133
    %p142 = scmp.eq.s32.totalorder %s20, 1
    %p143 = por %p141, %p142
    %p144 = scmp.ne.s32.totalorder %s133, %s134
    %p145 = scmp.eq.s32.totalorder %s20, 0
    %p146 = por %p144, %p145
    %p147 = scmp.ne.s32.totalorder %s133, %s134
    %p148 = scmp.eq.s32.totalorder %s21, 1
    %p149 = por %p147, %p148
    %p151 = scmp.ne.s32.totalorder %s134, %s150
    %p152 = scmp.eq.s32.totalorder %s21, 0
    %p153 = por %p151, %p152
    %s154 = ssub.s32 %s22, %s41
    %s155 = ssub.s32 %s24, %s33
    %s156 = sor.u32 %s154, %s155
    %p157 = scmp.eq.s32.totalorder %s156, 0
    %s159 = sadd.s32 %s158, 1
    %s160 = scalar_select %p157, %s158, %s159
    %p163 = pneg %p157
    %p164 = scmp.eq.s32.totalorder %s15, 1
    %p165 = por %p163, %p164
    %p166 = scmp.ne.s32.totalorder %s158, %s161
    %p167 = scmp.eq.s32.totalorder %s15, 0
    %p168 = por %p166, %p167
    %p169 = scmp.ne.s32.totalorder %s158, %s161
    %p170 = scmp.eq.s32.totalorder %s20, 1
    %p171 = por %p169, %p170
    %p172 = scmp.ne.s32.totalorder %s161, %s162
    %p173 = scmp.eq.s32.totalorder %s20, 0
    %p174 = por %p172, %p173
    %p175 = scmp.ne.s32.totalorder %s161, %s162
    %p176 = scmp.eq.s32.totalorder %s21, 1
    %p177 = por %p175, %p176
    %p179 = scmp.ne.s32.totalorder %s162, %s178
    %p180 = scmp.eq.s32.totalorder %s21, 0
    %p181 = por %p179, %p180
    %s183 = sadd.s32 %s182, 1
    %p186 = scmp.eq.s32.totalorder %s15, 1
    %p187 = scmp.ne.s32.totalorder %s182, %s184
    %p188 = scmp.eq.s32.totalorder %s15, 0
    %p189 = por %p187, %p188
    %p190 = scmp.ne.s32.totalorder %s182, %s184
    %p191 = scmp.eq.s32.totalorder %s20, 1
    %p192 = por %p190, %p191
    %p193 = scmp.ne.s32.totalorder %s184, %s185
    %p194 = scmp.eq.s32.totalorder %s20, 0
    %p195 = por %p193, %p194
    %p196 = scmp.ne.s32.totalorder %s184, %s185
    %p197 = scmp.eq.s32.totalorder %s21, 1
    %p198 = por %p196, %p197
    %p200 = scmp.ne.s32.totalorder %s185, %s199
    %p201 = scmp.eq.s32.totalorder %s21, 0
    %p202 = por %p200, %p201
    %s204 = sadd.s32 %s203, 1
    %p207 = scmp.eq.s32.totalorder %s15, 1
    %p208 = scmp.ne.s32.totalorder %s203, %s205
    %p209 = scmp.eq.s32.totalorder %s15, 0
    %p210 = por %p208, %p209
    %p211 = scmp.ne.s32.totalorder %s203, %s205
    %p212 = scmp.eq.s32.totalorder %s20, 1
    %p213 = por %p211, %p212
    %p214 = scmp.ne.s32.totalorder %s205, %s206
    %p215 = scmp.eq.s32.totalorder %s20, 0
    %p216 = por %p214, %p215
    %p217 = scmp.ne.s32.totalorder %s205, %s206
    %p218 = scmp.eq.s32.totalorder %s21, 1
    %p219 = por %p217, %p218
    %p221 = scmp.ne.s32.totalorder %s206, %s220
    %p222 = scmp.eq.s32.totalorder %s21, 0
    %p223 = por %p221, %p222
    %s225 = sadd.s32 %s224, 1
    %p228 = scmp.eq.s32.totalorder %s15, 1
    %p229 = scmp.ne.s32.totalorder %s224, %s226
    %p230 = scmp.eq.s32.totalorder %s15, 0
    %p231 = por %p229, %p230
    %p232 = scmp.ne.s32.totalorder %s224, %s226
    %p233 = scmp.eq.s32.totalorder %s20, 1
    %p234 = por %p232, %p233
    %p235 = scmp.ne.s32.totalorder %s226, %s227
    %p236 = scmp.eq.s32.totalorder %s20, 0
    %p237 = por %p235, %p236
    %p238 = scmp.ne.s32.totalorder %s226, %s227
    %p239 = scmp.eq.s32.totalorder %s21, 1
    %p240 = por %p238, %p239
    %p242 = scmp.ne.s32.totalorder %s227, %s241
    %p243 = scmp.eq.s32.totalorder %s21, 0
    %p244 = por %p242, %p243
    %s246 = sadd.s32 %s245, 1
    %p249 = scmp.eq.s32.totalorder %s15, 1
    %p250 = scmp.ne.s32.totalorder %s245, %s247
    %p251 = scmp.eq.s32.totalorder %s15, 0
    %p252 = por %p250, %p251
    %p253 = scmp.ne.s32.totalorder %s245, %s247
    %p254 = scmp.eq.s32.totalorder %s20, 1
    %p255 = por %p253, %p254
    %p256 = scmp.ne.s32.totalorder %s247, %s248
    %p257 = scmp.eq.s32.totalorder %s20, 0
    %p258 = por %p256, %p257
    %p259 = scmp.ne.s32.totalorder %s247, %s248
    %p260 = scmp.eq.s32.totalorder %s21, 1
    %p261 = por %p259, %p260
    %p263 = scmp.ne.s32.totalorder %s248, %s262
    %p264 = scmp.eq.s32.totalorder %s21, 0
    %p265 = por %p263, %p264
    %s266 = ssub.s32 %s22, %s41
    %s267 = ssub.s32 %s23, %s37
    %s268 = sor.u32 %s266, %s267
    %p269 = scmp.eq.s32.totalorder %s268, 0
    %s271 = sadd.s32 %s270, 1
    %s272 = scalar_select %p269, %s270, %s271
    %p275 = pneg %p269
    %p276 = scmp.eq.s32.totalorder %s15, 1
    %p277 = por %p275, %p276
    %p278 = scmp.ne.s32.totalorder %s270, %s273
    %p279 = scmp.eq.s32.totalorder %s15, 0
    %p280 = por %p278, %p279
    %p281 = scmp.ne.s32.totalorder %s270, %s273
    %p282 = scmp.eq.s32.totalorder %s20, 1
    %p283 = por %p281, %p282
    %p284 = scmp.ne.s32.totalorder %s273, %s274
    %p285 = scmp.eq.s32.totalorder %s20, 0
    %p286 = por %p284, %p285
    %p287 = scmp.ne.s32.totalorder %s273, %s274
    %p288 = scmp.eq.s32.totalorder %s21, 1
    %p289 = por %p287, %p288
    %p291 = scmp.ne.s32.totalorder %s274, %s290
    %p292 = scmp.eq.s32.totalorder %s21, 0
    %p293 = por %p291, %p292
    %p294 = scmp.le.s32.totalorder 1, %s15
    %p295 = scmp.lt.s32.totalorder %s15, 3
    %p296 = pnand %p294, %p295
    %p297 = pneg %p296
    // Predicated region
    $region9: #{decoder_layer.10} parent=5 // pred_check
      _
    $region10: #{decoder_layer.10} parent=5 // pred_check_branch
      %299 = sbr.rel (%p296) target = $region12
    $region11: #{decoder_layer.10} parent=5 // pred_region
      %s300 = ssub.s32 %s15, 1
      // Predicated region
      $region13: #{decoder_layer.10} parent=11 // pred_check
        %p301 = pneg %p195
      $region14: #{decoder_layer.10} parent=11 // pred_check_branch
        %303 = sbr.rel (%p301) target = $region16
      $region15: #{decoder_layer.10} parent=11 // pred_region
        _
      $region16: #{decoder_layer.10} parent=11 // pred_fallthru
        _
      // Predicated region
      $region17: #{decoder_layer.10} parent=11 // pred_check
        %p304 = pneg %p216
      $region18: #{decoder_layer.10} parent=11 // pred_check_branch
        %306 = sbr.rel (%p304) target = $region20
      $region19: #{decoder_layer.10} parent=11 // pred_region
        _
      $region20: #{decoder_layer.10} parent=11 // pred_fallthru
        _
      // Predicated region
      $region21: #{decoder_layer.10} parent=11 // pred_check
        %p307 = pneg %p237
      $region22: #{decoder_layer.10} parent=11 // pred_check_branch
        %309 = sbr.rel (%p307) target = $region24
      $region23: #{decoder_layer.10} parent=11 // pred_region
        _
      $region24: #{decoder_layer.10} parent=11 // pred_fallthru
        _
      // Predicated region
      $region25: #{decoder_layer.10} parent=11 // pred_check
        %p310 = pneg %p258
      $region26: #{decoder_layer.10} parent=11 // pred_check_branch
        %312 = sbr.rel (%p310) target = $region28
      $region27: #{decoder_layer.10} parent=11 // pred_region
        _
      $region28: #{decoder_layer.10} parent=11 // pred_fallthru
        _
    $region12: #{decoder_layer.10} parent=5 // pred_fallthru
      _
    %p313 = scmp.lt.s32.totalorder %s15, 2
    // Predicated region
    $region29: #{decoder_layer.10} parent=5 // pred_check
      %p314 = pneg %p313
    $region30: #{decoder_layer.10} parent=5 // pred_check_branch
      %316 = sbr.rel (%p314) target = $region32
    $region31: #{decoder_layer.10} parent=5 // pred_region
      // Predicated region
      $region33: #{decoder_layer.10} parent=31 // pred_check
        %p317 = pneg %p56
      $region34: #{decoder_layer.10} parent=31 // pred_check_branch
        %319 = sbr.rel (%p317) target = $region36
      $region35: #{decoder_layer.10} parent=31 // pred_region
        %p320 = scmp.lt.s32.totalorder %s22, 1
        %s321 = scalar_select %p320, %s22, 1
        %p322 = scmp.lt.s32.totalorder %s23, 0
        %s323 = scalar_select %p322, %s23, 0
        %s324 = sadd.s32 %s323, %s321
        %s325 = smul.addr %s324, 8
        %s326 = scalar_lea.vmem %s0, %s325
      $region36: #{decoder_layer.10} parent=31 // pred_fallthru
        _
      // Predicated region
      $region37: #{decoder_layer.10} parent=31 // pred_check
        %p327 = pneg %p84
      $region38: #{decoder_layer.10} parent=31 // pred_check_branch
        %329 = sbr.rel (%p327) target = $region40
      $region39: #{decoder_layer.10} parent=31 // pred_region
        %p330 = scmp.lt.s32.totalorder %s22, 1
        %s331 = scalar_select %p330, %s22, 1
        %p332 = scmp.lt.s32.totalorder %s23, 0
        %s333 = scalar_select %p332, %s23, 0
        %s334 = smul.addr %s331, 4
        %s335 = sadd.s32 %s333, %s334
        %s336 = smul.addr %s335, 8
        %s337 = scalar_lea.vmem %s1, %s336
      $region40: #{decoder_layer.10} parent=31 // pred_fallthru
        _
      // Predicated region
      $region41: #{decoder_layer.10} parent=31 // pred_check
        %p338 = pneg %p112
      $region42: #{decoder_layer.10} parent=31 // pred_check_branch
        %340 = sbr.rel (%p338) target = $region44
      $region43: #{decoder_layer.10} parent=31 // pred_region
        %p341 = scmp.lt.s32.totalorder %s22, 1
        %s342 = scalar_select %p341, %s22, 1
        %p343 = scmp.lt.s32.totalorder %s24, 0
        %s344 = scalar_select %p343, %s24, 0
        %s345 = smul.addr %s342, 4
        %s346 = sadd.s32 %s344, %s345
        %s347 = smul.addr %s346, 8
        %s348 = scalar_lea.vmem %s2, %s347
      $region44: #{decoder_layer.10} parent=31 // pred_fallthru
        _
      // Predicated region
      $region45: #{decoder_layer.10} parent=31 // pred_check
        %p349 = pneg %p140
      $region46: #{decoder_layer.10} parent=31 // pred_check_branch
        %351 = sbr.rel (%p349) target = $region48
      $region47: #{decoder_layer.10} parent=31 // pred_region
        %p352 = scmp.lt.s32.totalorder %s22, 1
        %s353 = scalar_select %p352, %s22, 1
        %p354 = scmp.lt.s32.totalorder %s24, 0
        %s355 = scalar_select %p354, %s24, 0
        %s356 = smul.addr %s353, 4
        %s357 = sadd.s32 %s355, %s356
        %s358 = smul.addr %s357, 8
        %s359 = scalar_lea.vmem %s3, %s358
      $region48: #{decoder_layer.10} parent=31 // pred_fallthru
        _
      // Predicated region
      $region49: #{decoder_layer.10} parent=31 // pred_check
        %p360 = pneg %p168
      $region50: #{decoder_layer.10} parent=31 // pred_check_branch
        %362 = sbr.rel (%p360) target = $region52
      $region51: #{decoder_layer.10} parent=31 // pred_region
        %p363 = scmp.lt.s32.totalorder %s22, 1
        %s364 = scalar_select %p363, %s22, 1
        %p365 = scmp.lt.s32.totalorder %s24, 0
        %s366 = scalar_select %p365, %s24, 0
        %s367 = sadd.s32 %s366, %s364
        %s368 = scalar_lea.vmem %s4, %s367
      $region52: #{decoder_layer.10} parent=31 // pred_fallthru
        _
    $region32: #{decoder_layer.10} parent=5 // pred_fallthru
      _
    %p369 = scmp.le.s32.totalorder 1, %s15
    %p370 = scmp.lt.s32.totalorder %s15, 3
    %p371 = pnand %p369, %p370
    %p372 = pneg %p371
    // Predicated region
    $region53: #{decoder_layer.10} parent=5 // pred_check
      _
    $region54: #{decoder_layer.10} parent=5 // pred_check_branch
      %374 = sbr.rel (%p371) target = $region56
    $region55: #{decoder_layer.10} parent=5 // pred_region
      %s375 = ssub.s32 %s15, 1
      %p376 = scmp.lt.s32.totalorder %s25, 1
      %s377 = scalar_select %p376, %s25, 1
      %p378 = scmp.lt.s32.totalorder %s26, 0
      %s379 = scalar_select %p378, %s26, 0
      %s380 = sadd.s32 %s379, %s377
      %s381 = smul.addr %s380, 8
      %s382 = scalar_lea.vmem %s0, %s381
      %p383 = pneg %p62
      %p384 = pneg %p59
      %p385 = scmp.lt.s32.totalorder %s25, 1
      %s386 = scalar_select %p385, %s25, 1
      %p387 = scmp.lt.s32.totalorder %s26, 0
      %s388 = scalar_select %p387, %s26, 0
      %s389 = smul.addr %s386, 4
      %s390 = sadd.s32 %s388, %s389
      %s391 = smul.addr %s390, 8
      %s392 = scalar_lea.vmem %s1, %s391
      %p393 = pneg %p90
      %p394 = pneg %p87
      %p395 = scmp.lt.s32.totalorder %s25, 1
      %s396 = scalar_select %p395, %s25, 1
      %p397 = scmp.lt.s32.totalorder %s27, 0
      %s398 = scalar_select %p397, %s27, 0
      %s399 = smul.addr %s396, 4
      %s400 = sadd.s32 %s398, %s399
      %s401 = smul.addr %s400, 8
      %s402 = scalar_lea.vmem %s2, %s401
      %p403 = pneg %p118
      %p404 = pneg %p115
      %p405 = scmp.lt.s32.totalorder %s25, 1
      %s406 = scalar_select %p405, %s25, 1
      %p407 = scmp.lt.s32.totalorder %s27, 0
      %s408 = scalar_select %p407, %s27, 0
      %s409 = smul.addr %s406, 4
      %s410 = sadd.s32 %s408, %s409
      %s411 = smul.addr %s410, 8
      %s412 = scalar_lea.vmem %s3, %s411
      %p413 = pneg %p146
      %p414 = pneg %p143
      %p415 = scmp.lt.s32.totalorder %s25, 1
      %s416 = scalar_select %p415, %s25, 1
      %p417 = scmp.lt.s32.totalorder %s27, 0
      %s418 = scalar_select %p417, %s27, 0
      %s419 = sadd.s32 %s418, %s416
      %s420 = scalar_lea.vmem %s4, %s419
      %p421 = pneg %p174
      %p422 = pneg %p171
      %p423 = pneg %p195
      %p424 = pneg %p192
      %p425 = pneg %p216
      %p426 = pneg %p213
      %p427 = pneg %p237
      %p428 = pneg %p234
      %p429 = pneg %p258
      %p430 = pneg %p255
      %p431 = pneg %p286
      %p432 = pneg %p283
      %p433 = scmp.lt.s32.totalorder %s25, 1
      %s434 = scalar_select %p433, %s25, 1
      %p435 = scmp.lt.s32.totalorder %s26, 0
      %s436 = scalar_select %p435, %s26, 0
      %s437 = sadd.s32 %s436, %s434
      %s438 = smul.addr %s437, 8
      %s439 = scalar_lea.vmem %s9, %s438
      %p440 = scmp.lt.s32.totalorder %s25, 1
      %s441 = scalar_select %p440, %s25, 1
      %p442 = scmp.lt.s32.totalorder %s26, 0
      %s443 = scalar_select %p442, %s26, 0
      %s444 = sadd.s32 %s443, %s441
      %s445 = smul.addr %s444, 8
      %s446 = scalar_lea.vmem %s0, %s445
      %p447 = scmp.lt.s32.totalorder %s25, 1
      %s448 = scalar_select %p447, %s25, 1
      %p449 = scmp.lt.s32.totalorder %s26, 0
      %s450 = scalar_select %p449, %s26, 0
      %s451 = smul.addr %s448, 4
      %s452 = sadd.s32 %s450, %s451
      %s453 = smul.addr %s452, 8
      %s454 = scalar_lea.vmem %s1, %s453
      %p455 = scmp.lt.s32.totalorder %s25, 1
      %s456 = scalar_select %p455, %s25, 1
      %p457 = scmp.lt.s32.totalorder %s27, 0
      %s458 = scalar_select %p457, %s27, 0
      %s459 = smul.addr %s456, 4
      %s460 = sadd.s32 %s458, %s459
      %s461 = smul.addr %s460, 8
      %s462 = scalar_lea.vmem %s2, %s461
      %p463 = scmp.lt.s32.totalorder %s25, 1
      %s464 = scalar_select %p463, %s25, 1
      %p465 = scmp.lt.s32.totalorder %s27, 0
      %s466 = scalar_select %p465, %s27, 0
      %s467 = smul.addr %s464, 4
      %s468 = sadd.s32 %s466, %s467
      %s469 = smul.addr %s468, 8
      %s470 = scalar_lea.vmem %s3, %s469
      %p471 = scmp.lt.s32.totalorder %s25, 1
      %s472 = scalar_select %p471, %s25, 1
      %p473 = scmp.lt.s32.totalorder %s27, 0
      %s474 = scalar_select %p473, %s27, 0
      %s475 = sadd.s32 %s474, %s472
      %s476 = scalar_lea.vmem %s4, %s475
      %p477 = scmp.lt.s32.totalorder %s25, 1
      %s478 = scalar_select %p477, %s25, 1
      %p479 = scmp.lt.s32.totalorder %s26, 0
      %s480 = scalar_select %p479, %s26, 0
      %s481 = sadd.s32 %s480, %s478
      %s482 = smul.addr %s481, 8
      %s483 = scalar_lea.vmem %s9, %s482
      %p484 = scmp.eq.s32.totalorder %s27, 0
      // Predicated region
      $region57: #{decoder_layer.10} parent=55 // pred_check
        %p485 = pneg %p484
      $region58: #{decoder_layer.10} parent=55 // pred_check_branch
        %487 = sbr.rel (%p485) target = $region60
      $region59: #{decoder_layer.10} parent=55 // pred_region
        %vm488 = vcmask 7168
        %489 = vst.msk [vmem:[#allocation2] sm:$0xff] %vm488, -1e+30
        %490 = vst.msk [vmem:[#allocation2 + $0x8] sm:$0xff] %vm488, -1e+30
        %491 = vst.msk [vmem:[#allocation2 + $0x10] sm:$0xff] %vm488, -1e+30
        %492 = vst.msk [vmem:[#allocation2 + $0x18] sm:$0xff] %vm488, -1e+30
        %493 = vst.msk [vmem:[#allocation3] sm:$0xff] %vm488, 0.0
        %494 = vst.msk [vmem:[#allocation3 + $0x8] sm:$0xff] %vm488, 0.0
        %495 = vst.msk [vmem:[#allocation3 + $0x10] sm:$0xff] %vm488, 0.0
        %496 = vst.msk [vmem:[#allocation3 + $0x18] sm:$0xff] %vm488, 0.0
        %vm497 = vcmask 64512
        %498 = vst.msk [vmem:[#allocation4] sm:$0xff] %vm497, 0.0
        %499 = vst.msk [vmem:[#allocation4 + $0x8] sm:$0xff] %vm497, 0.0
        %500 = vst.msk [vmem:[#allocation4 + $0x10] sm:$0xff] %vm497, 0.0
        %501 = vst.msk [vmem:[#allocation4 + $0x18] sm:$0xff] %vm497, 0.0
      $region60: #{decoder_layer.10} parent=55 // pred_fallthru
        _
      %v502 = vld [vmem:[%s454] sm:$0xff]
      %v503 = vld [vmem:[%s454 + $0x8] sm:$0xff]
      %v504 = vld [vmem:[%s454 + $0x10] sm:$0xff]
      %v505 = vld [vmem:[%s454 + $0x18] sm:$0xff]
      %v506 = vld [vmem:[%s462] sm:$0xff]
      %v507 = vld [vmem:[%s462 + $0x8] sm:$0xff]
      %v508 = vld [vmem:[%s462 + $0x10] sm:$0xff]
      %v509 = vld [vmem:[%s462 + $0x18] sm:$0xff]
      %v510 = vld [vmem:[%s470] sm:$0xff]
      %v511 = vld [vmem:[%s470 + $0x8] sm:$0xff]
      %v512 = vld [vmem:[%s470 + $0x10] sm:$0xff]
      %v513 = vld [vmem:[%s470 + $0x18] sm:$0xff]
      %v514 = vld [vmem:[%s476] sm:$0x1]
      %v516 = vlaneseq
      %v517 = vshrl.u32 %v516, 7
      %v518 = vsub.s32 0, %v517
      %v519 = vrot.slane %v514, %v518
      %vm521 = vcmask 64512
      %v523 = vsel %vm521, %v502, 0
      %v526 = vsel %vm521, %v506, 0
      %528 = vmatprep.subr.mxu0 0.0
      %529 = vmatpush1.xpose.msra.mxu0 0.0
      %530 = vmatprep.subr.mxu0 0.0
      %531 = vmatpush1.xpose.msra.mxu0 0.0
      %532 = vmatprep.subr.mxu0 0.0
      %533 = vmatpush1.xpose.msra.mxu0 0.0
      %534 = vmatprep.subr.mxu0 0.0
      %535 = vmatpush1.xpose.msra.mxu0 0.0
      %536 = vmatprep.subr.mxu0 0.0
      %537 = vmatpush1.xpose.msra.mxu0 0.0
      %538 = vmatprep.subr.mxu0 0.0
      %539 = vmatpush1.xpose.msra.mxu0 0.0
      %540 = vmatprep.subr.mxu0 0.0
      %541 = vmatpush1.xpose.msra.mxu0 0.0
      %542 = vmatprep.subr.mxu0 0.0
      %543 = vmatpush1.xpose.msra.mxu0 0.0
      %544 = vmatprep.subr.mxu0 0.0
      %545 = vmatpush1.xpose.msra.mxu0 0.0
      %546 = vmatprep.subr.mxu0 0.0
      %547 = vmatpush1.xpose.msra.mxu0 0.0
      %548 = vmatprep.subr.mxu0 0.0
      %549 = vmatpush1.xpose.msra.mxu0 0.0
      %550 = vmatprep.subr.mxu0 0.0
      %551 = vmatpush1.xpose.msra.mxu0 0.0
      %552 = vmatprep.subr.mxu0 0.0
      %553 = vmatpush1.xpose.msra.mxu0 0.0
      %554 = vmatprep.subr.mxu0 0.0
      %555 = vmatpush1.xpose.msra.mxu0 0.0
      %556 = vmatprep.subr.mxu0 0.0
      %557 = vmatpush1.xpose.msra.mxu0 0.0
      %558 = vmatprep.subr.mxu0 0.0
      %559 = vmatpush1.xpose.msra.mxu0 %v526
      %560 = vmatprep.subr.mxu0 0.0
      %561 = vmatpush2.xpose.msra.mxu0 0.0
      %562 = vmatprep.subr.mxu0 0.0
      %563 = vmatpush2.xpose.msra.mxu0 0.0
      %564 = vmatprep.subr.mxu0 0.0
      %565 = vmatpush2.xpose.msra.mxu0 0.0
      %566 = vmatprep.subr.mxu0 0.0
      %567 = vmatpush2.xpose.msra.mxu0 0.0
      %568 = vmatprep.subr.mxu0 0.0
      %569 = vmatpush2.xpose.msra.mxu0 0.0
      %570 = vmatprep.subr.mxu0 0.0
      %571 = vmatpush2.xpose.msra.mxu0 0.0
      %572 = vmatprep.subr.mxu0 0.0
      %573 = vmatpush2.xpose.msra.mxu0 0.0
      %574 = vmatprep.subr.mxu0 0.0
      %575 = vmatpush2.xpose.msra.mxu0 0.0
      %576 = vmatprep.subr.mxu0 0.0
      %577 = vmatpush2.xpose.msra.mxu0 0.0
      %578 = vmatprep.subr.mxu0 0.0
      %579 = vmatpush2.xpose.msra.mxu0 0.0
      %580 = vmatprep.subr.mxu0 0.0
      %581 = vmatpush2.xpose.msra.mxu0 0.0
      %582 = vmatprep.subr.mxu0 0.0
      %583 = vmatpush2.xpose.msra.mxu0 0.0
      %584 = vmatprep.subr.mxu0 0.0
      %585 = vmatpush2.xpose.msra.mxu0 0.0
      %586 = vmatprep.subr.mxu0 0.0
      %587 = vmatpush2.xpose.msra.mxu0 0.0
      %588 = vmatprep.subr.mxu0 0.0
      %589 = vmatpush2.xpose.msra.mxu0 0.0
      %590 = vmatprep.subr.mxu0 0.0
      %591 = vmatpush2.xpose.msra.mxu0 0.0
      %592 = vmatprep.mubr.f32.mxu0 0.0
      %593 = vmatmul.mubr.f32.gmra.mxu0 %v523
      %v594 = vpop.f32.mrf.mxu0
      %v595 = vadd.f32 %v519, %v594
      %v596 = vpop.f32.mrf.mxu0
      %597 = vdwg.mxu0
      %v599 = vsel %vm521, %v503, 0
      %v602 = vsel %vm521, %v507, 0
      %604 = vmatprep.subr.mxu0 0.0
      %605 = vmatpush1.xpose.msra.mxu0 0.0
      %606 = vmatprep.subr.mxu0 0.0
      %607 = vmatpush1.xpose.msra.mxu0 0.0
      %608 = vmatprep.subr.mxu0 0.0
      %609 = vmatpush1.xpose.msra.mxu0 0.0
      %610 = vmatprep.subr.mxu0 0.0
      %611 = vmatpush1.xpose.msra.mxu0 0.0
      %612 = vmatprep.subr.mxu0 0.0
      %613 = vmatpush1.xpose.msra.mxu0 0.0
      %614 = vmatprep.subr.mxu0 0.0
      %615 = vmatpush1.xpose.msra.mxu0 0.0
      %616 = vmatprep.subr.mxu0 0.0
      %617 = vmatpush1.xpose.msra.mxu0 0.0
      %618 = vmatprep.subr.mxu0 0.0
      %619 = vmatpush1.xpose.msra.mxu0 0.0
      %620 = vmatprep.subr.mxu0 0.0
      %621 = vmatpush1.xpose.msra.mxu0 0.0
      %622 = vmatprep.subr.mxu0 0.0
      %623 = vmatpush1.xpose.msra.mxu0 0.0
      %624 = vmatprep.subr.mxu0 0.0
      %625 = vmatpush1.xpose.msra.mxu0 0.0
      %626 = vmatprep.subr.mxu0 0.0
      %627 = vmatpush1.xpose.msra.mxu0 0.0
      %628 = vmatprep.subr.mxu0 0.0
      %629 = vmatpush1.xpose.msra.mxu0 0.0
      %630 = vmatprep.subr.mxu0 0.0
      %631 = vmatpush1.xpose.msra.mxu0 0.0
      %632 = vmatprep.subr.mxu0 0.0
      %633 = vmatpush1.xpose.msra.mxu0 0.0
      %634 = vmatprep.subr.mxu0 0.0
      %635 = vmatpush1.xpose.msra.mxu0 %v602
      %636 = vmatprep.subr.mxu0 0.0
      %637 = vmatpush2.xpose.msra.mxu0 0.0
      %638 = vmatprep.subr.mxu0 0.0
      %639 = vmatpush2.xpose.msra.mxu0 0.0
      %640 = vmatprep.subr.mxu0 0.0
      %641 = vmatpush2.xpose.msra.mxu0 0.0
      %642 = vmatprep.subr.mxu0 0.0
      %643 = vmatpush2.xpose.msra.mxu0 0.0
      %644 = vmatprep.subr.mxu0 0.0
      %645 = vmatpush2.xpose.msra.mxu0 0.0
      %646 = vmatprep.subr.mxu0 0.0
      %647 = vmatpush2.xpose.msra.mxu0 0.0
      %648 = vmatprep.subr.mxu0 0.0
      %649 = vmatpush2.xpose.msra.mxu0 0.0
      %650 = vmatprep.subr.mxu0 0.0
      %651 = vmatpush2.xpose.msra.mxu0 0.0
      %652 = vmatprep.subr.mxu0 0.0
      %653 = vmatpush2.xpose.msra.mxu0 0.0
      %654 = vmatprep.subr.mxu0 0.0
      %655 = vmatpush2.xpose.msra.mxu0 0.0
      %656 = vmatprep.subr.mxu0 0.0
      %657 = vmatpush2.xpose.msra.mxu0 0.0
      %658 = vmatprep.subr.mxu0 0.0
      %659 = vmatpush2.xpose.msra.mxu0 0.0
      %660 = vmatprep.subr.mxu0 0.0
      %661 = vmatpush2.xpose.msra.mxu0 0.0
      %662 = vmatprep.subr.mxu0 0.0
      %663 = vmatpush2.xpose.msra.mxu0 0.0
      %664 = vmatprep.subr.mxu0 0.0
      %665 = vmatpush2.xpose.msra.mxu0 0.0
      %666 = vmatprep.subr.mxu0 0.0
      %667 = vmatpush2.xpose.msra.mxu0 0.0
      %668 = vmatprep.mubr.f32.mxu0 0.0
      %669 = vmatmul.mubr.f32.gmra.mxu0 %v599
      %v670 = vpop.f32.mrf.mxu0
      %v671 = vadd.f32 %v519, %v670
      %v672 = vpop.f32.mrf.mxu0
      %673 = vdwg.mxu0
      %v675 = vsel %vm521, %v504, 0
      %v678 = vsel %vm521, %v508, 0
      %680 = vmatprep.subr.mxu0 0.0
      %681 = vmatpush1.xpose.msra.mxu0 0.0
      %682 = vmatprep.subr.mxu0 0.0
      %683 = vmatpush1.xpose.msra.mxu0 0.0
      %684 = vmatprep.subr.mxu0 0.0
      %685 = vmatpush1.xpose.msra.mxu0 0.0
      %686 = vmatprep.subr.mxu0 0.0
      %687 = vmatpush1.xpose.msra.mxu0 0.0
      %688 = vmatprep.subr.mxu0 0.0
      %689 = vmatpush1.xpose.msra.mxu0 0.0
      %690 = vmatprep.subr.mxu0 0.0
      %691 = vmatpush1.xpose.msra.mxu0 0.0
      %692 = vmatprep.subr.mxu0 0.0
      %693 = vmatpush1.xpose.msra.mxu0 0.0
      %694 = vmatprep.subr.mxu0 0.0
      %695 = vmatpush1.xpose.msra.mxu0 0.0
      %696 = vmatprep.subr.mxu0 0.0
      %697 = vmatpush1.xpose.msra.mxu0 0.0
      %698 = vmatprep.subr.mxu0 0.0
      %699 = vmatpush1.xpose.msra.mxu0 0.0
      %700 = vmatprep.subr.mxu0 0.0
      %701 = vmatpush1.xpose.msra.mxu0 0.0
      %702 = vmatprep.subr.mxu0 0.0
      %703 = vmatpush1.xpose.msra.mxu0 0.0
      %704 = vmatprep.subr.mxu0 0.0
      %705 = vmatpush1.xpose.msra.mxu0 0.0
      %706 = vmatprep.subr.mxu0 0.0
      %707 = vmatpush1.xpose.msra.mxu0 0.0
      %708 = vmatprep.subr.mxu0 0.0
      %709 = vmatpush1.xpose.msra.mxu0 0.0
      %710 = vmatprep.subr.mxu0 0.0
      %711 = vmatpush1.xpose.msra.mxu0 %v678
      %712 = vmatprep.subr.mxu0 0.0
      %713 = vmatpush2.xpose.msra.mxu0 0.0
      %714 = vmatprep.subr.mxu0 0.0
      %715 = vmatpush2.xpose.msra.mxu0 0.0
      %716 = vmatprep.subr.mxu0 0.0
      %717 = vmatpush2.xpose.msra.mxu0 0.0
      %718 = vmatprep.subr.mxu0 0.0
      %719 = vmatpush2.xpose.msra.mxu0 0.0
      %720 = vmatprep.subr.mxu0 0.0
      %721 = vmatpush2.xpose.msra.mxu0 0.0
      %722 = vmatprep.subr.mxu0 0.0
      %723 = vmatpush2.xpose.msra.mxu0 0.0
      %724 = vmatprep.subr.mxu0 0.0
      %725 = vmatpush2.xpose.msra.mxu0 0.0
      %726 = vmatprep.subr.mxu0 0.0
      %727 = vmatpush2.xpose.msra.mxu0 0.0
      %728 = vmatprep.subr.mxu0 0.0
      %729 = vmatpush2.xpose.msra.mxu0 0.0
      %730 = vmatprep.subr.mxu0 0.0
      %731 = vmatpush2.xpose.msra.mxu0 0.0
      %732 = vmatprep.subr.mxu0 0.0
      %733 = vmatpush2.xpose.msra.mxu0 0.0
      %734 = vmatprep.subr.mxu0 0.0
      %735 = vmatpush2.xpose.msra.mxu0 0.0
      %736 = vmatprep.subr.mxu0 0.0
      %737 = vmatpush2.xpose.msra.mxu0 0.0
      %738 = vmatprep.subr.mxu0 0.0
      %739 = vmatpush2.xpose.msra.mxu0 0.0
      %740 = vmatprep.subr.mxu0 0.0
      %741 = vmatpush2.xpose.msra.mxu0 0.0
      %742 = vmatprep.subr.mxu0 0.0
      %743 = vmatpush2.xpose.msra.mxu0 0.0
      %744 = vmatprep.mubr.f32.mxu0 0.0
      %745 = vmatmul.mubr.f32.gmra.mxu0 %v675
      %v746 = vpop.f32.mrf.mxu0
      %v747 = vadd.f32 %v519, %v746
      %v748 = vpop.f32.mrf.mxu0
      %749 = vdwg.mxu0
      %v751 = vsel %vm521, %v505, 0
      %v754 = vsel %vm521, %v509, 0
      %756 = vmatprep.subr.mxu0 0.0
      %757 = vmatpush1.xpose.msra.mxu0 0.0
      %758 = vmatprep.subr.mxu0 0.0
      %759 = vmatpush1.xpose.msra.mxu0 0.0
      %760 = vmatprep.subr.mxu0 0.0
      %761 = vmatpush1.xpose.msra.mxu0 0.0
      %762 = vmatprep.subr.mxu0 0.0
      %763 = vmatpush1.xpose.msra.mxu0 0.0
      %764 = vmatprep.subr.mxu0 0.0
      %765 = vmatpush1.xpose.msra.mxu0 0.0
      %766 = vmatprep.subr.mxu0 0.0
      %767 = vmatpush1.xpose.msra.mxu0 0.0
      %768 = vmatprep.subr.mxu0 0.0
      %769 = vmatpush1.xpose.msra.mxu0 0.0
      %770 = vmatprep.subr.mxu0 0.0
      %771 = vmatpush1.xpose.msra.mxu0 0.0
      %772 = vmatprep.subr.mxu0 0.0
      %773 = vmatpush1.xpose.msra.mxu0 0.0
      %774 = vmatprep.subr.mxu0 0.0
      %775 = vmatpush1.xpose.msra.mxu0 0.0
      %776 = vmatprep.subr.mxu0 0.0
      %777 = vmatpush1.xpose.msra.mxu0 0.0
      %778 = vmatprep.subr.mxu0 0.0
      %779 = vmatpush1.xpose.msra.mxu0 0.0
      %780 = vmatprep.subr.mxu0 0.0
      %781 = vmatpush1.xpose.msra.mxu0 0.0
      %782 = vmatprep.subr.mxu0 0.0
      %783 = vmatpush1.xpose.msra.mxu0 0.0
      %784 = vmatprep.subr.mxu0 0.0
      %785 = vmatpush1.xpose.msra.mxu0 0.0
      %786 = vmatprep.subr.mxu0 0.0
      %787 = vmatpush1.xpose.msra.mxu0 %v754
      %788 = vmatprep.subr.mxu0 0.0
      %789 = vmatpush2.xpose.msra.mxu0 0.0
      %790 = vmatprep.subr.mxu0 0.0
      %791 = vmatpush2.xpose.msra.mxu0 0.0
      %792 = vmatprep.subr.mxu0 0.0
      %793 = vmatpush2.xpose.msra.mxu0 0.0
      %794 = vmatprep.subr.mxu0 0.0
      %795 = vmatpush2.xpose.msra.mxu0 0.0
      %796 = vmatprep.subr.mxu0 0.0
      %797 = vmatpush2.xpose.msra.mxu0 0.0
      %798 = vmatprep.subr.mxu0 0.0
      %799 = vmatpush2.xpose.msra.mxu0 0.0
      %800 = vmatprep.subr.mxu0 0.0
      %801 = vmatpush2.xpose.msra.mxu0 0.0
      %802 = vmatprep.subr.mxu0 0.0
      %803 = vmatpush2.xpose.msra.mxu0 0.0
      %804 = vmatprep.subr.mxu0 0.0
      %805 = vmatpush2.xpose.msra.mxu0 0.0
      %806 = vmatprep.subr.mxu0 0.0
      %807 = vmatpush2.xpose.msra.mxu0 0.0
      %808 = vmatprep.subr.mxu0 0.0
      %809 = vmatpush2.xpose.msra.mxu0 0.0
      %810 = vmatprep.subr.mxu0 0.0
      %811 = vmatpush2.xpose.msra.mxu0 0.0
      %812 = vmatprep.subr.mxu0 0.0
      %813 = vmatpush2.xpose.msra.mxu0 0.0
      %814 = vmatprep.subr.mxu0 0.0
      %815 = vmatpush2.xpose.msra.mxu0 0.0
      %816 = vmatprep.subr.mxu0 0.0
      %817 = vmatpush2.xpose.msra.mxu0 0.0
      %818 = vmatprep.subr.mxu0 0.0
      %819 = vmatpush2.xpose.msra.mxu0 0.0
      %820 = vmatprep.mubr.f32.mxu0 0.0
      %821 = vmatmul.mubr.f32.gmra.mxu0 %v751
      %v822 = vpop.f32.mrf.mxu0
      %v823 = vadd.f32 %v519, %v822
      %v824 = vpop.f32.mrf.mxu0
      %825 = vdwg.mxu0
      %v826 = vld [vmem:[#allocation2] sm:$0xff]
      %v827 = vld [vmem:[#allocation2 + $0x8] sm:$0xff]
      %v828 = vld [vmem:[#allocation2 + $0x10] sm:$0xff]
      %v829 = vld [vmem:[#allocation2 + $0x18] sm:$0xff]
      %v830 = vsel %vm521, %v595, -inf
      %831 = vmax.xlane.f32.xlu0 %v830
      %v832 = vpop.xlane.xlu0 %831
      %v833 = vsel %vm521, %v671, -inf
      %834 = vmax.xlane.f32.xlu0 %v833
      %v835 = vpop.xlane.xlu0 %834
      %v836 = vsel %vm521, %v747, -inf
      %837 = vmax.xlane.f32.xlu0 %v836
      %v838 = vpop.xlane.xlu0 %837
      %v839 = vsel %vm521, %v823, -inf
      %840 = vmax.xlane.f32.xlu0 %v839
      %v841 = vpop.xlane.xlu0 %840
      %v842 = vmax.f32 %v826, %v832
      %v843 = vmax.f32 %v827, %v835
      %v844 = vmax.f32 %v828, %v838
      %v845 = vmax.f32 %v829, %v841
      %v846 = vsub.f32 %v826, %v842
      %v847 = vsub.f32 %v827, %v843
      %v848 = vsub.f32 %v828, %v844
      %v849 = vsub.f32 %v829, %v845
      %v850 = vmul.f32 %v846, 1.442695
      %v851 = vpow.pop %v850
      %v852 = vmul.f32 %v847, 1.442695
      %v853 = vpow.pop %v852
      %v854 = vmul.f32 %v848, 1.442695
      %v855 = vpow.pop %v854
      %v856 = vmul.f32 %v849, 1.442695
      %v857 = vpow.pop %v856
      %859 = vset.pattern.permute.xlu0 0
      %860 = vperm.xlu0 %859, %v842
      %v861 = vpop.permute.xlu0 %860
      %864 = vset.pattern.permute.xlu0 0
      %865 = vperm.xlu0 %864, %v843
      %v866 = vpop.permute.xlu0 %865
      %869 = vset.pattern.permute.xlu0 0
      %870 = vperm.xlu0 %869, %v844
      %v871 = vpop.permute.xlu0 %870
      %874 = vset.pattern.permute.xlu0 0
      %875 = vperm.xlu0 %874, %v845
      %v876 = vpop.permute.xlu0 %875
      %v878 = vsub.f32 %v595, %v861
      %v879 = vsub.f32 %v671, %v866
      %v880 = vsub.f32 %v747, %v871
      %v881 = vsub.f32 %v823, %v876
      %v882 = vmul.f32 %v878, 1.442695
      %v883 = vpow.pop %v882
      %v884 = vmul.f32 %v879, 1.442695
      %v885 = vpow.pop %v884
      %v886 = vmul.f32 %v880, 1.442695
      %v887 = vpow.pop %v886
      %v888 = vmul.f32 %v881, 1.442695
      %v889 = vpow.pop %v888
      %v890 = vld [vmem:[#allocation3] sm:$0xff]
      %v891 = vld [vmem:[#allocation3 + $0x8] sm:$0xff]
      %v892 = vld [vmem:[#allocation3 + $0x10] sm:$0xff]
      %v893 = vld [vmem:[#allocation3 + $0x18] sm:$0xff]
      %v894 = vmul.f32 %v851, %v890
      %v895 = vmul.f32 %v853, %v891
      %v896 = vmul.f32 %v855, %v892
      %v897 = vmul.f32 %v857, %v893
      %v898 = vsel %vm521, %v883, 0.0
      %899 = vadd.xlane.f32.xlu0 %v898
      %v900 = vpop.xlane.xlu0 %899
      %v901 = vsel %vm521, %v885, 0.0
      %902 = vadd.xlane.f32.xlu0 %v901
      %v903 = vpop.xlane.xlu0 %902
      %v904 = vsel %vm521, %v887, 0.0
      %905 = vadd.xlane.f32.xlu0 %v904
      %v906 = vpop.xlane.xlu0 %905
      %v907 = vsel %vm521, %v889, 0.0
      %908 = vadd.xlane.f32.xlu0 %v907
      %v909 = vpop.xlane.xlu0 %908
      %v910 = vadd.f32 %v894, %v900
      %v911 = vadd.f32 %v895, %v903
      %v912 = vadd.f32 %v896, %v906
      %v913 = vadd.f32 %v897, %v909
      %vm914 = vcmask 7168
      %915 = vst.msk [vmem:[#allocation3] sm:$0xff] %vm914, %v910
      %916 = vst.msk [vmem:[#allocation3 + $0x8] sm:$0xff] %vm914, %v911
      %917 = vst.msk [vmem:[#allocation3 + $0x10] sm:$0xff] %vm914, %v912
      %918 = vst.msk [vmem:[#allocation3 + $0x18] sm:$0xff] %vm914, %v913
      %v919 = vld [vmem:[#allocation4] sm:$0xff]
      %v920 = vld [vmem:[#allocation4 + $0x8] sm:$0xff]
      %v921 = vld [vmem:[#allocation4 + $0x10] sm:$0xff]
      %v922 = vld [vmem:[#allocation4 + $0x18] sm:$0xff]
      %924 = vset.pattern.permute.xlu0 0
      %925 = vperm.xlu0 %924, %v851
      %v926 = vpop.permute.xlu0 %925
      %929 = vset.pattern.permute.xlu0 0
      %930 = vperm.xlu0 %929, %v853
      %v931 = vpop.permute.xlu0 %930
      %934 = vset.pattern.permute.xlu0 0
      %935 = vperm.xlu0 %934, %v855
      %v936 = vpop.permute.xlu0 %935
      %939 = vset.pattern.permute.xlu0 0
      %940 = vperm.xlu0 %939, %v857
      %v941 = vpop.permute.xlu0 %940
      %v943 = vmul.f32 %v926, %v919
      %v944 = vmul.f32 %v931, %v920
      %v945 = vmul.f32 %v936, %v921
      %v946 = vmul.f32 %v941, %v922
      %v948 = vsel %vm521, %v883, 0
      %950 = vmatprep.subr.mxu0 0.0
      %951 = vmatpush1.msra.mxu0 0.0
      %952 = vmatprep.subr.mxu0 0.0
      %953 = vmatpush1.msra.mxu0 0.0
      %954 = vmatprep.subr.mxu0 0.0
      %955 = vmatpush1.msra.mxu0 0.0
      %956 = vmatprep.subr.mxu0 0.0
      %957 = vmatpush1.msra.mxu0 0.0
      %958 = vmatprep.subr.mxu0 0.0
      %959 = vmatpush1.msra.mxu0 0.0
      %960 = vmatprep.subr.mxu0 0.0
      %961 = vmatpush1.msra.mxu0 0.0
      %962 = vmatprep.subr.mxu0 0.0
      %963 = vmatpush1.msra.mxu0 0.0
      %964 = vmatprep.subr.mxu0 0.0
      %965 = vmatpush1.msra.mxu0 0.0
      %966 = vmatprep.subr.mxu0 0.0
      %967 = vmatpush1.msra.mxu0 0.0
      %968 = vmatprep.subr.mxu0 0.0
      %969 = vmatpush1.msra.mxu0 0.0
      %970 = vmatprep.subr.mxu0 0.0
      %971 = vmatpush1.msra.mxu0 0.0
      %972 = vmatprep.subr.mxu0 0.0
      %973 = vmatpush1.msra.mxu0 0.0
      %974 = vmatprep.subr.mxu0 0.0
      %975 = vmatpush1.msra.mxu0 0.0
      %976 = vmatprep.subr.mxu0 0.0
      %977 = vmatpush1.msra.mxu0 0.0
      %978 = vmatprep.subr.mxu0 0.0
      %979 = vmatpush1.msra.mxu0 0.0
      %980 = vmatprep.subr.mxu0 0.0
      %981 = vmatpush1.msra.mxu0 %v510
      %982 = vmatprep.subr.mxu0 0.0
      %983 = vmatpush2.msra.mxu0 0.0
      %984 = vmatprep.subr.mxu0 0.0
      %985 = vmatpush2.msra.mxu0 0.0
      %986 = vmatprep.subr.mxu0 0.0
      %987 = vmatpush2.msra.mxu0 0.0
      %988 = vmatprep.subr.mxu0 0.0
      %989 = vmatpush2.msra.mxu0 0.0
      %990 = vmatprep.subr.mxu0 0.0
      %991 = vmatpush2.msra.mxu0 0.0
      %992 = vmatprep.subr.mxu0 0.0
      %993 = vmatpush2.msra.mxu0 0.0
      %994 = vmatprep.subr.mxu0 0.0
      %995 = vmatpush2.msra.mxu0 0.0
      %996 = vmatprep.subr.mxu0 0.0
      %997 = vmatpush2.msra.mxu0 0.0
      %998 = vmatprep.subr.mxu0 0.0
      %999 = vmatpush2.msra.mxu0 0.0
      %1000 = vmatprep.subr.mxu0 0.0
      %1001 = vmatpush2.msra.mxu0 0.0
      %1002 = vmatprep.subr.mxu0 0.0
      %1003 = vmatpush2.msra.mxu0 0.0
      %1004 = vmatprep.subr.mxu0 0.0
      %1005 = vmatpush2.msra.mxu0 0.0
      %1006 = vmatprep.subr.mxu0 0.0
      %1007 = vmatpush2.msra.mxu0 0.0
      %1008 = vmatprep.subr.mxu0 0.0
      %1009 = vmatpush2.msra.mxu0 0.0
      %1010 = vmatprep.subr.mxu0 0.0
      %1011 = vmatpush2.msra.mxu0 0.0
      %1012 = vmatprep.subr.mxu0 0.0
      %1013 = vmatpush2.msra.mxu0 0.0
      %1014 = vmatprep.mubr.f32.mxu0 0.0
      %1015 = vmatmul.mubr.f32.gmra.mxu0 %v948
      %v1016 = vpop.f32.mrf.mxu0
      %v1017 = vadd.f32 0.0, %v1016
      %v1018 = vpop.f32.mrf.mxu0
      %1019 = vdwg.mxu0
      %v1021 = vsel %vm521, %v885, 0
      %1023 = vmatprep.subr.mxu0 0.0
      %1024 = vmatpush1.msra.mxu0 0.0
      %1025 = vmatprep.subr.mxu0 0.0
      %1026 = vmatpush1.msra.mxu0 0.0
      %1027 = vmatprep.subr.mxu0 0.0
      %1028 = vmatpush1.msra.mxu0 0.0
      %1029 = vmatprep.subr.mxu0 0.0
      %1030 = vmatpush1.msra.mxu0 0.0
      %1031 = vmatprep.subr.mxu0 0.0
      %1032 = vmatpush1.msra.mxu0 0.0
      %1033 = vmatprep.subr.mxu0 0.0
      %1034 = vmatpush1.msra.mxu0 0.0
      %1035 = vmatprep.subr.mxu0 0.0
      %1036 = vmatpush1.msra.mxu0 0.0
      %1037 = vmatprep.subr.mxu0 0.0
      %1038 = vmatpush1.msra.mxu0 0.0
      %1039 = vmatprep.subr.mxu0 0.0
      %1040 = vmatpush1.msra.mxu0 0.0
      %1041 = vmatprep.subr.mxu0 0.0
      %1042 = vmatpush1.msra.mxu0 0.0
      %1043 = vmatprep.subr.mxu0 0.0
      %1044 = vmatpush1.msra.mxu0 0.0
      %1045 = vmatprep.subr.mxu0 0.0
      %1046 = vmatpush1.msra.mxu0 0.0
      %1047 = vmatprep.subr.mxu0 0.0
      %1048 = vmatpush1.msra.mxu0 0.0
      %1049 = vmatprep.subr.mxu0 0.0
      %1050 = vmatpush1.msra.mxu0 0.0
      %1051 = vmatprep.subr.mxu0 0.0
      %1052 = vmatpush1.msra.mxu0 0.0
      %1053 = vmatprep.subr.mxu0 0.0
      %1054 = vmatpush1.msra.mxu0 %v511
      %1055 = vmatprep.subr.mxu0 0.0
      %1056 = vmatpush2.msra.mxu0 0.0
      %1057 = vmatprep.subr.mxu0 0.0
      %1058 = vmatpush2.msra.mxu0 0.0
      %1059 = vmatprep.subr.mxu0 0.0
      %1060 = vmatpush2.msra.mxu0 0.0
      %1061 = vmatprep.subr.mxu0 0.0
      %1062 = vmatpush2.msra.mxu0 0.0
      %1063 = vmatprep.subr.mxu0 0.0
      %1064 = vmatpush2.msra.mxu0 0.0
      %1065 = vmatprep.subr.mxu0 0.0
      %1066 = vmatpush2.msra.mxu0 0.0
      %1067 = vmatprep.subr.mxu0 0.0
      %1068 = vmatpush2.msra.mxu0 0.0
      %1069 = vmatprep.subr.mxu0 0.0
      %1070 = vmatpush2.msra.mxu0 0.0
      %1071 = vmatprep.subr.mxu0 0.0
      %1072 = vmatpush2.msra.mxu0 0.0
      %1073 = vmatprep.subr.mxu0 0.0
      %1074 = vmatpush2.msra.mxu0 0.0
      %1075 = vmatprep.subr.mxu0 0.0
      %1076 = vmatpush2.msra.mxu0 0.0
      %1077 = vmatprep.subr.mxu0 0.0
      %1078 = vmatpush2.msra.mxu0 0.0
      %1079 = vmatprep.subr.mxu0 0.0
      %1080 = vmatpush2.msra.mxu0 0.0
      %1081 = vmatprep.subr.mxu0 0.0
      %1082 = vmatpush2.msra.mxu0 0.0
      %1083 = vmatprep.subr.mxu0 0.0
      %1084 = vmatpush2.msra.mxu0 0.0
      %1085 = vmatprep.subr.mxu0 0.0
      %1086 = vmatpush2.msra.mxu0 0.0
      %1087 = vmatprep.mubr.f32.mxu0 0.0
      %1088 = vmatmul.mubr.f32.gmra.mxu0 %v1021
      %v1089 = vpop.f32.mrf.mxu0
      %v1090 = vadd.f32 0.0, %v1089
      %v1091 = vpop.f32.mrf.mxu0
      %1092 = vdwg.mxu0
      %v1094 = vsel %vm521, %v887, 0
      %1096 = vmatprep.subr.mxu0 0.0
      %1097 = vmatpush1.msra.mxu0 0.0
      %1098 = vmatprep.subr.mxu0 0.0
      %1099 = vmatpush1.msra.mxu0 0.0
      %1100 = vmatprep.subr.mxu0 0.0
      %1101 = vmatpush1.msra.mxu0 0.0
      %1102 = vmatprep.subr.mxu0 0.0
      %1103 = vmatpush1.msra.mxu0 0.0
      %1104 = vmatprep.subr.mxu0 0.0
      %1105 = vmatpush1.msra.mxu0 0.0
      %1106 = vmatprep.subr.mxu0 0.0
      %1107 = vmatpush1.msra.mxu0 0.0
      %1108 = vmatprep.subr.mxu0 0.0
      %1109 = vmatpush1.msra.mxu0 0.0
      %1110 = vmatprep.subr.mxu0 0.0
      %1111 = vmatpush1.msra.mxu0 0.0
      %1112 = vmatprep.subr.mxu0 0.0
      %1113 = vmatpush1.msra.mxu0 0.0
      %1114 = vmatprep.subr.mxu0 0.0
      %1115 = vmatpush1.msra.mxu0 0.0
      %1116 = vmatprep.subr.mxu0 0.0
      %1117 = vmatpush1.msra.mxu0 0.0
      %1118 = vmatprep.subr.mxu0 0.0
      %1119 = vmatpush1.msra.mxu0 0.0
      %1120 = vmatprep.subr.mxu0 0.0
      %1121 = vmatpush1.msra.mxu0 0.0
      %1122 = vmatprep.subr.mxu0 0.0
      %1123 = vmatpush1.msra.mxu0 0.0
      %1124 = vmatprep.subr.mxu0 0.0
      %1125 = vmatpush1.msra.mxu0 0.0
      %1126 = vmatprep.subr.mxu0 0.0
      %1127 = vmatpush1.msra.mxu0 %v512
      %1128 = vmatprep.subr.mxu0 0.0
      %1129 = vmatpush2.msra.mxu0 0.0
      %1130 = vmatprep.subr.mxu0 0.0
      %1131 = vmatpush2.msra.mxu0 0.0
      %1132 = vmatprep.subr.mxu0 0.0
      %1133 = vmatpush2.msra.mxu0 0.0
      %1134 = vmatprep.subr.mxu0 0.0
      %1135 = vmatpush2.msra.mxu0 0.0
      %1136 = vmatprep.subr.mxu0 0.0
      %1137 = vmatpush2.msra.mxu0 0.0
      %1138 = vmatprep.subr.mxu0 0.0
      %1139 = vmatpush2.msra.mxu0 0.0
      %1140 = vmatprep.subr.mxu0 0.0
      %1141 = vmatpush2.msra.mxu0 0.0
      %1142 = vmatprep.subr.mxu0 0.0
      %1143 = vmatpush2.msra.mxu0 0.0
      %1144 = vmatprep.subr.mxu0 0.0
      %1145 = vmatpush2.msra.mxu0 0.0
      %1146 = vmatprep.subr.mxu0 0.0
      %1147 = vmatpush2.msra.mxu0 0.0
      %1148 = vmatprep.subr.mxu0 0.0
      %1149 = vmatpush2.msra.mxu0 0.0
      %1150 = vmatprep.subr.mxu0 0.0
      %1151 = vmatpush2.msra.mxu0 0.0
      %1152 = vmatprep.subr.mxu0 0.0
      %1153 = vmatpush2.msra.mxu0 0.0
      %1154 = vmatprep.subr.mxu0 0.0
      %1155 = vmatpush2.msra.mxu0 0.0
      %1156 = vmatprep.subr.mxu0 0.0
      %1157 = vmatpush2.msra.mxu0 0.0
      %1158 = vmatprep.subr.mxu0 0.0
      %1159 = vmatpush2.msra.mxu0 0.0
      %1160 = vmatprep.mubr.f32.mxu0 0.0
      %1161 = vmatmul.mubr.f32.gmra.mxu0 %v1094
      %v1162 = vpop.f32.mrf.mxu0
      %v1163 = vadd.f32 0.0, %v1162
      %v1164 = vpop.f32.mrf.mxu0
      %1165 = vdwg.mxu0
      %v1167 = vsel %vm521, %v889, 0
      %1169 = vmatprep.subr.mxu0 0.0
      %1170 = vmatpush1.msra.mxu0 0.0
      %1171 = vmatprep.subr.mxu0 0.0
      %1172 = vmatpush1.msra.mxu0 0.0
      %1173 = vmatprep.subr.mxu0 0.0
      %1174 = vmatpush1.msra.mxu0 0.0
      %1175 = vmatprep.subr.mxu0 0.0
      %1176 = vmatpush1.msra.mxu0 0.0
      %1177 = vmatprep.subr.mxu0 0.0
      %1178 = vmatpush1.msra.mxu0 0.0
      %1179 = vmatprep.subr.mxu0 0.0
      %1180 = vmatpush1.msra.mxu0 0.0
      %1181 = vmatprep.subr.mxu0 0.0
      %1182 = vmatpush1.msra.mxu0 0.0
      %1183 = vmatprep.subr.mxu0 0.0
      %1184 = vmatpush1.msra.mxu0 0.0
      %1185 = vmatprep.subr.mxu0 0.0
      %1186 = vmatpush1.msra.mxu0 0.0
      %1187 = vmatprep.subr.mxu0 0.0
      %1188 = vmatpush1.msra.mxu0 0.0
      %1189 = vmatprep.subr.mxu0 0.0
      %1190 = vmatpush1.msra.mxu0 0.0
      %1191 = vmatprep.subr.mxu0 0.0
      %1192 = vmatpush1.msra.mxu0 0.0
      %1193 = vmatprep.subr.mxu0 0.0
      %1194 = vmatpush1.msra.mxu0 0.0
      %1195 = vmatprep.subr.mxu0 0.0
      %1196 = vmatpush1.msra.mxu0 0.0
      %1197 = vmatprep.subr.mxu0 0.0
      %1198 = vmatpush1.msra.mxu0 0.0
      %1199 = vmatprep.subr.mxu0 0.0
      %1200 = vmatpush1.msra.mxu0 %v513
      %1201 = vmatprep.subr.mxu0 0.0
      %1202 = vmatpush2.msra.mxu0 0.0
      %1203 = vmatprep.subr.mxu0 0.0
      %1204 = vmatpush2.msra.mxu0 0.0
      %1205 = vmatprep.subr.mxu0 0.0
      %1206 = vmatpush2.msra.mxu0 0.0
      %1207 = vmatprep.subr.mxu0 0.0
      %1208 = vmatpush2.msra.mxu0 0.0
      %1209 = vmatprep.subr.mxu0 0.0
      %1210 = vmatpush2.msra.mxu0 0.0
      %1211 = vmatprep.subr.mxu0 0.0
      %1212 = vmatpush2.msra.mxu0 0.0
      %1213 = vmatprep.subr.mxu0 0.0
      %1214 = vmatpush2.msra.mxu0 0.0
      %1215 = vmatprep.subr.mxu0 0.0
      %1216 = vmatpush2.msra.mxu0 0.0
      %1217 = vmatprep.subr.mxu0 0.0
      %1218 = vmatpush2.msra.mxu0 0.0
      %1219 = vmatprep.subr.mxu0 0.0
      %1220 = vmatpush2.msra.mxu0 0.0
      %1221 = vmatprep.subr.mxu0 0.0
      %1222 = vmatpush2.msra.mxu0 0.0
      %1223 = vmatprep.subr.mxu0 0.0
      %1224 = vmatpush2.msra.mxu0 0.0
      %1225 = vmatprep.subr.mxu0 0.0
      %1226 = vmatpush2.msra.mxu0 0.0
      %1227 = vmatprep.subr.mxu0 0.0
      %1228 = vmatpush2.msra.mxu0 0.0
      %1229 = vmatprep.subr.mxu0 0.0
      %1230 = vmatpush2.msra.mxu0 0.0
      %1231 = vmatprep.subr.mxu0 0.0
      %1232 = vmatpush2.msra.mxu0 0.0
      %1233 = vmatprep.mubr.f32.mxu0 0.0
      %1234 = vmatmul.mubr.f32.gmra.mxu0 %v1167
      %v1235 = vpop.f32.mrf.mxu0
      %v1236 = vadd.f32 0.0, %v1235
      %v1237 = vpop.f32.mrf.mxu0
      %1238 = vdwg.mxu0
      %v1239 = vadd.f32 %v943, %v1017
      %v1240 = vadd.f32 %v944, %v1090
      %v1241 = vadd.f32 %v945, %v1163
      %v1242 = vadd.f32 %v946, %v1236
      %1243 = vst.msk [vmem:[#allocation4] sm:$0xff] %vm521, %v1239
      %1244 = vst.msk [vmem:[#allocation4 + $0x8] sm:$0xff] %vm521, %v1240
      %1245 = vst.msk [vmem:[#allocation4 + $0x10] sm:$0xff] %vm521, %v1241
      %1246 = vst.msk [vmem:[#allocation4 + $0x18] sm:$0xff] %vm521, %v1242
      %1247 = vst.msk [vmem:[#allocation2] sm:$0xff] %vm914, %v842
      %1248 = vst.msk [vmem:[#allocation2 + $0x8] sm:$0xff] %vm914, %v843
      %1249 = vst.msk [vmem:[#allocation2 + $0x10] sm:$0xff] %vm914, %v844
      %1250 = vst.msk [vmem:[#allocation2 + $0x18] sm:$0xff] %vm914, %v845
      // Predicated region
      $region61: #{decoder_layer.10} parent=55 // pred_check
        %p1251 = pneg %p484
      $region62: #{decoder_layer.10} parent=55 // pred_check_branch
        %1253 = sbr.rel (%p1251) target = $region64
      $region63: #{decoder_layer.10} parent=55 // pred_region
        %v1254 = vld [vmem:[#allocation4] sm:$0xff]
        %v1255 = vld [vmem:[#allocation4 + $0x8] sm:$0xff]
        %v1256 = vld [vmem:[#allocation4 + $0x10] sm:$0xff]
        %v1257 = vld [vmem:[#allocation4 + $0x18] sm:$0xff]
        %v1258 = vld [vmem:[#allocation3] sm:$0xff]
        %v1259 = vld [vmem:[#allocation3 + $0x8] sm:$0xff]
        %v1260 = vld [vmem:[#allocation3 + $0x10] sm:$0xff]
        %v1261 = vld [vmem:[#allocation3 + $0x18] sm:$0xff]
        %1263 = vset.pattern.permute.xlu0 0
        %1264 = vperm.xlu0 %1263, %v1258
        %v1265 = vpop.permute.xlu0 %1264
        %1268 = vset.pattern.permute.xlu0 0
        %1269 = vperm.xlu0 %1268, %v1259
        %v1270 = vpop.permute.xlu0 %1269
        %1273 = vset.pattern.permute.xlu0 0
        %1274 = vperm.xlu0 %1273, %v1260
        %v1275 = vpop.permute.xlu0 %1274
        %1278 = vset.pattern.permute.xlu0 0
        %1279 = vperm.xlu0 %1278, %v1261
        %v1280 = vpop.permute.xlu0 %1279
        %v1282 = vrcp.pop %v1265
        %v1283 = vmul.f32 %v1254, %v1282
        %v1284 = vrcp.pop %v1270
        %v1285 = vmul.f32 %v1255, %v1284
        %v1286 = vrcp.pop %v1275
        %v1287 = vmul.f32 %v1256, %v1286
        %v1288 = vrcp.pop %v1280
        %v1289 = vmul.f32 %v1257, %v1288
        %v1290 = vld [vmem:[%s5] sm:$0xff]
        %s1291 = scalar_lea.vmem %s5, 8
        %v1292 = vld [vmem:[%s1291] sm:$0xff]
        %v1294 = vsel %vm521, %v1285, 0
        %1296 = vmatprep.subr.mxu0 0.0
        %1297 = vmatpush1.msra.mxu0 0.0
        %1298 = vmatprep.subr.mxu0 0.0
        %1299 = vmatpush1.msra.mxu0 0.0
        %1300 = vmatprep.subr.mxu0 0.0
        %1301 = vmatpush1.msra.mxu0 0.0
        %1302 = vmatprep.subr.mxu0 0.0
        %1303 = vmatpush1.msra.mxu0 0.0
        %1304 = vmatprep.subr.mxu0 0.0
        %1305 = vmatpush1.msra.mxu0 0.0
        %1306 = vmatprep.subr.mxu0 0.0
        %1307 = vmatpush1.msra.mxu0 0.0
        %1308 = vmatprep.subr.mxu0 0.0
        %1309 = vmatpush1.msra.mxu0 0.0
        %1310 = vmatprep.subr.mxu0 0.0
        %1311 = vmatpush1.msra.mxu0 0.0
        %1312 = vmatprep.subr.mxu0 0.0
        %1313 = vmatpush1.msra.mxu0 0.0
        %1314 = vmatprep.subr.mxu0 0.0
        %1315 = vmatpush1.msra.mxu0 0.0
        %1316 = vmatprep.subr.mxu0 0.0
        %1317 = vmatpush1.msra.mxu0 0.0
        %1318 = vmatprep.subr.mxu0 0.0
        %1319 = vmatpush1.msra.mxu0 0.0
        %1320 = vmatprep.subr.mxu0 0.0
        %1321 = vmatpush1.msra.mxu0 0.0
        %1322 = vmatprep.subr.mxu0 0.0
        %1323 = vmatpush1.msra.mxu0 0.0
        %1324 = vmatprep.subr.mxu0 0.0
        %1325 = vmatpush1.msra.mxu0 0.0
        %1326 = vmatprep.subr.mxu0 0.0
        %1327 = vmatpush1.msra.mxu0 %v1292
        %1328 = vmatprep.subr.mxu0 0.0
        %1329 = vmatpush2.msra.mxu0 0.0
        %1330 = vmatprep.subr.mxu0 0.0
        %1331 = vmatpush2.msra.mxu0 0.0
        %1332 = vmatprep.subr.mxu0 0.0
        %1333 = vmatpush2.msra.mxu0 0.0
        %1334 = vmatprep.subr.mxu0 0.0
        %1335 = vmatpush2.msra.mxu0 0.0
        %1336 = vmatprep.subr.mxu0 0.0
        %1337 = vmatpush2.msra.mxu0 0.0
        %1338 = vmatprep.subr.mxu0 0.0
        %1339 = vmatpush2.msra.mxu0 0.0
        %1340 = vmatprep.subr.mxu0 0.0
        %1341 = vmatpush2.msra.mxu0 0.0
        %1342 = vmatprep.subr.mxu0 0.0
        %1343 = vmatpush2.msra.mxu0 0.0
        %1344 = vmatprep.subr.mxu0 0.0
        %1345 = vmatpush2.msra.mxu0 0.0
        %1346 = vmatprep.subr.mxu0 0.0
        %1347 = vmatpush2.msra.mxu0 0.0
        %1348 = vmatprep.subr.mxu0 0.0
        %1349 = vmatpush2.msra.mxu0 0.0
        %1350 = vmatprep.subr.mxu0 0.0
        %1351 = vmatpush2.msra.mxu0 0.0
        %1352 = vmatprep.subr.mxu0 0.0
        %1353 = vmatpush2.msra.mxu0 0.0
        %1354 = vmatprep.subr.mxu0 0.0
        %1355 = vmatpush2.msra.mxu0 0.0
        %1356 = vmatprep.subr.mxu0 0.0
        %1357 = vmatpush2.msra.mxu0 0.0
        %1358 = vmatprep.subr.mxu0 0.0
        %1359 = vmatpush2.msra.mxu0 0.0
        %1360 = vmatprep.mubr.f32.mxu0 0.0
        %1361 = vmatmul.mubr.f32.gmra.mxu0 %v1294
        %v1362 = vpop.f32.mrf.mxu0
        %v1363 = vadd.f32 0.0, %v1362
        %v1364 = vpop.f32.mrf.mxu0
        %1365 = vdwg.mxu0
        %v1367 = vsel %vm521, %v1283, 0
        %1369 = vmatprep.subr.mxu0 0.0
        %1370 = vmatpush1.msra.mxu0 0.0
        %1371 = vmatprep.subr.mxu0 0.0
        %1372 = vmatpush1.msra.mxu0 0.0
        %1373 = vmatprep.subr.mxu0 0.0
        %1374 = vmatpush1.msra.mxu0 0.0
        %1375 = vmatprep.subr.mxu0 0.0
        %1376 = vmatpush1.msra.mxu0 0.0
        %1377 = vmatprep.subr.mxu0 0.0
        %1378 = vmatpush1.msra.mxu0 0.0
        %1379 = vmatprep.subr.mxu0 0.0
        %1380 = vmatpush1.msra.mxu0 0.0
        %1381 = vmatprep.subr.mxu0 0.0
        %1382 = vmatpush1.msra.mxu0 0.0
        %1383 = vmatprep.subr.mxu0 0.0
        %1384 = vmatpush1.msra.mxu0 0.0
        %1385 = vmatprep.subr.mxu0 0.0
        %1386 = vmatpush1.msra.mxu0 0.0
        %1387 = vmatprep.subr.mxu0 0.0
        %1388 = vmatpush1.msra.mxu0 0.0
        %1389 = vmatprep.subr.mxu0 0.0
        %1390 = vmatpush1.msra.mxu0 0.0
        %1391 = vmatprep.subr.mxu0 0.0
        %1392 = vmatpush1.msra.mxu0 0.0
        %1393 = vmatprep.subr.mxu0 0.0
        %1394 = vmatpush1.msra.mxu0 0.0
        %1395 = vmatprep.subr.mxu0 0.0
        %1396 = vmatpush1.msra.mxu0 0.0
        %1397 = vmatprep.subr.mxu0 0.0
        %1398 = vmatpush1.msra.mxu0 0.0
        %1399 = vmatprep.subr.mxu0 0.0
        %1400 = vmatpush1.msra.mxu0 %v1290
        %1401 = vmatprep.subr.mxu0 0.0
        %1402 = vmatpush2.msra.mxu0 0.0
        %1403 = vmatprep.subr.mxu0 0.0
        %1404 = vmatpush2.msra.mxu0 0.0
        %1405 = vmatprep.subr.mxu0 0.0
        %1406 = vmatpush2.msra.mxu0 0.0
        %1407 = vmatprep.subr.mxu0 0.0
        %1408 = vmatpush2.msra.mxu0 0.0
        %1409 = vmatprep.subr.mxu0 0.0
        %1410 = vmatpush2.msra.mxu0 0.0
        %1411 = vmatprep.subr.mxu0 0.0
        %1412 = vmatpush2.msra.mxu0 0.0
        %1413 = vmatprep.subr.mxu0 0.0
        %1414 = vmatpush2.msra.mxu0 0.0
        %1415 = vmatprep.subr.mxu0 0.0
        %1416 = vmatpush2.msra.mxu0 0.0
        %1417 = vmatprep.subr.mxu0 0.0
        %1418 = vmatpush2.msra.mxu0 0.0
        %1419 = vmatprep.subr.mxu0 0.0
        %1420 = vmatpush2.msra.mxu0 0.0
        %1421 = vmatprep.subr.mxu0 0.0
        %1422 = vmatpush2.msra.mxu0 0.0
        %1423 = vmatprep.subr.mxu0 0.0
        %1424 = vmatpush2.msra.mxu0 0.0
        %1425 = vmatprep.subr.mxu0 0.0
        %1426 = vmatpush2.msra.mxu0 0.0
        %1427 = vmatprep.subr.mxu0 0.0
        %1428 = vmatpush2.msra.mxu0 0.0
        %1429 = vmatprep.subr.mxu0 0.0
        %1430 = vmatpush2.msra.mxu0 0.0
        %1431 = vmatprep.subr.mxu0 0.0
        %1432 = vmatpush2.msra.mxu0 0.0
        %1433 = vmatprep.mubr.f32.mxu0 0.0
        %1434 = vmatmul.mubr.f32.gmra.mxu0 %v1367
        %v1435 = vpop.f32.mrf.mxu0
        %v1436 = vadd.f32 %v1363, %v1435
        %v1437 = vpop.f32.mrf.mxu0
        %1438 = vdwg.mxu0
        %s1439 = scalar_lea.vmem %s5, 16
        %v1440 = vld [vmem:[%s1439] sm:$0xff]
        %v1442 = vsel %vm521, %v1287, 0
        %1444 = vmatprep.subr.mxu0 0.0
        %1445 = vmatpush1.msra.mxu0 0.0
        %1446 = vmatprep.subr.mxu0 0.0
        %1447 = vmatpush1.msra.mxu0 0.0
        %1448 = vmatprep.subr.mxu0 0.0
        %1449 = vmatpush1.msra.mxu0 0.0
        %1450 = vmatprep.subr.mxu0 0.0
        %1451 = vmatpush1.msra.mxu0 0.0
        %1452 = vmatprep.subr.mxu0 0.0
        %1453 = vmatpush1.msra.mxu0 0.0
        %1454 = vmatprep.subr.mxu0 0.0
        %1455 = vmatpush1.msra.mxu0 0.0
        %1456 = vmatprep.subr.mxu0 0.0
        %1457 = vmatpush1.msra.mxu0 0.0
        %1458 = vmatprep.subr.mxu0 0.0
        %1459 = vmatpush1.msra.mxu0 0.0
        %1460 = vmatprep.subr.mxu0 0.0
        %1461 = vmatpush1.msra.mxu0 0.0
        %1462 = vmatprep.subr.mxu0 0.0
        %1463 = vmatpush1.msra.mxu0 0.0
        %1464 = vmatprep.subr.mxu0 0.0
        %1465 = vmatpush1.msra.mxu0 0.0
        %1466 = vmatprep.subr.mxu0 0.0
        %1467 = vmatpush1.msra.mxu0 0.0
        %1468 = vmatprep.subr.mxu0 0.0
        %1469 = vmatpush1.msra.mxu0 0.0
        %1470 = vmatprep.subr.mxu0 0.0
        %1471 = vmatpush1.msra.mxu0 0.0
        %1472 = vmatprep.subr.mxu0 0.0
        %1473 = vmatpush1.msra.mxu0 0.0
        %1474 = vmatprep.subr.mxu0 0.0
        %1475 = vmatpush1.msra.mxu0 %v1440
        %1476 = vmatprep.subr.mxu0 0.0
        %1477 = vmatpush2.msra.mxu0 0.0
        %1478 = vmatprep.subr.mxu0 0.0
        %1479 = vmatpush2.msra.mxu0 0.0
        %1480 = vmatprep.subr.mxu0 0.0
        %1481 = vmatpush2.msra.mxu0 0.0
        %1482 = vmatprep.subr.mxu0 0.0
        %1483 = vmatpush2.msra.mxu0 0.0
        %1484 = vmatprep.subr.mxu0 0.0
        %1485 = vmatpush2.msra.mxu0 0.0
        %1486 = vmatprep.subr.mxu0 0.0
        %1487 = vmatpush2.msra.mxu0 0.0
        %1488 = vmatprep.subr.mxu0 0.0
        %1489 = vmatpush2.msra.mxu0 0.0
        %1490 = vmatprep.subr.mxu0 0.0
        %1491 = vmatpush2.msra.mxu0 0.0
        %1492 = vmatprep.subr.mxu0 0.0
        %1493 = vmatpush2.msra.mxu0 0.0
        %1494 = vmatprep.subr.mxu0 0.0
        %1495 = vmatpush2.msra.mxu0 0.0
        %1496 = vmatprep.subr.mxu0 0.0
        %1497 = vmatpush2.msra.mxu0 0.0
        %1498 = vmatprep.subr.mxu0 0.0
        %1499 = vmatpush2.msra.mxu0 0.0
        %1500 = vmatprep.subr.mxu0 0.0
        %1501 = vmatpush2.msra.mxu0 0.0
        %1502 = vmatprep.subr.mxu0 0.0
        %1503 = vmatpush2.msra.mxu0 0.0
        %1504 = vmatprep.subr.mxu0 0.0
        %1505 = vmatpush2.msra.mxu0 0.0
        %1506 = vmatprep.subr.mxu0 0.0
        %1507 = vmatpush2.msra.mxu0 0.0
        %1508 = vmatprep.mubr.f32.mxu0 0.0
        %1509 = vmatmul.mubr.f32.gmra.mxu0 %v1442
        %v1510 = vpop.f32.mrf.mxu0
        %v1511 = vadd.f32 0.0, %v1510
        %v1512 = vpop.f32.mrf.mxu0
        %1513 = vdwg.mxu0
        %v1514 = vadd.f32 %v1436, %v1511
        %s1515 = scalar_lea.vmem %s5, 24
        %v1516 = vld [vmem:[%s1515] sm:$0xff]
        %v1518 = vsel %vm521, %v1289, 0
        %1520 = vmatprep.subr.mxu0 0.0
        %1521 = vmatpush1.msra.mxu0 0.0
        %1522 = vmatprep.subr.mxu0 0.0
        %1523 = vmatpush1.msra.mxu0 0.0
        %1524 = vmatprep.subr.mxu0 0.0
        %1525 = vmatpush1.msra.mxu0 0.0
        %1526 = vmatprep.subr.mxu0 0.0
        %1527 = vmatpush1.msra.mxu0 0.0
        %1528 = vmatprep.subr.mxu0 0.0
        %1529 = vmatpush1.msra.mxu0 0.0
        %1530 = vmatprep.subr.mxu0 0.0
        %1531 = vmatpush1.msra.mxu0 0.0
        %1532 = vmatprep.subr.mxu0 0.0
        %1533 = vmatpush1.msra.mxu0 0.0
        %1534 = vmatprep.subr.mxu0 0.0
        %1535 = vmatpush1.msra.mxu0 0.0
        %1536 = vmatprep.subr.mxu0 0.0
        %1537 = vmatpush1.msra.mxu0 0.0
        %1538 = vmatprep.subr.mxu0 0.0
        %1539 = vmatpush1.msra.mxu0 0.0
        %1540 = vmatprep.subr.mxu0 0.0
        %1541 = vmatpush1.msra.mxu0 0.0
        %1542 = vmatprep.subr.mxu0 0.0
        %1543 = vmatpush1.msra.mxu0 0.0
        %1544 = vmatprep.subr.mxu0 0.0
        %1545 = vmatpush1.msra.mxu0 0.0
        %1546 = vmatprep.subr.mxu0 0.0
        %1547 = vmatpush1.msra.mxu0 0.0
        %1548 = vmatprep.subr.mxu0 0.0
        %1549 = vmatpush1.msra.mxu0 0.0
        %1550 = vmatprep.subr.mxu0 0.0
        %1551 = vmatpush1.msra.mxu0 %v1516
        %1552 = vmatprep.subr.mxu0 0.0
        %1553 = vmatpush2.msra.mxu0 0.0
        %1554 = vmatprep.subr.mxu0 0.0
        %1555 = vmatpush2.msra.mxu0 0.0
        %1556 = vmatprep.subr.mxu0 0.0
        %1557 = vmatpush2.msra.mxu0 0.0
        %1558 = vmatprep.subr.mxu0 0.0
        %1559 = vmatpush2.msra.mxu0 0.0
        %1560 = vmatprep.subr.mxu0 0.0
        %1561 = vmatpush2.msra.mxu0 0.0
        %1562 = vmatprep.subr.mxu0 0.0
        %1563 = vmatpush2.msra.mxu0 0.0
        %1564 = vmatprep.subr.mxu0 0.0
        %1565 = vmatpush2.msra.mxu0 0.0
        %1566 = vmatprep.subr.mxu0 0.0
        %1567 = vmatpush2.msra.mxu0 0.0
        %1568 = vmatprep.subr.mxu0 0.0
        %1569 = vmatpush2.msra.mxu0 0.0
        %1570 = vmatprep.subr.mxu0 0.0
        %1571 = vmatpush2.msra.mxu0 0.0
        %1572 = vmatprep.subr.mxu0 0.0
        %1573 = vmatpush2.msra.mxu0 0.0
        %1574 = vmatprep.subr.mxu0 0.0
        %1575 = vmatpush2.msra.mxu0 0.0
        %1576 = vmatprep.subr.mxu0 0.0
        %1577 = vmatpush2.msra.mxu0 0.0
        %1578 = vmatprep.subr.mxu0 0.0
        %1579 = vmatpush2.msra.mxu0 0.0
        %1580 = vmatprep.subr.mxu0 0.0
        %1581 = vmatpush2.msra.mxu0 0.0
        %1582 = vmatprep.subr.mxu0 0.0
        %1583 = vmatpush2.msra.mxu0 0.0
        %1584 = vmatprep.mubr.f32.mxu0 0.0
        %1585 = vmatmul.mubr.f32.gmra.mxu0 %v1518
        %v1586 = vpop.f32.mrf.mxu0
        %v1587 = vadd.f32 0.0, %v1586
        %v1588 = vpop.f32.mrf.mxu0
        %1589 = vdwg.mxu0
        %v1590 = vadd.f32 %v1514, %v1587
        %v1591 = vld [vmem:[%s6] sm:$0x1]
        %v1593 = vlaneseq
        %v1594 = vshrl.u32 %v1593, 7
        %v1595 = vsub.s32 0, %v1594
        %v1596 = vrot.slane %v1591, %v1595
        %v1598 = vadd.f32 %v1590, %v1596
        %v1599 = vld [vmem:[%s446] sm:$0xff]
        %v1600 = vadd.f32 %v1599, %v1598
        %vm1601 = vcmask 261120
        %v1602 = vsel %vm1601, %v1600, 0.0
        %1603 = vadd.xlane.f32.xlu0 %v1602
        %v1604 = vpop.xlane.xlu0 %1603
        %v1605 = vrcp.pop 32.0
        %v1606 = vmul.f32 %v1604, %v1605
        %v1607 = vsub.f32 %v1600, %v1606
        %v1608 = vmul.f32 %v1607, %v1607
        %v1609 = vsel %vm1601, %v1608, 0.0
        %1610 = vadd.xlane.f32.xlu0 %v1609
        %v1611 = vpop.xlane.xlu0 %1610
        %v1612 = vmul.f32 %v1611, %v1605
        %v1613 = vadd.f32 %v1612, 1e-05
        %v1614 = vrsqrt.pop %v1613
        %v1615 = vmul.f32 %v1607, %v1614
        %v1616 = vld [vmem:[%s7] sm:$0x1]
        %v1618 = vlaneseq
        %v1619 = vshrl.u32 %v1618, 7
        %v1620 = vsub.s32 0, %v1619
        %v1621 = vrot.slane %v1616, %v1620
        %v1623 = vmul.f32 %v1615, %v1621
        %v1624 = vld [vmem:[%s8] sm:$0x1]
        %v1626 = vlaneseq
        %v1627 = vshrl.u32 %v1626, 7
        %v1628 = vsub.s32 0, %v1627
        %v1629 = vrot.slane %v1624, %v1628
        %v1631 = vadd.f32 %v1623, %v1629
        %1632 = vst.msk [vmem:[%s483] sm:$0xff] %vm1601, %v1631
      $region64: #{decoder_layer.10} parent=55 // pred_fallthru
        _
      %p1633 = scmp.lt.s32.totalorder %s25, 1
      %s1634 = scalar_select %p1633, %s25, 1
      %p1635 = scmp.lt.s32.totalorder %s26, 0
      %s1636 = scalar_select %p1635, %s26, 0
      %s1637 = sadd.s32 %s1636, %s1634
      %s1638 = smul.addr %s1637, 8
      %s1639 = scalar_lea.vmem %s9, %s1638
      // Predicated region
      $region65: #{decoder_layer.10} parent=55 // pred_check
        %p1640 = pneg %p283
      $region66: #{decoder_layer.10} parent=55 // pred_check_branch
        %1642 = sbr.rel (%p1640) target = $region68
      $region67: #{decoder_layer.10} parent=55 // pred_region
        _
      $region68: #{decoder_layer.10} parent=55 // pred_fallthru
        _
    $region56: #{decoder_layer.10} parent=5 // pred_fallthru
      _
    %p1643 = scmp.le.s32.totalorder 2, %s15
    // Predicated region
    $region69: #{decoder_layer.10} parent=5 // pred_check
      %p1644 = pneg %p1643
    $region70: #{decoder_layer.10} parent=5 // pred_check_branch
      %1646 = sbr.rel (%p1644) target = $region72
    $region71: #{decoder_layer.10} parent=5 // pred_region
      %s1647 = ssub.s32 %s15, 2
      // Predicated region
      $region73: #{decoder_layer.10} parent=71 // pred_check
        %p1648 = pneg %p289
      $region74: #{decoder_layer.10} parent=71 // pred_check_branch
        %1650 = sbr.rel (%p1648) target = $region76
      $region75: #{decoder_layer.10} parent=71 // pred_region
        %p1651 = scmp.lt.s32.totalorder %s28, 1
        %s1652 = scalar_select %p1651, %s28, 1
        %p1653 = scmp.lt.s32.totalorder %s29, 0
        %s1654 = scalar_select %p1653, %s29, 0
        %s1655 = sadd.s32 %s1654, %s1652
        %s1656 = smul.addr %s1655, 8
        %s1657 = scalar_lea.vmem %s9, %s1656
      $region76: #{decoder_layer.10} parent=71 // pred_fallthru
        _
    $region72: #{decoder_layer.10} parent=5 // pred_fallthru
      _
  $region6: #{decoder_layer.10} parent=0 // loop_footer
    %s19 = sadd.s32 1, %s15
  $region7: #{decoder_layer.10} parent=0 // loop_footer_branch
    %14 = sbr.rel target = $region3
  $region8: #{decoder_layer.10} parent=0 // loop_exit
    _

</llo_original>
